<compile_context>
chip_gen: v5e
topology: v5e:2x2
jax: 0.10.0
libtpu: 0.0.40
codegen_flags: <defaults>
</compile_context>

<pallas_src>
import jax
import jax.numpy as jnp
from jax import lax
from jax.experimental import pallas as pl
from jax.experimental.pallas import tpu as pltpu

INPUT_SIZE = 4
TIME_STEP = 6
HIDDEN = 20
BN_EPS = 1e-5

HP = 128            # hidden width padded to one full vreg lane-width
FP = 128            # input feature width padded to one full vreg lane-width
GP = 4 * HP         # padded packed-gate width (each gate owns a 128-lane block)


def _sigmoid(x):
    # single-transcendental sigmoid: sigmoid(x) = 0.5 * tanh(0.5 x) + 0.5
    return 0.5 * jnp.tanh(0.5 * x) + 0.5


def rnn_kernel(x_ref, gamma_ref, beta_ref,
               wih0_ref, whh0_ref, b0_ref,
               wih1_ref, whh1_ref, b1_ref,
               wout_ref, bout_ref,
               out_ref):
    """Whole forward pass in one kernel invocation (tiny shapes, all VMEM)."""
    TB = x_ref.shape[0]
    T = TIME_STEP
    B = TB // T

    # ---- load weights once; they stay register/VMEM-resident for the loop ----
    wih0 = wih0_ref[...]
    whh0 = whh0_ref[...]
    b0 = b0_ref[...]
    wih1 = wih1_ref[...]
    whh1 = whh1_ref[...]
    b1 = b1_ref[...]

    # ---- hoisted BatchNorm1d(T) on x, training-mode batch stats, one pass ----
    # Padded feature lanes are zero, so plain full sums equal the real-feature
    # sums; divide by the real count (B * INPUT_SIZE).
    inv_n = 1.0 / float(B * INPUT_SIZE)
    xbn_rows = []
    for t in range(T):
        xt = x_ref[t * B:(t + 1) * B, :]                       # (B, FP)
        m = jnp.sum(xt, keepdims=True) * inv_n                 # (1, 1)
        ex2 = jnp.sum(xt * xt, keepdims=True) * inv_n          # (1, 1)
        v = ex2 - m * m
        scale = gamma_ref[t] * lax.rsqrt(v + BN_EPS)           # (1, 1)
        shift = beta_ref[t] - scale * m
        xbn_rows.append(xt * scale + shift)
    xbn = jnp.concatenate(xbn_rows, axis=0)                    # (T*B, FP)

    # ---- hoisted layer-0 input projection: one (T*B, FP) @ (FP, GP) matmul ----
    gx0 = jnp.dot(xbn, wih0, preferred_element_type=jnp.float32) + b0   # (T*B, GP)

    def lstm_cell(gpre, h, c, whh):
        # gates packed in PyTorch order [i, f, g, o]; each gate occupies its
        # own 128-lane block, so these slices are whole-vreg extracts.
        g = gpre + jnp.dot(h, whh, preferred_element_type=jnp.float32)
        i = _sigmoid(g[:, 0:HP])
        f = _sigmoid(g[:, HP:2 * HP])
        gg = jnp.tanh(g[:, 2 * HP:3 * HP])
        o = _sigmoid(g[:, 3 * HP:4 * HP])
        c_new = f * c + i * gg
        h_new = o * jnp.tanh(c_new)
        return h_new, c_new

    zeros = jnp.zeros((B, HP), jnp.float32)
    h1, c1 = zeros, zeros

    # ---- wavefront schedule: layer-0 step t+1 is independent of layer-1 step t ----
    h0, c0 = lstm_cell(gx0[0:B, :], zeros, zeros, whh0)        # layer-0, step 0
    for t in range(T):
        if t + 1 < T:
            h0n, c0n = lstm_cell(gx0[(t + 1) * B:(t + 2) * B, :], h0, c0, whh0)
        g1pre = jnp.dot(h0, wih1, preferred_element_type=jnp.float32) + b1
        h1, c1 = lstm_cell(g1pre, h1, c1, whh1)
        if t + 1 < T:
            h0, c0 = h0n, c0n

    # ---- second BatchNorm on r_out: only channel T-1 feeds the Linear head,
    # and its per-channel batch stats depend only on r_out[:, T-1, :] == h1.
    # Padded lanes of h1 are exactly zero, so one-pass sums / (B*HIDDEN) give
    # the real-feature statistics. ----
    inv_h = 1.0 / float(B * HIDDEN)
    m2 = jnp.sum(h1, keepdims=True) * inv_h
    ex2 = jnp.sum(h1 * h1, keepdims=True) * inv_h
    v2 = ex2 - m2 * m2
    scale2 = gamma_ref[T - 1] * lax.rsqrt(v2 + BN_EPS)
    rn = (h1 - m2) * scale2 + beta_ref[T - 1]

    # Lane-dense (B, 128) output; padded rows of wout are zero, so the garbage
    # BN values on padded lanes of rn cannot leak into column 0.
    out_ref[...] = (jnp.dot(rn, wout_ref[...], preferred_element_type=jnp.float32)
                    + bout_ref[...])


def _pad_gates(w, in_pad):
    """(in, 4*HIDDEN) -> (in_pad, GP); gate k lives in lanes [k*HP, k*HP+HIDDEN)."""
    in_dim = w.shape[0]
    wp = jnp.zeros((in_pad, GP), jnp.float32)
    for k in range(4):
        wp = wp.at[:in_dim, k * HP:k * HP + HIDDEN].set(
            w[:, k * HIDDEN:(k + 1) * HIDDEN])
    return wp


def _pad_params(params):
    gamma, beta, wih0, whh0, b0, wih1, whh1, b1, wout, bout = params
    wih0_p = _pad_gates(wih0, FP)       # (FP, GP), rows >= INPUT_SIZE are zero
    whh0_p = _pad_gates(whh0, HP)       # (HP, GP), rows >= HIDDEN are zero
    b0_p = _pad_gates(b0, 1)            # (1, GP)
    wih1_p = _pad_gates(wih1, HP)
    whh1_p = _pad_gates(whh1, HP)
    b1_p = _pad_gates(b1, 1)
    wout_p = jnp.zeros((HP, HP), jnp.float32).at[:HIDDEN, 0:1].set(wout)
    bout_p = jnp.zeros((1, HP), jnp.float32).at[0, 0].set(bout[0, 0])
    return (gamma, beta, wih0_p, whh0_p, b0_p, wih1_p, whh1_p, b1_p,
            wout_p, bout_p)


@jax.jit
def rnn_forward(x, params):
    B, T, F = x.shape
    # layout plumbing in the wrapper: time-major rows, lane-padded features
    xt = jnp.transpose(x, (1, 0, 2)).reshape(T * B, F)
    xt = jnp.pad(xt, ((0, 0), (0, FP - F)))
    p = _pad_params(params)

    vmem = pl.BlockSpec(memory_space=pltpu.MemorySpace.VMEM)
    smem = pl.BlockSpec(memory_space=pltpu.MemorySpace.SMEM)
    in_specs = [vmem, smem, smem] + [vmem] * 8

    out = pl.pallas_call(
        rnn_kernel,
        out_shape=jax.ShapeDtypeStruct((B, HP), jnp.float32),
        in_specs=in_specs,
        out_specs=vmem,
    )(xt, *p)
    return out[:, :1]


def init_params(key):
    ks = jax.random.split(key, 10)
    k = 1.0 / float(HIDDEN) ** 0.5

    def u(kk, shape, lo, hi):
        return jax.random.uniform(kk, shape, jnp.float32, lo, hi)

    gamma = u(ks[0], (TIME_STEP,), 0.5, 1.5)            # BN weight
    beta = u(ks[1], (TIME_STEP,), -0.1, 0.1)            # BN bias
    wih0 = u(ks[2], (INPUT_SIZE, 4 * HIDDEN), -k, k)    # layer-0 W_ih^T
    whh0 = u(ks[3], (HIDDEN, 4 * HIDDEN), -k, k)        # layer-0 W_hh^T
    # TODO(synk): a real fresh PyTorch module sums two U(-k,k) biases (b_ih+b_hh);
    # here a single U(-k,k) combined bias is used (matches the in-file reference).
    b0 = u(ks[4], (1, 4 * HIDDEN), -k, k)
    wih1 = u(ks[5], (HIDDEN, 4 * HIDDEN), -k, k)        # layer-1 W_ih^T
    whh1 = u(ks[6], (HIDDEN, 4 * HIDDEN), -k, k)        # layer-1 W_hh^T
    b1 = u(ks[7], (1, 4 * HIDDEN), -k, k)
    wout = u(ks[8], (HIDDEN, 1), -k, k)                 # Linear weight^T
    bout = u(ks[9], (1, 1), -k, k)                      # Linear bias
    return (gamma, beta, wih0, whh0, b0, wih1, whh1, b1, wout, bout)


def ref_forward(x, params):
    """Pure-JAX reference mirroring the PyTorch forward exactly."""
    gamma, beta, wih0, whh0, b0, wih1, whh1, b1, wout, bout = params

    def bn(y):  # y: (B, T, F); BatchNorm1d(T), training-mode batch stats
        m = jnp.mean(y, axis=(0, 2), keepdims=True)
        v = jnp.mean((y - m) ** 2, axis=(0, 2), keepdims=True)
        return gamma[None, :, None] * (y - m) / jnp.sqrt(v + BN_EPS) + beta[None, :, None]

    xb = bn(x)
    B, T, _ = x.shape
    H = HIDDEN

    def cell(xin, h, c, wih, whh, b):
        g = xin @ wih + h @ whh + b
        i = jax.nn.sigmoid(g[:, :H])
        f = jax.nn.sigmoid(g[:, H:2 * H])
        gg = jnp.tanh(g[:, 2 * H:3 * H])
        o = jax.nn.sigmoid(g[:, 3 * H:])
        c = f * c + i * gg
        return o * jnp.tanh(c), c

    h0 = c0 = h1 = c1 = jnp.zeros((B, H), jnp.float32)
    r = []
    for t in range(T):
        h0, c0 = cell(xb[:, t, :], h0, c0, wih0, whh0, b0)
        h1, c1 = cell(h0, h1, c1, wih1, whh1, b1)
        r.append(h1)
    r_out = jnp.stack(r, axis=1)            # (B, T, H)
    rb = bn(r_out)
    return rb[:, -1, :] @ wout + bout


if __name__ == "__main__":
    key = jax.random.PRNGKey(0)
    kx, kp = jax.random.split(key)

    B = 8
    x = jax.random.normal(kx, (B, TIME_STEP, INPUT_SIZE), dtype=jnp.float32)
    params = init_params(kp)

    out = rnn_forward(x, params)
    out = jax.block_until_ready(out)

    ref = ref_forward(x, params)
    assert out.shape == (B, 1), out.shape
    assert jnp.allclose(out, ref, atol=1e-4, rtol=1e-4), (out, ref)

    print("KERNEL_OK")
</pallas_src>

<mosaic_0001>
module attributes {stable_mosaic.version = 11 : i64} {
  func.func @rnn_kernel(%arg0: memref<48x128xf32, #tpu.memory_space<vmem>>, %arg1: memref<6xf32, #tpu.memory_space<smem>>, %arg2: memref<6xf32, #tpu.memory_space<smem>>, %arg3: memref<128x512xf32, #tpu.memory_space<vmem>>, %arg4: memref<128x512xf32, #tpu.memory_space<vmem>>, %arg5: memref<1x512xf32, #tpu.memory_space<vmem>>, %arg6: memref<128x512xf32, #tpu.memory_space<vmem>>, %arg7: memref<128x512xf32, #tpu.memory_space<vmem>>, %arg8: memref<1x512xf32, #tpu.memory_space<vmem>>, %arg9: memref<128x128xf32, #tpu.memory_space<vmem>>, %arg10: memref<1x128xf32, #tpu.memory_space<vmem>>, %arg11: memref<8x128xf32, #tpu.memory_space<vmem>>) attributes {dimension_semantics = [], scalar_prefetch = 0 : i64, scratch_operands = 0 : i64, tpu.core_type = #tpu.core_type<tc>} {
    %c0 = arith.constant 0 : index
    %c0_0 = arith.constant 0 : index
    %0 = vector.load %arg3[%c0, %c0_0] : memref<128x512xf32, #tpu.memory_space<vmem>>, vector<128x512xf32>
    %c0_1 = arith.constant 0 : index
    %c0_2 = arith.constant 0 : index
    %1 = vector.load %arg4[%c0_1, %c0_2] : memref<128x512xf32, #tpu.memory_space<vmem>>, vector<128x512xf32>
    %c0_3 = arith.constant 0 : index
    %c0_4 = arith.constant 0 : index
    %2 = vector.load %arg5[%c0_3, %c0_4] : memref<1x512xf32, #tpu.memory_space<vmem>>, vector<1x512xf32>
    %c0_5 = arith.constant 0 : index
    %c0_6 = arith.constant 0 : index
    %3 = vector.load %arg6[%c0_5, %c0_6] : memref<128x512xf32, #tpu.memory_space<vmem>>, vector<128x512xf32>
    %c0_7 = arith.constant 0 : index
    %c0_8 = arith.constant 0 : index
    %4 = vector.load %arg7[%c0_7, %c0_8] : memref<128x512xf32, #tpu.memory_space<vmem>>, vector<128x512xf32>
    %c0_9 = arith.constant 0 : index
    %c0_10 = arith.constant 0 : index
    %5 = vector.load %arg8[%c0_9, %c0_10] : memref<1x512xf32, #tpu.memory_space<vmem>>, vector<1x512xf32>
    %c0_11 = arith.constant 0 : index
    %c0_12 = arith.constant 0 : index
    %6 = vector.load %arg0[%c0_11, %c0_12] : memref<48x128xf32, #tpu.memory_space<vmem>>, vector<8x128xf32>
    %7 = vector.shape_cast %6 : vector<8x128xf32> to vector<1x8x128xf32>
    %cst = arith.constant dense<0.000000e+00> : vector<1xf32>
    %8 = vector.multi_reduction <add>, %7, %cst [1, 2] : vector<1x8x128xf32> to vector<1xf32>
    %9 = vector.shape_cast %8 : vector<1xf32> to vector<1x1x1xf32>
    %10 = vector.extract %9[0, 0, 0] : f32 from vector<1x1x1xf32>
    %11 = vector.broadcast %10 : f32 to vector<1x1xf32>
    %cst_13 = arith.constant 3.125000e-02 : f32
    %12 = vector.broadcast %cst_13 : f32 to vector<1x1xf32>
    %13 = arith.mulf %11, %12 : vector<1x1xf32>
    %14 = arith.mulf %6, %6 : vector<8x128xf32>
    %15 = vector.shape_cast %14 : vector<8x128xf32> to vector<1x8x128xf32>
    %cst_14 = arith.constant dense<0.000000e+00> : vector<1xf32>
    %16 = vector.multi_reduction <add>, %15, %cst_14 [1, 2] : vector<1x8x128xf32> to vector<1xf32>
    %17 = vector.shape_cast %16 : vector<1xf32> to vector<1x1x1xf32>
    %18 = vector.extract %17[0, 0, 0] : f32 from vector<1x1x1xf32>
    %19 = vector.broadcast %18 : f32 to vector<1x1xf32>
    %cst_15 = arith.constant 3.125000e-02 : f32
    %20 = vector.broadcast %cst_15 : f32 to vector<1x1xf32>
    %21 = arith.mulf %19, %20 : vector<1x1xf32>
    %22 = arith.mulf %13, %13 : vector<1x1xf32>
    %23 = arith.subf %21, %22 : vector<1x1xf32>
    %c0_16 = arith.constant 0 : index
    %24 = memref.load %arg1[%c0_16] : memref<6xf32, #tpu.memory_space<smem>>
    %cst_17 = arith.constant 9.99999974E-6 : f32
    %25 = vector.broadcast %cst_17 : f32 to vector<1x1xf32>
    %26 = arith.addf %23, %25 : vector<1x1xf32>
    %27 = math.rsqrt %26 : vector<1x1xf32>
    %28 = vector.broadcast %24 : f32 to vector<1x1xf32>
    %29 = arith.mulf %28, %27 : vector<1x1xf32>
    %c0_18 = arith.constant 0 : index
    %30 = memref.load %arg2[%c0_18] : memref<6xf32, #tpu.memory_space<smem>>
    %31 = arith.mulf %29, %13 : vector<1x1xf32>
    %32 = vector.broadcast %30 : f32 to vector<1x1xf32>
    %33 = arith.subf %32, %31 : vector<1x1xf32>
    %34 = vector.broadcast %29 : vector<1x1xf32> to vector<8x128xf32>
    %35 = arith.mulf %6, %34 : vector<8x128xf32>
    %36 = vector.broadcast %33 : vector<1x1xf32> to vector<8x128xf32>
    %37 = arith.addf %35, %36 : vector<8x128xf32>
    %c8 = arith.constant 8 : index
    %c0_19 = arith.constant 0 : index
    %38 = vector.load %arg0[%c8, %c0_19] : memref<48x128xf32, #tpu.memory_space<vmem>>, vector<8x128xf32>
    %39 = vector.shape_cast %38 : vector<8x128xf32> to vector<1x8x128xf32>
    %cst_20 = arith.constant dense<0.000000e+00> : vector<1xf32>
    %40 = vector.multi_reduction <add>, %39, %cst_20 [1, 2] : vector<1x8x128xf32> to vector<1xf32>
    %41 = vector.shape_cast %40 : vector<1xf32> to vector<1x1x1xf32>
    %42 = vector.extract %41[0, 0, 0] : f32 from vector<1x1x1xf32>
    %43 = vector.broadcast %42 : f32 to vector<1x1xf32>
    %cst_21 = arith.constant 3.125000e-02 : f32
    %44 = vector.broadcast %cst_21 : f32 to vector<1x1xf32>
    %45 = arith.mulf %43, %44 : vector<1x1xf32>
    %46 = arith.mulf %38, %38 : vector<8x128xf32>
    %47 = vector.shape_cast %46 : vector<8x128xf32> to vector<1x8x128xf32>
    %cst_22 = arith.constant dense<0.000000e+00> : vector<1xf32>
    %48 = vector.multi_reduction <add>, %47, %cst_22 [1, 2] : vector<1x8x128xf32> to vector<1xf32>
    %49 = vector.shape_cast %48 : vector<1xf32> to vector<1x1x1xf32>
    %50 = vector.extract %49[0, 0, 0] : f32 from vector<1x1x1xf32>
    %51 = vector.broadcast %50 : f32 to vector<1x1xf32>
    %cst_23 = arith.constant 3.125000e-02 : f32
    %52 = vector.broadcast %cst_23 : f32 to vector<1x1xf32>
    %53 = arith.mulf %51, %52 : vector<1x1xf32>
    %54 = arith.mulf %45, %45 : vector<1x1xf32>
    %55 = arith.subf %53, %54 : vector<1x1xf32>
    %c1 = arith.constant 1 : index
    %56 = memref.load %arg1[%c1] : memref<6xf32, #tpu.memory_space<smem>>
    %cst_24 = arith.constant 9.99999974E-6 : f32
    %57 = vector.broadcast %cst_24 : f32 to vector<1x1xf32>
    %58 = arith.addf %55, %57 : vector<1x1xf32>
    %59 = math.rsqrt %58 : vector<1x1xf32>
    %60 = vector.broadcast %56 : f32 to vector<1x1xf32>
    %61 = arith.mulf %60, %59 : vector<1x1xf32>
    %c1_25 = arith.constant 1 : index
    %62 = memref.load %arg2[%c1_25] : memref<6xf32, #tpu.memory_space<smem>>
    %63 = arith.mulf %61, %45 : vector<1x1xf32>
    %64 = vector.broadcast %62 : f32 to vector<1x1xf32>
    %65 = arith.subf %64, %63 : vector<1x1xf32>
    %66 = vector.broadcast %61 : vector<1x1xf32> to vector<8x128xf32>
    %67 = arith.mulf %38, %66 : vector<8x128xf32>
    %68 = vector.broadcast %65 : vector<1x1xf32> to vector<8x128xf32>
    %69 = arith.addf %67, %68 : vector<8x128xf32>
    %c16 = arith.constant 16 : index
    %c0_26 = arith.constant 0 : index
    %70 = vector.load %arg0[%c16, %c0_26] : memref<48x128xf32, #tpu.memory_space<vmem>>, vector<8x128xf32>
    %71 = vector.shape_cast %70 : vector<8x128xf32> to vector<1x8x128xf32>
    %cst_27 = arith.constant dense<0.000000e+00> : vector<1xf32>
    %72 = vector.multi_reduction <add>, %71, %cst_27 [1, 2] : vector<1x8x128xf32> to vector<1xf32>
    %73 = vector.shape_cast %72 : vector<1xf32> to vector<1x1x1xf32>
    %74 = vector.extract %73[0, 0, 0] : f32 from vector<1x1x1xf32>
    %75 = vector.broadcast %74 : f32 to vector<1x1xf32>
    %cst_28 = arith.constant 3.125000e-02 : f32
    %76 = vector.broadcast %cst_28 : f32 to vector<1x1xf32>
    %77 = arith.mulf %75, %76 : vector<1x1xf32>
    %78 = arith.mulf %70, %70 : vector<8x128xf32>
    %79 = vector.shape_cast %78 : vector<8x128xf32> to vector<1x8x128xf32>
    %cst_29 = arith.constant dense<0.000000e+00> : vector<1xf32>
    %80 = vector.multi_reduction <add>, %79, %cst_29 [1, 2] : vector<1x8x128xf32> to vector<1xf32>
    %81 = vector.shape_cast %80 : vector<1xf32> to vector<1x1x1xf32>
    %82 = vector.extract %81[0, 0, 0] : f32 from vector<1x1x1xf32>
    %83 = vector.broadcast %82 : f32 to vector<1x1xf32>
    %cst_30 = arith.constant 3.125000e-02 : f32
    %84 = vector.broadcast %cst_30 : f32 to vector<1x1xf32>
    %85 = arith.mulf %83, %84 : vector<1x1xf32>
    %86 = arith.mulf %77, %77 : vector<1x1xf32>
    %87 = arith.subf %85, %86 : vector<1x1xf32>
    %c2 = arith.constant 2 : index
    %88 = memref.load %arg1[%c2] : memref<6xf32, #tpu.memory_space<smem>>
    %cst_31 = arith.constant 9.99999974E-6 : f32
    %89 = vector.broadcast %cst_31 : f32 to vector<1x1xf32>
    %90 = arith.addf %87, %89 : vector<1x1xf32>
    %91 = math.rsqrt %90 : vector<1x1xf32>
    %92 = vector.broadcast %88 : f32 to vector<1x1xf32>
    %93 = arith.mulf %92, %91 : vector<1x1xf32>
    %c2_32 = arith.constant 2 : index
    %94 = memref.load %arg2[%c2_32] : memref<6xf32, #tpu.memory_space<smem>>
    %95 = arith.mulf %93, %77 : vector<1x1xf32>
    %96 = vector.broadcast %94 : f32 to vector<1x1xf32>
    %97 = arith.subf %96, %95 : vector<1x1xf32>
    %98 = vector.broadcast %93 : vector<1x1xf32> to vector<8x128xf32>
    %99 = arith.mulf %70, %98 : vector<8x128xf32>
    %100 = vector.broadcast %97 : vector<1x1xf32> to vector<8x128xf32>
    %101 = arith.addf %99, %100 : vector<8x128xf32>
    %c24 = arith.constant 24 : index
    %c0_33 = arith.constant 0 : index
    %102 = vector.load %arg0[%c24, %c0_33] : memref<48x128xf32, #tpu.memory_space<vmem>>, vector<8x128xf32>
    %103 = vector.shape_cast %102 : vector<8x128xf32> to vector<1x8x128xf32>
    %cst_34 = arith.constant dense<0.000000e+00> : vector<1xf32>
    %104 = vector.multi_reduction <add>, %103, %cst_34 [1, 2] : vector<1x8x128xf32> to vector<1xf32>
    %105 = vector.shape_cast %104 : vector<1xf32> to vector<1x1x1xf32>
    %106 = vector.extract %105[0, 0, 0] : f32 from vector<1x1x1xf32>
    %107 = vector.broadcast %106 : f32 to vector<1x1xf32>
    %cst_35 = arith.constant 3.125000e-02 : f32
    %108 = vector.broadcast %cst_35 : f32 to vector<1x1xf32>
    %109 = arith.mulf %107, %108 : vector<1x1xf32>
    %110 = arith.mulf %102, %102 : vector<8x128xf32>
    %111 = vector.shape_cast %110 : vector<8x128xf32> to vector<1x8x128xf32>
    %cst_36 = arith.constant dense<0.000000e+00> : vector<1xf32>
    %112 = vector.multi_reduction <add>, %111, %cst_36 [1, 2] : vector<1x8x128xf32> to vector<1xf32>
    %113 = vector.shape_cast %112 : vector<1xf32> to vector<1x1x1xf32>
    %114 = vector.extract %113[0, 0, 0] : f32 from vector<1x1x1xf32>
    %115 = vector.broadcast %114 : f32 to vector<1x1xf32>
    %cst_37 = arith.constant 3.125000e-02 : f32
    %116 = vector.broadcast %cst_37 : f32 to vector<1x1xf32>
    %117 = arith.mulf %115, %116 : vector<1x1xf32>
    %118 = arith.mulf %109, %109 : vector<1x1xf32>
    %119 = arith.subf %117, %118 : vector<1x1xf32>
    %c3 = arith.constant 3 : index
    %120 = memref.load %arg1[%c3] : memref<6xf32, #tpu.memory_space<smem>>
    %cst_38 = arith.constant 9.99999974E-6 : f32
    %121 = vector.broadcast %cst_38 : f32 to vector<1x1xf32>
    %122 = arith.addf %119, %121 : vector<1x1xf32>
    %123 = math.rsqrt %122 : vector<1x1xf32>
    %124 = vector.broadcast %120 : f32 to vector<1x1xf32>
    %125 = arith.mulf %124, %123 : vector<1x1xf32>
    %c3_39 = arith.constant 3 : index
    %126 = memref.load %arg2[%c3_39] : memref<6xf32, #tpu.memory_space<smem>>
    %127 = arith.mulf %125, %109 : vector<1x1xf32>
    %128 = vector.broadcast %126 : f32 to vector<1x1xf32>
    %129 = arith.subf %128, %127 : vector<1x1xf32>
    %130 = vector.broadcast %125 : vector<1x1xf32> to vector<8x128xf32>
    %131 = arith.mulf %102, %130 : vector<8x128xf32>
    %132 = vector.broadcast %129 : vector<1x1xf32> to vector<8x128xf32>
    %133 = arith.addf %131, %132 : vector<8x128xf32>
    %c32 = arith.constant 32 : index
    %c0_40 = arith.constant 0 : index
    %134 = vector.load %arg0[%c32, %c0_40] : memref<48x128xf32, #tpu.memory_space<vmem>>, vector<8x128xf32>
    %135 = vector.shape_cast %134 : vector<8x128xf32> to vector<1x8x128xf32>
    %cst_41 = arith.constant dense<0.000000e+00> : vector<1xf32>
    %136 = vector.multi_reduction <add>, %135, %cst_41 [1, 2] : vector<1x8x128xf32> to vector<1xf32>
    %137 = vector.shape_cast %136 : vector<1xf32> to vector<1x1x1xf32>
    %138 = vector.extract %137[0, 0, 0] : f32 from vector<1x1x1xf32>
    %139 = vector.broadcast %138 : f32 to vector<1x1xf32>
    %cst_42 = arith.constant 3.125000e-02 : f32
    %140 = vector.broadcast %cst_42 : f32 to vector<1x1xf32>
    %141 = arith.mulf %139, %140 : vector<1x1xf32>
    %142 = arith.mulf %134, %134 : vector<8x128xf32>
    %143 = vector.shape_cast %142 : vector<8x128xf32> to vector<1x8x128xf32>
    %cst_43 = arith.constant dense<0.000000e+00> : vector<1xf32>
    %144 = vector.multi_reduction <add>, %143, %cst_43 [1, 2] : vector<1x8x128xf32> to vector<1xf32>
    %145 = vector.shape_cast %144 : vector<1xf32> to vector<1x1x1xf32>
    %146 = vector.extract %145[0, 0, 0] : f32 from vector<1x1x1xf32>
    %147 = vector.broadcast %146 : f32 to vector<1x1xf32>
    %cst_44 = arith.constant 3.125000e-02 : f32
    %148 = vector.broadcast %cst_44 : f32 to vector<1x1xf32>
    %149 = arith.mulf %147, %148 : vector<1x1xf32>
    %150 = arith.mulf %141, %141 : vector<1x1xf32>
    %151 = arith.subf %149, %150 : vector<1x1xf32>
    %c4 = arith.constant 4 : index
    %152 = memref.load %arg1[%c4] : memref<6xf32, #tpu.memory_space<smem>>
    %cst_45 = arith.constant 9.99999974E-6 : f32
    %153 = vector.broadcast %cst_45 : f32 to vector<1x1xf32>
    %154 = arith.addf %151, %153 : vector<1x1xf32>
    %155 = math.rsqrt %154 : vector<1x1xf32>
    %156 = vector.broadcast %152 : f32 to vector<1x1xf32>
    %157 = arith.mulf %156, %155 : vector<1x1xf32>
    %c4_46 = arith.constant 4 : index
    %158 = memref.load %arg2[%c4_46] : memref<6xf32, #tpu.memory_space<smem>>
    %159 = arith.mulf %157, %141 : vector<1x1xf32>
    %160 = vector.broadcast %158 : f32 to vector<1x1xf32>
    %161 = arith.subf %160, %159 : vector<1x1xf32>
    %162 = vector.broadcast %157 : vector<1x1xf32> to vector<8x128xf32>
    %163 = arith.mulf %134, %162 : vector<8x128xf32>
    %164 = vector.broadcast %161 : vector<1x1xf32> to vector<8x128xf32>
    %165 = arith.addf %163, %164 : vector<8x128xf32>
    %c40 = arith.constant 40 : index
    %c0_47 = arith.constant 0 : index
    %166 = vector.load %arg0[%c40, %c0_47] : memref<48x128xf32, #tpu.memory_space<vmem>>, vector<8x128xf32>
    %167 = vector.shape_cast %166 : vector<8x128xf32> to vector<1x8x128xf32>
    %cst_48 = arith.constant dense<0.000000e+00> : vector<1xf32>
    %168 = vector.multi_reduction <add>, %167, %cst_48 [1, 2] : vector<1x8x128xf32> to vector<1xf32>
    %169 = vector.shape_cast %168 : vector<1xf32> to vector<1x1x1xf32>
    %170 = vector.extract %169[0, 0, 0] : f32 from vector<1x1x1xf32>
    %171 = vector.broadcast %170 : f32 to vector<1x1xf32>
    %cst_49 = arith.constant 3.125000e-02 : f32
    %172 = vector.broadcast %cst_49 : f32 to vector<1x1xf32>
    %173 = arith.mulf %171, %172 : vector<1x1xf32>
    %174 = arith.mulf %166, %166 : vector<8x128xf32>
    %175 = vector.shape_cast %174 : vector<8x128xf32> to vector<1x8x128xf32>
    %cst_50 = arith.constant dense<0.000000e+00> : vector<1xf32>
    %176 = vector.multi_reduction <add>, %175, %cst_50 [1, 2] : vector<1x8x128xf32> to vector<1xf32>
    %177 = vector.shape_cast %176 : vector<1xf32> to vector<1x1x1xf32>
    %178 = vector.extract %177[0, 0, 0] : f32 from vector<1x1x1xf32>
    %179 = vector.broadcast %178 : f32 to vector<1x1xf32>
    %cst_51 = arith.constant 3.125000e-02 : f32
    %180 = vector.broadcast %cst_51 : f32 to vector<1x1xf32>
    %181 = arith.mulf %179, %180 : vector<1x1xf32>
    %182 = arith.mulf %173, %173 : vector<1x1xf32>
    %183 = arith.subf %181, %182 : vector<1x1xf32>
    %c5 = arith.constant 5 : index
    %184 = memref.load %arg1[%c5] : memref<6xf32, #tpu.memory_space<smem>>
    %cst_52 = arith.constant 9.99999974E-6 : f32
    %185 = vector.broadcast %cst_52 : f32 to vector<1x1xf32>
    %186 = arith.addf %183, %185 : vector<1x1xf32>
    %187 = math.rsqrt %186 : vector<1x1xf32>
    %188 = vector.broadcast %184 : f32 to vector<1x1xf32>
    %189 = arith.mulf %188, %187 : vector<1x1xf32>
    %c5_53 = arith.constant 5 : index
    %190 = memref.load %arg2[%c5_53] : memref<6xf32, #tpu.memory_space<smem>>
    %191 = arith.mulf %189, %173 : vector<1x1xf32>
    %192 = vector.broadcast %190 : f32 to vector<1x1xf32>
    %193 = arith.subf %192, %191 : vector<1x1xf32>
    %194 = vector.broadcast %189 : vector<1x1xf32> to vector<8x128xf32>
    %195 = arith.mulf %166, %194 : vector<8x128xf32>
    %196 = vector.broadcast %193 : vector<1x1xf32> to vector<8x128xf32>
    %197 = arith.addf %195, %196 : vector<8x128xf32>
    %198 = tpu.concatenate %37, %69, %101, %133, %165, %197 in 0 : vector<8x128xf32>, vector<8x128xf32>, vector<8x128xf32>, vector<8x128xf32>, vector<8x128xf32>, vector<8x128xf32> -> vector<48x128xf32>
    %cst_54 = arith.constant dense<0.000000e+00> : vector<48x512xf32>
    %199 = tpu.matmul %198, %0, %cst_54 {dimension_numbers = #tpu.dot_dimension_numbers<[1], [0], [0], [1], [0, 0, 1, 1], [], []>} : vector<48x128xf32>, vector<128x512xf32>, vector<48x512xf32> -> vector<48x512xf32>
    %200 = vector.broadcast %2 : vector<1x512xf32> to vector<48x512xf32>
    %201 = arith.addf %199, %200 : vector<48x512xf32>
    %cst_55 = arith.constant 0.000000e+00 : f32
    %202 = vector.broadcast %cst_55 : f32 to vector<8x128xf32>
    %203 = vector.extract_strided_slice %201 {offsets = [0, 0], sizes = [8, 512], strides = [1, 1]} : vector<48x512xf32> to vector<8x512xf32>
    %cst_56 = arith.constant dense<0.000000e+00> : vector<8x512xf32>
    %204 = tpu.matmul %202, %1, %cst_56 {dimension_numbers = #tpu.dot_dimension_numbers<[1], [0], [0], [1], [0, 0, 1, 1], [], []>} : vector<8x128xf32>, vector<128x512xf32>, vector<8x512xf32> -> vector<8x512xf32>
    %205 = arith.addf %203, %204 : vector<8x512xf32>
    %206 = vector.extract_strided_slice %205 {offsets = [0, 0], sizes = [8, 128], strides = [1, 1]} : vector<8x512xf32> to vector<8x128xf32>
    %cst_57 = arith.constant 5.000000e-01 : f32
    %207 = vector.broadcast %cst_57 : f32 to vector<8x128xf32>
    %208 = arith.mulf %207, %206 : vector<8x128xf32>
    %209 = math.tanh %208 : vector<8x128xf32>
    %cst_58 = arith.constant 5.000000e-01 : f32
    %210 = vector.broadcast %cst_58 : f32 to vector<8x128xf32>
    %211 = arith.mulf %210, %209 : vector<8x128xf32>
    %cst_59 = arith.constant 5.000000e-01 : f32
    %212 = vector.broadcast %cst_59 : f32 to vector<8x128xf32>
    %213 = arith.addf %211, %212 : vector<8x128xf32>
    %214 = vector.extract_strided_slice %205 {offsets = [0, 128], sizes = [8, 128], strides = [1, 1]} : vector<8x512xf32> to vector<8x128xf32>
    %cst_60 = arith.constant 5.000000e-01 : f32
    %215 = vector.broadcast %cst_60 : f32 to vector<8x128xf32>
    %216 = arith.mulf %215, %214 : vector<8x128xf32>
    %217 = math.tanh %216 : vector<8x128xf32>
    %cst_61 = arith.constant 5.000000e-01 : f32
    %218 = vector.broadcast %cst_61 : f32 to vector<8x128xf32>
    %219 = arith.mulf %218, %217 : vector<8x128xf32>
    %cst_62 = arith.constant 5.000000e-01 : f32
    %220 = vector.broadcast %cst_62 : f32 to vector<8x128xf32>
    %221 = arith.addf %219, %220 : vector<8x128xf32>
    %222 = vector.extract_strided_slice %205 {offsets = [0, 256], sizes = [8, 128], strides = [1, 1]} : vector<8x512xf32> to vector<8x128xf32>
    %223 = math.tanh %222 : vector<8x128xf32>
    %224 = vector.extract_strided_slice %205 {offsets = [0, 384], sizes = [8, 128], strides = [1, 1]} : vector<8x512xf32> to vector<8x128xf32>
    %cst_63 = arith.constant 5.000000e-01 : f32
    %225 = vector.broadcast %cst_63 : f32 to vector<8x128xf32>
    %226 = arith.mulf %225, %224 : vector<8x128xf32>
    %227 = math.tanh %226 : vector<8x128xf32>
    %cst_64 = arith.constant 5.000000e-01 : f32
    %228 = vector.broadcast %cst_64 : f32 to vector<8x128xf32>
    %229 = arith.mulf %228, %227 : vector<8x128xf32>
    %cst_65 = arith.constant 5.000000e-01 : f32
    %230 = vector.broadcast %cst_65 : f32 to vector<8x128xf32>
    %231 = arith.addf %229, %230 : vector<8x128xf32>
    %232 = arith.mulf %221, %202 : vector<8x128xf32>
    %233 = arith.mulf %213, %223 : vector<8x128xf32>
    %234 = arith.addf %232, %233 : vector<8x128xf32>
    %235 = math.tanh %234 : vector<8x128xf32>
    %236 = arith.mulf %231, %235 : vector<8x128xf32>
    %237 = vector.extract_strided_slice %201 {offsets = [8, 0], sizes = [8, 512], strides = [1, 1]} : vector<48x512xf32> to vector<8x512xf32>
    %cst_66 = arith.constant dense<0.000000e+00> : vector<8x512xf32>
    %238 = tpu.matmul %236, %1, %cst_66 {dimension_numbers = #tpu.dot_dimension_numbers<[1], [0], [0], [1], [0, 0, 1, 1], [], []>} : vector<8x128xf32>, vector<128x512xf32>, vector<8x512xf32> -> vector<8x512xf32>
    %239 = arith.addf %237, %238 : vector<8x512xf32>
    %240 = vector.extract_strided_slice %239 {offsets = [0, 0], sizes = [8, 128], strides = [1, 1]} : vector<8x512xf32> to vector<8x128xf32>
    %cst_67 = arith.constant 5.000000e-01 : f32
    %241 = vector.broadcast %cst_67 : f32 to vector<8x128xf32>
    %242 = arith.mulf %241, %240 : vector<8x128xf32>
    %243 = math.tanh %242 : vector<8x128xf32>
    %cst_68 = arith.constant 5.000000e-01 : f32
    %244 = vector.broadcast %cst_68 : f32 to vector<8x128xf32>
    %245 = arith.mulf %244, %243 : vector<8x128xf32>
    %cst_69 = arith.constant 5.000000e-01 : f32
    %246 = vector.broadcast %cst_69 : f32 to vector<8x128xf32>
    %247 = arith.addf %245, %246 : vector<8x128xf32>
    %248 = vector.extract_strided_slice %239 {offsets = [0, 128], sizes = [8, 128], strides = [1, 1]} : vector<8x512xf32> to vector<8x128xf32>
    %cst_70 = arith.constant 5.000000e-01 : f32
    %249 = vector.broadcast %cst_70 : f32 to vector<8x128xf32>
    %250 = arith.mulf %249, %248 : vector<8x128xf32>
    %251 = math.tanh %250 : vector<8x128xf32>
    %cst_71 = arith.constant 5.000000e-01 : f32
    %252 = vector.broadcast %cst_71 : f32 to vector<8x128xf32>
    %253 = arith.mulf %252, %251 : vector<8x128xf32>
    %cst_72 = arith.constant 5.000000e-01 : f32
    %254 = vector.broadcast %cst_72 : f32 to vector<8x128xf32>
    %255 = arith.addf %253, %254 : vector<8x128xf32>
    %256 = vector.extract_strided_slice %239 {offsets = [0, 256], sizes = [8, 128], strides = [1, 1]} : vector<8x512xf32> to vector<8x128xf32>
    %257 = math.tanh %256 : vector<8x128xf32>
    %258 = vector.extract_strided_slice %239 {offsets = [0, 384], sizes = [8, 128], strides = [1, 1]} : vector<8x512xf32> to vector<8x128xf32>
    %cst_73 = arith.constant 5.000000e-01 : f32
    %259 = vector.broadcast %cst_73 : f32 to vector<8x128xf32>
    %260 = arith.mulf %259, %258 : vector<8x128xf32>
    %261 = math.tanh %260 : vector<8x128xf32>
    %cst_74 = arith.constant 5.000000e-01 : f32
    %262 = vector.broadcast %cst_74 : f32 to vector<8x128xf32>
    %263 = arith.mulf %262, %261 : vector<8x128xf32>
    %cst_75 = arith.constant 5.000000e-01 : f32
    %264 = vector.broadcast %cst_75 : f32 to vector<8x128xf32>
    %265 = arith.addf %263, %264 : vector<8x128xf32>
    %266 = arith.mulf %255, %234 : vector<8x128xf32>
    %267 = arith.mulf %247, %257 : vector<8x128xf32>
    %268 = arith.addf %266, %267 : vector<8x128xf32>
    %269 = math.tanh %268 : vector<8x128xf32>
    %270 = arith.mulf %265, %269 : vector<8x128xf32>
    %cst_76 = arith.constant dense<0.000000e+00> : vector<8x512xf32>
    %271 = tpu.matmul %236, %3, %cst_76 {dimension_numbers = #tpu.dot_dimension_numbers<[1], [0], [0], [1], [0, 0, 1, 1], [], []>} : vector<8x128xf32>, vector<128x512xf32>, vector<8x512xf32> -> vector<8x512xf32>
    %272 = vector.broadcast %5 : vector<1x512xf32> to vector<8x512xf32>
    %273 = arith.addf %271, %272 : vector<8x512xf32>
    %cst_77 = arith.constant dense<0.000000e+00> : vector<8x512xf32>
    %274 = tpu.matmul %202, %4, %cst_77 {dimension_numbers = #tpu.dot_dimension_numbers<[1], [0], [0], [1], [0, 0, 1, 1], [], []>} : vector<8x128xf32>, vector<128x512xf32>, vector<8x512xf32> -> vector<8x512xf32>
    %275 = arith.addf %273, %274 : vector<8x512xf32>
    %276 = vector.extract_strided_slice %275 {offsets = [0, 0], sizes = [8, 128], strides = [1, 1]} : vector<8x512xf32> to vector<8x128xf32>
    %cst_78 = arith.constant 5.000000e-01 : f32
    %277 = vector.broadcast %cst_78 : f32 to vector<8x128xf32>
    %278 = arith.mulf %277, %276 : vector<8x128xf32>
    %279 = math.tanh %278 : vector<8x128xf32>
    %cst_79 = arith.constant 5.000000e-01 : f32
    %280 = vector.broadcast %cst_79 : f32 to vector<8x128xf32>
    %281 = arith.mulf %280, %279 : vector<8x128xf32>
    %cst_80 = arith.constant 5.000000e-01 : f32
    %282 = vector.broadcast %cst_80 : f32 to vector<8x128xf32>
    %283 = arith.addf %281, %282 : vector<8x128xf32>
    %284 = vector.extract_strided_slice %275 {offsets = [0, 128], sizes = [8, 128], strides = [1, 1]} : vector<8x512xf32> to vector<8x128xf32>
    %cst_81 = arith.constant 5.000000e-01 : f32
    %285 = vector.broadcast %cst_81 : f32 to vector<8x128xf32>
    %286 = arith.mulf %285, %284 : vector<8x128xf32>
    %287 = math.tanh %286 : vector<8x128xf32>
    %cst_82 = arith.constant 5.000000e-01 : f32
    %288 = vector.broadcast %cst_82 : f32 to vector<8x128xf32>
    %289 = arith.mulf %288, %287 : vector<8x128xf32>
    %cst_83 = arith.constant 5.000000e-01 : f32
    %290 = vector.broadcast %cst_83 : f32 to vector<8x128xf32>
    %291 = arith.addf %289, %290 : vector<8x128xf32>
    %292 = vector.extract_strided_slice %275 {offsets = [0, 256], sizes = [8, 128], strides = [1, 1]} : vector<8x512xf32> to vector<8x128xf32>
    %293 = math.tanh %292 : vector<8x128xf32>
    %294 = vector.extract_strided_slice %275 {offsets = [0, 384], sizes = [8, 128], strides = [1, 1]} : vector<8x512xf32> to vector<8x128xf32>
    %cst_84 = arith.constant 5.000000e-01 : f32
    %295 = vector.broadcast %cst_84 : f32 to vector<8x128xf32>
    %296 = arith.mulf %295, %294 : vector<8x128xf32>
    %297 = math.tanh %296 : vector<8x128xf32>
    %cst_85 = arith.constant 5.000000e-01 : f32
    %298 = vector.broadcast %cst_85 : f32 to vector<8x128xf32>
    %299 = arith.mulf %298, %297 : vector<8x128xf32>
    %cst_86 = arith.constant 5.000000e-01 : f32
    %300 = vector.broadcast %cst_86 : f32 to vector<8x128xf32>
    %301 = arith.addf %299, %300 : vector<8x128xf32>
    %302 = arith.mulf %291, %202 : vector<8x128xf32>
    %303 = arith.mulf %283, %293 : vector<8x128xf32>
    %304 = arith.addf %302, %303 : vector<8x128xf32>
    %305 = math.tanh %304 : vector<8x128xf32>
    %306 = arith.mulf %301, %305 : vector<8x128xf32>
    %307 = vector.extract_strided_slice %201 {offsets = [16, 0], sizes = [8, 512], strides = [1, 1]} : vector<48x512xf32> to vector<8x512xf32>
    %cst_87 = arith.constant dense<0.000000e+00> : vector<8x512xf32>
    %308 = tpu.matmul %270, %1, %cst_87 {dimension_numbers = #tpu.dot_dimension_numbers<[1], [0], [0], [1], [0, 0, 1, 1], [], []>} : vector<8x128xf32>, vector<128x512xf32>, vector<8x512xf32> -> vector<8x512xf32>
    %309 = arith.addf %307, %308 : vector<8x512xf32>
    %310 = vector.extract_strided_slice %309 {offsets = [0, 0], sizes = [8, 128], strides = [1, 1]} : vector<8x512xf32> to vector<8x128xf32>
    %cst_88 = arith.constant 5.000000e-01 : f32
    %311 = vector.broadcast %cst_88 : f32 to vector<8x128xf32>
    %312 = arith.mulf %311, %310 : vector<8x128xf32>
    %313 = math.tanh %312 : vector<8x128xf32>
    %cst_89 = arith.constant 5.000000e-01 : f32
    %314 = vector.broadcast %cst_89 : f32 to vector<8x128xf32>
    %315 = arith.mulf %314, %313 : vector<8x128xf32>
    %cst_90 = arith.constant 5.000000e-01 : f32
    %316 = vector.broadcast %cst_90 : f32 to vector<8x128xf32>
    %317 = arith.addf %315, %316 : vector<8x128xf32>
    %318 = vector.extract_strided_slice %309 {offsets = [0, 128], sizes = [8, 128], strides = [1, 1]} : vector<8x512xf32> to vector<8x128xf32>
    %cst_91 = arith.constant 5.000000e-01 : f32
    %319 = vector.broadcast %cst_91 : f32 to vector<8x128xf32>
    %320 = arith.mulf %319, %318 : vector<8x128xf32>
    %321 = math.tanh %320 : vector<8x128xf32>
    %cst_92 = arith.constant 5.000000e-01 : f32
    %322 = vector.broadcast %cst_92 : f32 to vector<8x128xf32>
    %323 = arith.mulf %322, %321 : vector<8x128xf32>
    %cst_93 = arith.constant 5.000000e-01 : f32
    %324 = vector.broadcast %cst_93 : f32 to vector<8x128xf32>
    %325 = arith.addf %323, %324 : vector<8x128xf32>
    %326 = vector.extract_strided_slice %309 {offsets = [0, 256], sizes = [8, 128], strides = [1, 1]} : vector<8x512xf32> to vector<8x128xf32>
    %327 = math.tanh %326 : vector<8x128xf32>
    %328 = vector.extract_strided_slice %309 {offsets = [0, 384], sizes = [8, 128], strides = [1, 1]} : vector<8x512xf32> to vector<8x128xf32>
    %cst_94 = arith.constant 5.000000e-01 : f32
    %329 = vector.broadcast %cst_94 : f32 to vector<8x128xf32>
    %330 = arith.mulf %329, %328 : vector<8x128xf32>
    %331 = math.tanh %330 : vector<8x128xf32>
    %cst_95 = arith.constant 5.000000e-01 : f32
    %332 = vector.broadcast %cst_95 : f32 to vector<8x128xf32>
    %333 = arith.mulf %332, %331 : vector<8x128xf32>
    %cst_96 = arith.constant 5.000000e-01 : f32
    %334 = vector.broadcast %cst_96 : f32 to vector<8x128xf32>
    %335 = arith.addf %333, %334 : vector<8x128xf32>
    %336 = arith.mulf %325, %268 : vector<8x128xf32>
    %337 = arith.mulf %317, %327 : vector<8x128xf32>
    %338 = arith.addf %336, %337 : vector<8x128xf32>
    %339 = math.tanh %338 : vector<8x128xf32>
    %340 = arith.mulf %335, %339 : vector<8x128xf32>
    %cst_97 = arith.constant dense<0.000000e+00> : vector<8x512xf32>
    %341 = tpu.matmul %270, %3, %cst_97 {dimension_numbers = #tpu.dot_dimension_numbers<[1], [0], [0], [1], [0, 0, 1, 1], [], []>} : vector<8x128xf32>, vector<128x512xf32>, vector<8x512xf32> -> vector<8x512xf32>
    %342 = vector.broadcast %5 : vector<1x512xf32> to vector<8x512xf32>
    %343 = arith.addf %341, %342 : vector<8x512xf32>
    %cst_98 = arith.constant dense<0.000000e+00> : vector<8x512xf32>
    %344 = tpu.matmul %306, %4, %cst_98 {dimension_numbers = #tpu.dot_dimension_numbers<[1], [0], [0], [1], [0, 0, 1, 1], [], []>} : vector<8x128xf32>, vector<128x512xf32>, vector<8x512xf32> -> vector<8x512xf32>
    %345 = arith.addf %343, %344 : vector<8x512xf32>
    %346 = vector.extract_strided_slice %345 {offsets = [0, 0], sizes = [8, 128], strides = [1, 1]} : vector<8x512xf32> to vector<8x128xf32>
    %cst_99 = arith.constant 5.000000e-01 : f32
    %347 = vector.broadcast %cst_99 : f32 to vector<8x128xf32>
    %348 = arith.mulf %347, %346 : vector<8x128xf32>
    %349 = math.tanh %348 : vector<8x128xf32>
    %cst_100 = arith.constant 5.000000e-01 : f32
    %350 = vector.broadcast %cst_100 : f32 to vector<8x128xf32>
    %351 = arith.mulf %350, %349 : vector<8x128xf32>
    %cst_101 = arith.constant 5.000000e-01 : f32
    %352 = vector.broadcast %cst_101 : f32 to vector<8x128xf32>
    %353 = arith.addf %351, %352 : vector<8x128xf32>
    %354 = vector.extract_strided_slice %345 {offsets = [0, 128], sizes = [8, 128], strides = [1, 1]} : vector<8x512xf32> to vector<8x128xf32>
    %cst_102 = arith.constant 5.000000e-01 : f32
    %355 = vector.broadcast %cst_102 : f32 to vector<8x128xf32>
    %356 = arith.mulf %355, %354 : vector<8x128xf32>
    %357 = math.tanh %356 : vector<8x128xf32>
    %cst_103 = arith.constant 5.000000e-01 : f32
    %358 = vector.broadcast %cst_103 : f32 to vector<8x128xf32>
    %359 = arith.mulf %358, %357 : vector<8x128xf32>
    %cst_104 = arith.constant 5.000000e-01 : f32
    %360 = vector.broadcast %cst_104 : f32 to vector<8x128xf32>
    %361 = arith.addf %359, %360 : vector<8x128xf32>
    %362 = vector.extract_strided_slice %345 {offsets = [0, 256], sizes = [8, 128], strides = [1, 1]} : vector<8x512xf32> to vector<8x128xf32>
    %363 = math.tanh %362 : vector<8x128xf32>
    %364 = vector.extract_strided_slice %345 {offsets = [0, 384], sizes = [8, 128], strides = [1, 1]} : vector<8x512xf32> to vector<8x128xf32>
    %cst_105 = arith.constant 5.000000e-01 : f32
    %365 = vector.broadcast %cst_105 : f32 to vector<8x128xf32>
    %366 = arith.mulf %365, %364 : vector<8x128xf32>
    %367 = math.tanh %366 : vector<8x128xf32>
    %cst_106 = arith.constant 5.000000e-01 : f32
    %368 = vector.broadcast %cst_106 : f32 to vector<8x128xf32>
    %369 = arith.mulf %368, %367 : vector<8x128xf32>
    %cst_107 = arith.constant 5.000000e-01 : f32
    %370 = vector.broadcast %cst_107 : f32 to vector<8x128xf32>
    %371 = arith.addf %369, %370 : vector<8x128xf32>
    %372 = arith.mulf %361, %304 : vector<8x128xf32>
    %373 = arith.mulf %353, %363 : vector<8x128xf32>
    %374 = arith.addf %372, %373 : vector<8x128xf32>
    %375 = math.tanh %374 : vector<8x128xf32>
    %376 = arith.mulf %371, %375 : vector<8x128xf32>
    %377 = vector.extract_strided_slice %201 {offsets = [24, 0], sizes = [8, 512], strides = [1, 1]} : vector<48x512xf32> to vector<8x512xf32>
    %cst_108 = arith.constant dense<0.000000e+00> : vector<8x512xf32>
    %378 = tpu.matmul %340, %1, %cst_108 {dimension_numbers = #tpu.dot_dimension_numbers<[1], [0], [0], [1], [0, 0, 1, 1], [], []>} : vector<8x128xf32>, vector<128x512xf32>, vector<8x512xf32> -> vector<8x512xf32>
    %379 = arith.addf %377, %378 : vector<8x512xf32>
    %380 = vector.extract_strided_slice %379 {offsets = [0, 0], sizes = [8, 128], strides = [1, 1]} : vector<8x512xf32> to vector<8x128xf32>
    %cst_109 = arith.constant 5.000000e-01 : f32
    %381 = vector.broadcast %cst_109 : f32 to vector<8x128xf32>
    %382 = arith.mulf %381, %380 : vector<8x128xf32>
    %383 = math.tanh %382 : vector<8x128xf32>
    %cst_110 = arith.constant 5.000000e-01 : f32
    %384 = vector.broadcast %cst_110 : f32 to vector<8x128xf32>
    %385 = arith.mulf %384, %383 : vector<8x128xf32>
    %cst_111 = arith.constant 5.000000e-01 : f32
    %386 = vector.broadcast %cst_111 : f32 to vector<8x128xf32>
    %387 = arith.addf %385, %386 : vector<8x128xf32>
    %388 = vector.extract_strided_slice %379 {offsets = [0, 128], sizes = [8, 128], strides = [1, 1]} : vector<8x512xf32> to vector<8x128xf32>
    %cst_112 = arith.constant 5.000000e-01 : f32
    %389 = vector.broadcast %cst_112 : f32 to vector<8x128xf32>
    %390 = arith.mulf %389, %388 : vector<8x128xf32>
    %391 = math.tanh %390 : vector<8x128xf32>
    %cst_113 = arith.constant 5.000000e-01 : f32
    %392 = vector.broadcast %cst_113 : f32 to vector<8x128xf32>
    %393 = arith.mulf %392, %391 : vector<8x128xf32>
    %cst_114 = arith.constant 5.000000e-01 : f32
    %394 = vector.broadcast %cst_114 : f32 to vector<8x128xf32>
    %395 = arith.addf %393, %394 : vector<8x128xf32>
    %396 = vector.extract_strided_slice %379 {offsets = [0, 256], sizes = [8, 128], strides = [1, 1]} : vector<8x512xf32> to vector<8x128xf32>
    %397 = math.tanh %396 : vector<8x128xf32>
    %398 = vector.extract_strided_slice %379 {offsets = [0, 384], sizes = [8, 128], strides = [1, 1]} : vector<8x512xf32> to vector<8x128xf32>
    %cst_115 = arith.constant 5.000000e-01 : f32
    %399 = vector.broadcast %cst_115 : f32 to vector<8x128xf32>
    %400 = arith.mulf %399, %398 : vector<8x128xf32>
    %401 = math.tanh %400 : vector<8x128xf32>
    %cst_116 = arith.constant 5.000000e-01 : f32
    %402 = vector.broadcast %cst_116 : f32 to vector<8x128xf32>
    %403 = arith.mulf %402, %401 : vector<8x128xf32>
    %cst_117 = arith.constant 5.000000e-01 : f32
    %404 = vector.broadcast %cst_117 : f32 to vector<8x128xf32>
    %405 = arith.addf %403, %404 : vector<8x128xf32>
    %406 = arith.mulf %395, %338 : vector<8x128xf32>
    %407 = arith.mulf %387, %397 : vector<8x128xf32>
    %408 = arith.addf %406, %407 : vector<8x128xf32>
    %409 = math.tanh %408 : vector<8x128xf32>
    %410 = arith.mulf %405, %409 : vector<8x128xf32>
    %cst_118 = arith.constant dense<0.000000e+00> : vector<8x512xf32>
    %411 = tpu.matmul %340, %3, %cst_118 {dimension_numbers = #tpu.dot_dimension_numbers<[1], [0], [0], [1], [0, 0, 1, 1], [], []>} : vector<8x128xf32>, vector<128x512xf32>, vector<8x512xf32> -> vector<8x512xf32>
    %412 = vector.broadcast %5 : vector<1x512xf32> to vector<8x512xf32>
    %413 = arith.addf %411, %412 : vector<8x512xf32>
    %cst_119 = arith.constant dense<0.000000e+00> : vector<8x512xf32>
    %414 = tpu.matmul %376, %4, %cst_119 {dimension_numbers = #tpu.dot_dimension_numbers<[1], [0], [0], [1], [0, 0, 1, 1], [], []>} : vector<8x128xf32>, vector<128x512xf32>, vector<8x512xf32> -> vector<8x512xf32>
    %415 = arith.addf %413, %414 : vector<8x512xf32>
    %416 = vector.extract_strided_slice %415 {offsets = [0, 0], sizes = [8, 128], strides = [1, 1]} : vector<8x512xf32> to vector<8x128xf32>
    %cst_120 = arith.constant 5.000000e-01 : f32
    %417 = vector.broadcast %cst_120 : f32 to vector<8x128xf32>
    %418 = arith.mulf %417, %416 : vector<8x128xf32>
    %419 = math.tanh %418 : vector<8x128xf32>
    %cst_121 = arith.constant 5.000000e-01 : f32
    %420 = vector.broadcast %cst_121 : f32 to vector<8x128xf32>
    %421 = arith.mulf %420, %419 : vector<8x128xf32>
    %cst_122 = arith.constant 5.000000e-01 : f32
    %422 = vector.broadcast %cst_122 : f32 to vector<8x128xf32>
    %423 = arith.addf %421, %422 : vector<8x128xf32>
    %424 = vector.extract_strided_slice %415 {offsets = [0, 128], sizes = [8, 128], strides = [1, 1]} : vector<8x512xf32> to vector<8x128xf32>
    %cst_123 = arith.constant 5.000000e-01 : f32
    %425 = vector.broadcast %cst_123 : f32 to vector<8x128xf32>
    %426 = arith.mulf %425, %424 : vector<8x128xf32>
    %427 = math.tanh %426 : vector<8x128xf32>
    %cst_124 = arith.constant 5.000000e-01 : f32
    %428 = vector.broadcast %cst_124 : f32 to vector<8x128xf32>
    %429 = arith.mulf %428, %427 : vector<8x128xf32>
    %cst_125 = arith.constant 5.000000e-01 : f32
    %430 = vector.broadcast %cst_125 : f32 to vector<8x128xf32>
    %431 = arith.addf %429, %430 : vector<8x128xf32>
    %432 = vector.extract_strided_slice %415 {offsets = [0, 256], sizes = [8, 128], strides = [1, 1]} : vector<8x512xf32> to vector<8x128xf32>
    %433 = math.tanh %432 : vector<8x128xf32>
    %434 = vector.extract_strided_slice %415 {offsets = [0, 384], sizes = [8, 128], strides = [1, 1]} : vector<8x512xf32> to vector<8x128xf32>
    %cst_126 = arith.constant 5.000000e-01 : f32
    %435 = vector.broadcast %cst_126 : f32 to vector<8x128xf32>
    %436 = arith.mulf %435, %434 : vector<8x128xf32>
    %437 = math.tanh %436 : vector<8x128xf32>
    %cst_127 = arith.constant 5.000000e-01 : f32
    %438 = vector.broadcast %cst_127 : f32 to vector<8x128xf32>
    %439 = arith.mulf %438, %437 : vector<8x128xf32>
    %cst_128 = arith.constant 5.000000e-01 : f32
    %440 = vector.broadcast %cst_128 : f32 to vector<8x128xf32>
    %441 = arith.addf %439, %440 : vector<8x128xf32>
    %442 = arith.mulf %431, %374 : vector<8x128xf32>
    %443 = arith.mulf %423, %433 : vector<8x128xf32>
    %444 = arith.addf %442, %443 : vector<8x128xf32>
    %445 = math.tanh %444 : vector<8x128xf32>
    %446 = arith.mulf %441, %445 : vector<8x128xf32>
    %447 = vector.extract_strided_slice %201 {offsets = [32, 0], sizes = [8, 512], strides = [1, 1]} : vector<48x512xf32> to vector<8x512xf32>
    %cst_129 = arith.constant dense<0.000000e+00> : vector<8x512xf32>
    %448 = tpu.matmul %410, %1, %cst_129 {dimension_numbers = #tpu.dot_dimension_numbers<[1], [0], [0], [1], [0, 0, 1, 1], [], []>} : vector<8x128xf32>, vector<128x512xf32>, vector<8x512xf32> -> vector<8x512xf32>
    %449 = arith.addf %447, %448 : vector<8x512xf32>
    %450 = vector.extract_strided_slice %449 {offsets = [0, 0], sizes = [8, 128], strides = [1, 1]} : vector<8x512xf32> to vector<8x128xf32>
    %cst_130 = arith.constant 5.000000e-01 : f32
    %451 = vector.broadcast %cst_130 : f32 to vector<8x128xf32>
    %452 = arith.mulf %451, %450 : vector<8x128xf32>
    %453 = math.tanh %452 : vector<8x128xf32>
    %cst_131 = arith.constant 5.000000e-01 : f32
    %454 = vector.broadcast %cst_131 : f32 to vector<8x128xf32>
    %455 = arith.mulf %454, %453 : vector<8x128xf32>
    %cst_132 = arith.constant 5.000000e-01 : f32
    %456 = vector.broadcast %cst_132 : f32 to vector<8x128xf32>
    %457 = arith.addf %455, %456 : vector<8x128xf32>
    %458 = vector.extract_strided_slice %449 {offsets = [0, 128], sizes = [8, 128], strides = [1, 1]} : vector<8x512xf32> to vector<8x128xf32>
    %cst_133 = arith.constant 5.000000e-01 : f32
    %459 = vector.broadcast %cst_133 : f32 to vector<8x128xf32>
    %460 = arith.mulf %459, %458 : vector<8x128xf32>
    %461 = math.tanh %460 : vector<8x128xf32>
    %cst_134 = arith.constant 5.000000e-01 : f32
    %462 = vector.broadcast %cst_134 : f32 to vector<8x128xf32>
    %463 = arith.mulf %462, %461 : vector<8x128xf32>
    %cst_135 = arith.constant 5.000000e-01 : f32
    %464 = vector.broadcast %cst_135 : f32 to vector<8x128xf32>
    %465 = arith.addf %463, %464 : vector<8x128xf32>
    %466 = vector.extract_strided_slice %449 {offsets = [0, 256], sizes = [8, 128], strides = [1, 1]} : vector<8x512xf32> to vector<8x128xf32>
    %467 = math.tanh %466 : vector<8x128xf32>
    %468 = vector.extract_strided_slice %449 {offsets = [0, 384], sizes = [8, 128], strides = [1, 1]} : vector<8x512xf32> to vector<8x128xf32>
    %cst_136 = arith.constant 5.000000e-01 : f32
    %469 = vector.broadcast %cst_136 : f32 to vector<8x128xf32>
    %470 = arith.mulf %469, %468 : vector<8x128xf32>
    %471 = math.tanh %470 : vector<8x128xf32>
    %cst_137 = arith.constant 5.000000e-01 : f32
    %472 = vector.broadcast %cst_137 : f32 to vector<8x128xf32>
    %473 = arith.mulf %472, %471 : vector<8x128xf32>
    %cst_138 = arith.constant 5.000000e-01 : f32
    %474 = vector.broadcast %cst_138 : f32 to vector<8x128xf32>
    %475 = arith.addf %473, %474 : vector<8x128xf32>
    %476 = arith.mulf %465, %408 : vector<8x128xf32>
    %477 = arith.mulf %457, %467 : vector<8x128xf32>
    %478 = arith.addf %476, %477 : vector<8x128xf32>
    %479 = math.tanh %478 : vector<8x128xf32>
    %480 = arith.mulf %475, %479 : vector<8x128xf32>
    %cst_139 = arith.constant dense<0.000000e+00> : vector<8x512xf32>
    %481 = tpu.matmul %410, %3, %cst_139 {dimension_numbers = #tpu.dot_dimension_numbers<[1], [0], [0], [1], [0, 0, 1, 1], [], []>} : vector<8x128xf32>, vector<128x512xf32>, vector<8x512xf32> -> vector<8x512xf32>
    %482 = vector.broadcast %5 : vector<1x512xf32> to vector<8x512xf32>
    %483 = arith.addf %481, %482 : vector<8x512xf32>
    %cst_140 = arith.constant dense<0.000000e+00> : vector<8x512xf32>
    %484 = tpu.matmul %446, %4, %cst_140 {dimension_numbers = #tpu.dot_dimension_numbers<[1], [0], [0], [1], [0, 0, 1, 1], [], []>} : vector<8x128xf32>, vector<128x512xf32>, vector<8x512xf32> -> vector<8x512xf32>
    %485 = arith.addf %483, %484 : vector<8x512xf32>
    %486 = vector.extract_strided_slice %485 {offsets = [0, 0], sizes = [8, 128], strides = [1, 1]} : vector<8x512xf32> to vector<8x128xf32>
    %cst_141 = arith.constant 5.000000e-01 : f32
    %487 = vector.broadcast %cst_141 : f32 to vector<8x128xf32>
    %488 = arith.mulf %487, %486 : vector<8x128xf32>
    %489 = math.tanh %488 : vector<8x128xf32>
    %cst_142 = arith.constant 5.000000e-01 : f32
    %490 = vector.broadcast %cst_142 : f32 to vector<8x128xf32>
    %491 = arith.mulf %490, %489 : vector<8x128xf32>
    %cst_143 = arith.constant 5.000000e-01 : f32
    %492 = vector.broadcast %cst_143 : f32 to vector<8x128xf32>
    %493 = arith.addf %491, %492 : vector<8x128xf32>
    %494 = vector.extract_strided_slice %485 {offsets = [0, 128], sizes = [8, 128], strides = [1, 1]} : vector<8x512xf32> to vector<8x128xf32>
    %cst_144 = arith.constant 5.000000e-01 : f32
    %495 = vector.broadcast %cst_144 : f32 to vector<8x128xf32>
    %496 = arith.mulf %495, %494 : vector<8x128xf32>
    %497 = math.tanh %496 : vector<8x128xf32>
    %cst_145 = arith.constant 5.000000e-01 : f32
    %498 = vector.broadcast %cst_145 : f32 to vector<8x128xf32>
    %499 = arith.mulf %498, %497 : vector<8x128xf32>
    %cst_146 = arith.constant 5.000000e-01 : f32
    %500 = vector.broadcast %cst_146 : f32 to vector<8x128xf32>
    %501 = arith.addf %499, %500 : vector<8x128xf32>
    %502 = vector.extract_strided_slice %485 {offsets = [0, 256], sizes = [8, 128], strides = [1, 1]} : vector<8x512xf32> to vector<8x128xf32>
    %503 = math.tanh %502 : vector<8x128xf32>
    %504 = vector.extract_strided_slice %485 {offsets = [0, 384], sizes = [8, 128], strides = [1, 1]} : vector<8x512xf32> to vector<8x128xf32>
    %cst_147 = arith.constant 5.000000e-01 : f32
    %505 = vector.broadcast %cst_147 : f32 to vector<8x128xf32>
    %506 = arith.mulf %505, %504 : vector<8x128xf32>
    %507 = math.tanh %506 : vector<8x128xf32>
    %cst_148 = arith.constant 5.000000e-01 : f32
    %508 = vector.broadcast %cst_148 : f32 to vector<8x128xf32>
    %509 = arith.mulf %508, %507 : vector<8x128xf32>
    %cst_149 = arith.constant 5.000000e-01 : f32
    %510 = vector.broadcast %cst_149 : f32 to vector<8x128xf32>
    %511 = arith.addf %509, %510 : vector<8x128xf32>
    %512 = arith.mulf %501, %444 : vector<8x128xf32>
    %513 = arith.mulf %493, %503 : vector<8x128xf32>
    %514 = arith.addf %512, %513 : vector<8x128xf32>
    %515 = math.tanh %514 : vector<8x128xf32>
    %516 = arith.mulf %511, %515 : vector<8x128xf32>
    %517 = vector.extract_strided_slice %201 {offsets = [40, 0], sizes = [8, 512], strides = [1, 1]} : vector<48x512xf32> to vector<8x512xf32>
    %cst_150 = arith.constant dense<0.000000e+00> : vector<8x512xf32>
    %518 = tpu.matmul %480, %1, %cst_150 {dimension_numbers = #tpu.dot_dimension_numbers<[1], [0], [0], [1], [0, 0, 1, 1], [], []>} : vector<8x128xf32>, vector<128x512xf32>, vector<8x512xf32> -> vector<8x512xf32>
    %519 = arith.addf %517, %518 : vector<8x512xf32>
    %520 = vector.extract_strided_slice %519 {offsets = [0, 0], sizes = [8, 128], strides = [1, 1]} : vector<8x512xf32> to vector<8x128xf32>
    %cst_151 = arith.constant 5.000000e-01 : f32
    %521 = vector.broadcast %cst_151 : f32 to vector<8x128xf32>
    %522 = arith.mulf %521, %520 : vector<8x128xf32>
    %523 = math.tanh %522 : vector<8x128xf32>
    %cst_152 = arith.constant 5.000000e-01 : f32
    %524 = vector.broadcast %cst_152 : f32 to vector<8x128xf32>
    %525 = arith.mulf %524, %523 : vector<8x128xf32>
    %cst_153 = arith.constant 5.000000e-01 : f32
    %526 = vector.broadcast %cst_153 : f32 to vector<8x128xf32>
    %527 = arith.addf %525, %526 : vector<8x128xf32>
    %528 = vector.extract_strided_slice %519 {offsets = [0, 128], sizes = [8, 128], strides = [1, 1]} : vector<8x512xf32> to vector<8x128xf32>
    %cst_154 = arith.constant 5.000000e-01 : f32
    %529 = vector.broadcast %cst_154 : f32 to vector<8x128xf32>
    %530 = arith.mulf %529, %528 : vector<8x128xf32>
    %531 = math.tanh %530 : vector<8x128xf32>
    %cst_155 = arith.constant 5.000000e-01 : f32
    %532 = vector.broadcast %cst_155 : f32 to vector<8x128xf32>
    %533 = arith.mulf %532, %531 : vector<8x128xf32>
    %cst_156 = arith.constant 5.000000e-01 : f32
    %534 = vector.broadcast %cst_156 : f32 to vector<8x128xf32>
    %535 = arith.addf %533, %534 : vector<8x128xf32>
    %536 = vector.extract_strided_slice %519 {offsets = [0, 256], sizes = [8, 128], strides = [1, 1]} : vector<8x512xf32> to vector<8x128xf32>
    %537 = math.tanh %536 : vector<8x128xf32>
    %538 = vector.extract_strided_slice %519 {offsets = [0, 384], sizes = [8, 128], strides = [1, 1]} : vector<8x512xf32> to vector<8x128xf32>
    %cst_157 = arith.constant 5.000000e-01 : f32
    %539 = vector.broadcast %cst_157 : f32 to vector<8x128xf32>
    %540 = arith.mulf %539, %538 : vector<8x128xf32>
    %541 = math.tanh %540 : vector<8x128xf32>
    %cst_158 = arith.constant 5.000000e-01 : f32
    %542 = vector.broadcast %cst_158 : f32 to vector<8x128xf32>
    %543 = arith.mulf %542, %541 : vector<8x128xf32>
    %cst_159 = arith.constant 5.000000e-01 : f32
    %544 = vector.broadcast %cst_159 : f32 to vector<8x128xf32>
    %545 = arith.addf %543, %544 : vector<8x128xf32>
    %546 = arith.mulf %535, %478 : vector<8x128xf32>
    %547 = arith.mulf %527, %537 : vector<8x128xf32>
    %548 = arith.addf %546, %547 : vector<8x128xf32>
    %549 = math.tanh %548 : vector<8x128xf32>
    %550 = arith.mulf %545, %549 : vector<8x128xf32>
    %cst_160 = arith.constant dense<0.000000e+00> : vector<8x512xf32>
    %551 = tpu.matmul %480, %3, %cst_160 {dimension_numbers = #tpu.dot_dimension_numbers<[1], [0], [0], [1], [0, 0, 1, 1], [], []>} : vector<8x128xf32>, vector<128x512xf32>, vector<8x512xf32> -> vector<8x512xf32>
    %552 = vector.broadcast %5 : vector<1x512xf32> to vector<8x512xf32>
    %553 = arith.addf %551, %552 : vector<8x512xf32>
    %cst_161 = arith.constant dense<0.000000e+00> : vector<8x512xf32>
    %554 = tpu.matmul %516, %4, %cst_161 {dimension_numbers = #tpu.dot_dimension_numbers<[1], [0], [0], [1], [0, 0, 1, 1], [], []>} : vector<8x128xf32>, vector<128x512xf32>, vector<8x512xf32> -> vector<8x512xf32>
    %555 = arith.addf %553, %554 : vector<8x512xf32>
    %556 = vector.extract_strided_slice %555 {offsets = [0, 0], sizes = [8, 128], strides = [1, 1]} : vector<8x512xf32> to vector<8x128xf32>
    %cst_162 = arith.constant 5.000000e-01 : f32
    %557 = vector.broadcast %cst_162 : f32 to vector<8x128xf32>
    %558 = arith.mulf %557, %556 : vector<8x128xf32>
    %559 = math.tanh %558 : vector<8x128xf32>
    %cst_163 = arith.constant 5.000000e-01 : f32
    %560 = vector.broadcast %cst_163 : f32 to vector<8x128xf32>
    %561 = arith.mulf %560, %559 : vector<8x128xf32>
    %cst_164 = arith.constant 5.000000e-01 : f32
    %562 = vector.broadcast %cst_164 : f32 to vector<8x128xf32>
    %563 = arith.addf %561, %562 : vector<8x128xf32>
    %564 = vector.extract_strided_slice %555 {offsets = [0, 128], sizes = [8, 128], strides = [1, 1]} : vector<8x512xf32> to vector<8x128xf32>
    %cst_165 = arith.constant 5.000000e-01 : f32
    %565 = vector.broadcast %cst_165 : f32 to vector<8x128xf32>
    %566 = arith.mulf %565, %564 : vector<8x128xf32>
    %567 = math.tanh %566 : vector<8x128xf32>
    %cst_166 = arith.constant 5.000000e-01 : f32
    %568 = vector.broadcast %cst_166 : f32 to vector<8x128xf32>
    %569 = arith.mulf %568, %567 : vector<8x128xf32>
    %cst_167 = arith.constant 5.000000e-01 : f32
    %570 = vector.broadcast %cst_167 : f32 to vector<8x128xf32>
    %571 = arith.addf %569, %570 : vector<8x128xf32>
    %572 = vector.extract_strided_slice %555 {offsets = [0, 256], sizes = [8, 128], strides = [1, 1]} : vector<8x512xf32> to vector<8x128xf32>
    %573 = math.tanh %572 : vector<8x128xf32>
    %574 = vector.extract_strided_slice %555 {offsets = [0, 384], sizes = [8, 128], strides = [1, 1]} : vector<8x512xf32> to vector<8x128xf32>
    %cst_168 = arith.constant 5.000000e-01 : f32
    %575 = vector.broadcast %cst_168 : f32 to vector<8x128xf32>
    %576 = arith.mulf %575, %574 : vector<8x128xf32>
    %577 = math.tanh %576 : vector<8x128xf32>
    %cst_169 = arith.constant 5.000000e-01 : f32
    %578 = vector.broadcast %cst_169 : f32 to vector<8x128xf32>
    %579 = arith.mulf %578, %577 : vector<8x128xf32>
    %cst_170 = arith.constant 5.000000e-01 : f32
    %580 = vector.broadcast %cst_170 : f32 to vector<8x128xf32>
    %581 = arith.addf %579, %580 : vector<8x128xf32>
    %582 = arith.mulf %571, %514 : vector<8x128xf32>
    %583 = arith.mulf %563, %573 : vector<8x128xf32>
    %584 = arith.addf %582, %583 : vector<8x128xf32>
    %585 = math.tanh %584 : vector<8x128xf32>
    %586 = arith.mulf %581, %585 : vector<8x128xf32>
    %cst_171 = arith.constant dense<0.000000e+00> : vector<8x512xf32>
    %587 = tpu.matmul %550, %3, %cst_171 {dimension_numbers = #tpu.dot_dimension_numbers<[1], [0], [0], [1], [0, 0, 1, 1], [], []>} : vector<8x128xf32>, vector<128x512xf32>, vector<8x512xf32> -> vector<8x512xf32>
    %588 = vector.broadcast %5 : vector<1x512xf32> to vector<8x512xf32>
    %589 = arith.addf %587, %588 : vector<8x512xf32>
    %cst_172 = arith.constant dense<0.000000e+00> : vector<8x512xf32>
    %590 = tpu.matmul %586, %4, %cst_172 {dimension_numbers = #tpu.dot_dimension_numbers<[1], [0], [0], [1], [0, 0, 1, 1], [], []>} : vector<8x128xf32>, vector<128x512xf32>, vector<8x512xf32> -> vector<8x512xf32>
    %591 = arith.addf %589, %590 : vector<8x512xf32>
    %592 = vector.extract_strided_slice %591 {offsets = [0, 0], sizes = [8, 128], strides = [1, 1]} : vector<8x512xf32> to vector<8x128xf32>
    %cst_173 = arith.constant 5.000000e-01 : f32
    %593 = vector.broadcast %cst_173 : f32 to vector<8x128xf32>
    %594 = arith.mulf %593, %592 : vector<8x128xf32>
    %595 = math.tanh %594 : vector<8x128xf32>
    %cst_174 = arith.constant 5.000000e-01 : f32
    %596 = vector.broadcast %cst_174 : f32 to vector<8x128xf32>
    %597 = arith.mulf %596, %595 : vector<8x128xf32>
    %cst_175 = arith.constant 5.000000e-01 : f32
    %598 = vector.broadcast %cst_175 : f32 to vector<8x128xf32>
    %599 = arith.addf %597, %598 : vector<8x128xf32>
    %600 = vector.extract_strided_slice %591 {offsets = [0, 128], sizes = [8, 128], strides = [1, 1]} : vector<8x512xf32> to vector<8x128xf32>
    %cst_176 = arith.constant 5.000000e-01 : f32
    %601 = vector.broadcast %cst_176 : f32 to vector<8x128xf32>
    %602 = arith.mulf %601, %600 : vector<8x128xf32>
    %603 = math.tanh %602 : vector<8x128xf32>
    %cst_177 = arith.constant 5.000000e-01 : f32
    %604 = vector.broadcast %cst_177 : f32 to vector<8x128xf32>
    %605 = arith.mulf %604, %603 : vector<8x128xf32>
    %cst_178 = arith.constant 5.000000e-01 : f32
    %606 = vector.broadcast %cst_178 : f32 to vector<8x128xf32>
    %607 = arith.addf %605, %606 : vector<8x128xf32>
    %608 = vector.extract_strided_slice %591 {offsets = [0, 256], sizes = [8, 128], strides = [1, 1]} : vector<8x512xf32> to vector<8x128xf32>
    %609 = math.tanh %608 : vector<8x128xf32>
    %610 = vector.extract_strided_slice %591 {offsets = [0, 384], sizes = [8, 128], strides = [1, 1]} : vector<8x512xf32> to vector<8x128xf32>
    %cst_179 = arith.constant 5.000000e-01 : f32
    %611 = vector.broadcast %cst_179 : f32 to vector<8x128xf32>
    %612 = arith.mulf %611, %610 : vector<8x128xf32>
    %613 = math.tanh %612 : vector<8x128xf32>
    %cst_180 = arith.constant 5.000000e-01 : f32
    %614 = vector.broadcast %cst_180 : f32 to vector<8x128xf32>
    %615 = arith.mulf %614, %613 : vector<8x128xf32>
    %cst_181 = arith.constant 5.000000e-01 : f32
    %616 = vector.broadcast %cst_181 : f32 to vector<8x128xf32>
    %617 = arith.addf %615, %616 : vector<8x128xf32>
    %618 = arith.mulf %607, %584 : vector<8x128xf32>
    %619 = arith.mulf %599, %609 : vector<8x128xf32>
    %620 = arith.addf %618, %619 : vector<8x128xf32>
    %621 = math.tanh %620 : vector<8x128xf32>
    %622 = arith.mulf %617, %621 : vector<8x128xf32>
    %623 = vector.shape_cast %622 : vector<8x128xf32> to vector<1x8x128xf32>
    %cst_182 = arith.constant dense<0.000000e+00> : vector<1xf32>
    %624 = vector.multi_reduction <add>, %623, %cst_182 [1, 2] : vector<1x8x128xf32> to vector<1xf32>
    %625 = vector.shape_cast %624 : vector<1xf32> to vector<1x1x1xf32>
    %626 = vector.extract %625[0, 0, 0] : f32 from vector<1x1x1xf32>
    %627 = vector.broadcast %626 : f32 to vector<1x1xf32>
    %cst_183 = arith.constant 6.250000e-03 : f32
    %628 = vector.broadcast %cst_183 : f32 to vector<1x1xf32>
    %629 = arith.mulf %627, %628 : vector<1x1xf32>
    %630 = arith.mulf %622, %622 : vector<8x128xf32>
    %631 = vector.shape_cast %630 : vector<8x128xf32> to vector<1x8x128xf32>
    %cst_184 = arith.constant dense<0.000000e+00> : vector<1xf32>
    %632 = vector.multi_reduction <add>, %631, %cst_184 [1, 2] : vector<1x8x128xf32> to vector<1xf32>
    %633 = vector.shape_cast %632 : vector<1xf32> to vector<1x1x1xf32>
    %634 = vector.extract %633[0, 0, 0] : f32 from vector<1x1x1xf32>
    %635 = vector.broadcast %634 : f32 to vector<1x1xf32>
    %cst_185 = arith.constant 6.250000e-03 : f32
    %636 = vector.broadcast %cst_185 : f32 to vector<1x1xf32>
    %637 = arith.mulf %635, %636 : vector<1x1xf32>
    %638 = arith.mulf %629, %629 : vector<1x1xf32>
    %639 = arith.subf %637, %638 : vector<1x1xf32>
    %c5_186 = arith.constant 5 : index
    %640 = memref.load %arg1[%c5_186] : memref<6xf32, #tpu.memory_space<smem>>
    %cst_187 = arith.constant 9.99999974E-6 : f32
    %641 = vector.broadcast %cst_187 : f32 to vector<1x1xf32>
    %642 = arith.addf %639, %641 : vector<1x1xf32>
    %643 = math.rsqrt %642 : vector<1x1xf32>
    %644 = vector.broadcast %640 : f32 to vector<1x1xf32>
    %645 = arith.mulf %644, %643 : vector<1x1xf32>
    %646 = vector.broadcast %629 : vector<1x1xf32> to vector<8x128xf32>
    %647 = arith.subf %622, %646 : vector<8x128xf32>
    %648 = vector.broadcast %645 : vector<1x1xf32> to vector<8x128xf32>
    %649 = arith.mulf %647, %648 : vector<8x128xf32>
    %c5_188 = arith.constant 5 : index
    %650 = memref.load %arg2[%c5_188] : memref<6xf32, #tpu.memory_space<smem>>
    %651 = vector.broadcast %650 : f32 to vector<8x128xf32>
    %652 = arith.addf %649, %651 : vector<8x128xf32>
    %c0_189 = arith.constant 0 : index
    %c0_190 = arith.constant 0 : index
    %653 = vector.load %arg9[%c0_189, %c0_190] : memref<128x128xf32, #tpu.memory_space<vmem>>, vector<128x128xf32>
    %cst_191 = arith.constant dense<0.000000e+00> : vector<8x128xf32>
    %654 = tpu.matmul %652, %653, %cst_191 {dimension_numbers = #tpu.dot_dimension_numbers<[1], [0], [0], [1], [0, 0, 1, 1], [], []>} : vector<8x128xf32>, vector<128x128xf32>, vector<8x128xf32> -> vector<8x128xf32>
    %c0_192 = arith.constant 0 : index
    %c0_193 = arith.constant 0 : index
    %655 = vector.load %arg10[%c0_192, %c0_193] : memref<1x128xf32, #tpu.memory_space<vmem>>, vector<1x128xf32>
    %656 = vector.broadcast %655 : vector<1x128xf32> to vector<8x128xf32>
    %657 = arith.addf %654, %656 : vector<8x128xf32>
    %c0_194 = arith.constant 0 : index
    %c0_195 = arith.constant 0 : index
    %658 = vector.load %arg11[%c0_194, %c0_195] : memref<8x128xf32, #tpu.memory_space<vmem>>, vector<8x128xf32>
    tpu.vector_store %arg11[%c0_194, %c0_195], %657 {strides = array<i32>} : memref<8x128xf32, #tpu.memory_space<vmem>>, vector<8x128xf32>,
    return
  }
}

</mosaic_0001>

<llo_original>
// kernel: rnn_forward.1
$region0: #{rnn_forward.1}
  #allocation0 [shape = 'u32[]', space=smem, size = 0x4, offset = 0x4, fixed_abs, tag = 'smem constant byte address 0x4 - core index']
  #allocation1 [shape = 'u32[72,128]{1,0:T(1,128)}', space=vmem, size = 0x9000, scoped, tag = 'internal scratch']
  %s0 = inlined_call_operand.vmem [shape: f32[48,128], index: 0, kind: input, shape index: {}]
  %s1 = inlined_call_operand.vmem [shape: f32[6], index: 1, kind: input, shape index: {}]
  %s2 = inlined_call_operand.vmem [shape: f32[6], index: 2, kind: input, shape index: {}]
  %s3 = inlined_call_operand.vmem [shape: f32[128,512], index: 3, kind: input, shape index: {}]
  %s4 = inlined_call_operand.vmem [shape: f32[128,512], index: 4, kind: input, shape index: {}]
  %s5 = inlined_call_operand.vmem [shape: f32[1,512], index: 5, kind: input, shape index: {}]
  %s6 = inlined_call_operand.vmem [shape: f32[128,512], index: 6, kind: input, shape index: {}]
  %s7 = inlined_call_operand.vmem [shape: f32[128,512], index: 7, kind: input, shape index: {}]
  %s8 = inlined_call_operand.vmem [shape: f32[1,512], index: 8, kind: input, shape index: {}]
  %s9 = inlined_call_operand.vmem [shape: f32[128,128], index: 9, kind: input, shape index: {}]
  %s10 = inlined_call_operand.vmem [shape: f32[1,128], index: 10, kind: input, shape index: {}]
  %s11 = inlined_call_operand.vmem [shape: f32[8,128], index: 11, kind: output, shape index: {}]
  %s12 = sld [smem:[#allocation0]]
  $region62: #{rnn_forward.1} parent=0
    _
  %s14 = ssub.s32 1, %s12
  %s15 = scalar_select 0, %s14, %s12
  $region1: #{rnn_forward.1} parent=0
    #allocation2 [shape = 'u8[512]{0}', space=smem, size = 0x200, scoped, tag = 'input window, operand 1, single buffered']
    #allocation3 [shape = 's32[1]{0}', space=sflag, size = 0x4, scoped, tag = 'scoped memory for rnn_forward.1']
    #allocation4 [shape = 'u8[512]{0}', space=smem, size = 0x200, scoped, tag = 'input window, operand 2, single buffered']
    #allocation5 [shape = 's32[1]{0}', space=sflag, size = 0x4, scoped, tag = 'scoped memory for rnn_forward.1']
    %16 = vsyncpa [#allocation3], 0
    %17 = vsyncpa [#allocation5], 0
    // Predicated region
    $region2: #{rnn_forward.1} parent=1 // pred_check
      _
    $region3: #{rnn_forward.1} parent=1 // pred_check_branch
      %19 = sbr.rel (0) target = $region5
    $region4: #{rnn_forward.1} parent=1 // pred_region
      _
    $region5: #{rnn_forward.1} parent=1 // pred_fallthru
      _
    // Predicated region
    $region6: #{rnn_forward.1} parent=1 // pred_check
      _
    $region7: #{rnn_forward.1} parent=1 // pred_check_branch
      %21 = sbr.rel (0) target = $region9
    $region8: #{rnn_forward.1} parent=1 // pred_region
      %23 = vsyncadd [#allocation3], 0
      %s25 = sshll.u32 %s1, 4
      %s26 = int_to_ptr.vmem [resolvable:$true] %s25
      %28 = dma.vmem_to_smem %s26, 16, [#allocation2], [#allocation3]
    $region9: #{rnn_forward.1} parent=1 // pred_fallthru
      _
    // Predicated region
    $region10: #{rnn_forward.1} parent=1 // pred_check
      _
    $region11: #{rnn_forward.1} parent=1 // pred_check_branch
      %30 = sbr.rel (0) target = $region13
    $region12: #{rnn_forward.1} parent=1 // pred_region
      %32 = vsyncadd [#allocation5], 0
      %s34 = sshll.u32 %s2, 4
      %s35 = int_to_ptr.vmem [resolvable:$true] %s34
      %37 = dma.vmem_to_smem %s35, 16, [#allocation4], [#allocation5]
    $region13: #{rnn_forward.1} parent=1 // pred_fallthru
      _
    // Predicated region
    $region14: #{rnn_forward.1} parent=1 // pred_check
      _
    $region15: #{rnn_forward.1} parent=1 // pred_check_branch
      %39 = sbr.rel (0) target = $region17
    $region16: #{rnn_forward.1} parent=1 // pred_region
      _
    $region17: #{rnn_forward.1} parent=1 // pred_fallthru
      _
    // Predicated region
    $region18: #{rnn_forward.1} parent=1 // pred_check
      _
    $region19: #{rnn_forward.1} parent=1 // pred_check_branch
      %41 = sbr.rel (0) target = $region21
    $region20: #{rnn_forward.1} parent=1 // pred_region
      _
    $region21: #{rnn_forward.1} parent=1 // pred_fallthru
      _
    // Predicated region
    $region22: #{rnn_forward.1} parent=1 // pred_check
      _
    $region23: #{rnn_forward.1} parent=1 // pred_check_branch
      %43 = sbr.rel (0) target = $region25
    $region24: #{rnn_forward.1} parent=1 // pred_region
      _
    $region25: #{rnn_forward.1} parent=1 // pred_fallthru
      _
    // Predicated region
    $region26: #{rnn_forward.1} parent=1 // pred_check
      _
    $region27: #{rnn_forward.1} parent=1 // pred_check_branch
      %45 = sbr.rel (0) target = $region29
    $region28: #{rnn_forward.1} parent=1 // pred_region
      _
    $region29: #{rnn_forward.1} parent=1 // pred_fallthru
      _
    // Predicated region
    $region30: #{rnn_forward.1} parent=1 // pred_check
      _
    $region31: #{rnn_forward.1} parent=1 // pred_check_branch
      %47 = sbr.rel (0) target = $region33
    $region32: #{rnn_forward.1} parent=1 // pred_region
      _
    $region33: #{rnn_forward.1} parent=1 // pred_fallthru
      _
    // Predicated region
    $region34: #{rnn_forward.1} parent=1 // pred_check
      _
    $region35: #{rnn_forward.1} parent=1 // pred_check_branch
      %49 = sbr.rel (0) target = $region37
    $region36: #{rnn_forward.1} parent=1 // pred_region
      _
    $region37: #{rnn_forward.1} parent=1 // pred_fallthru
      _
    // Predicated region
    $region38: #{rnn_forward.1} parent=1 // pred_check
      _
    $region39: #{rnn_forward.1} parent=1 // pred_check_branch
      %51 = sbr.rel (0) target = $region41
    $region40: #{rnn_forward.1} parent=1 // pred_region
      _
    $region41: #{rnn_forward.1} parent=1 // pred_fallthru
      _
    // Predicated region
    $region42: #{rnn_forward.1} parent=1 // pred_check
      _
    $region43: #{rnn_forward.1} parent=1 // pred_check_branch
      %53 = sbr.rel (0) target = $region45
    $region44: #{rnn_forward.1} parent=1 // pred_region
      _
    $region45: #{rnn_forward.1} parent=1 // pred_fallthru
      _
    // Predicated region
    $region46: #{rnn_forward.1} parent=1 // pred_check
      _
    $region47: #{rnn_forward.1} parent=1 // pred_check_branch
      %55 = sbr.rel (0) target = $region49
    $region48: #{rnn_forward.1} parent=1 // pred_region
      %57 = dma.done [#allocation3], 16
    $region49: #{rnn_forward.1} parent=1 // pred_fallthru
      _
    // Predicated region
    $region50: #{rnn_forward.1} parent=1 // pred_check
      _
    $region51: #{rnn_forward.1} parent=1 // pred_check_branch
      %59 = sbr.rel (0) target = $region53
    $region52: #{rnn_forward.1} parent=1 // pred_region
      %61 = dma.done [#allocation5], 16
    $region53: #{rnn_forward.1} parent=1 // pred_fallthru
      _
    %62 = sfence
    %v63 = vld [vmem:[%s3] sm:$0xff]
    %v64 = vld [vmem:[%s3 + $0x8] sm:$0xff]
    %v65 = vld [vmem:[%s3 + $0x10] sm:$0xff]
    %v66 = vld [vmem:[%s3 + $0x18] sm:$0xff]
    %v67 = vld [vmem:[%s3 + $0x20] sm:$0xff]
    %v68 = vld [vmem:[%s3 + $0x28] sm:$0xff]
    %v69 = vld [vmem:[%s3 + $0x30] sm:$0xff]
    %v70 = vld [vmem:[%s3 + $0x38] sm:$0xff]
    %v71 = vld [vmem:[%s3 + $0x40] sm:$0xff]
    %v72 = vld [vmem:[%s3 + $0x48] sm:$0xff]
    %v73 = vld [vmem:[%s3 + $0x50] sm:$0xff]
    %v74 = vld [vmem:[%s3 + $0x58] sm:$0xff]
    %v75 = vld [vmem:[%s3 + $0x60] sm:$0xff]
    %v76 = vld [vmem:[%s3 + $0x68] sm:$0xff]
    %v77 = vld [vmem:[%s3 + $0x70] sm:$0xff]
    %v78 = vld [vmem:[%s3 + $0x78] sm:$0xff]
    %v79 = vld [vmem:[%s3 + $0x80] sm:$0xff]
    %v80 = vld [vmem:[%s3 + $0x88] sm:$0xff]
    %v81 = vld [vmem:[%s3 + $0x90] sm:$0xff]
    %v82 = vld [vmem:[%s3 + $0x98] sm:$0xff]
    %v83 = vld [vmem:[%s3 + $0xa0] sm:$0xff]
    %v84 = vld [vmem:[%s3 + $0xa8] sm:$0xff]
    %v85 = vld [vmem:[%s3 + $0xb0] sm:$0xff]
    %v86 = vld [vmem:[%s3 + $0xb8] sm:$0xff]
    %v87 = vld [vmem:[%s3 + $0xc0] sm:$0xff]
    %v88 = vld [vmem:[%s3 + $0xc8] sm:$0xff]
    %v89 = vld [vmem:[%s3 + $0xd0] sm:$0xff]
    %v90 = vld [vmem:[%s3 + $0xd8] sm:$0xff]
    %v91 = vld [vmem:[%s3 + $0xe0] sm:$0xff]
    %v92 = vld [vmem:[%s3 + $0xe8] sm:$0xff]
    %v93 = vld [vmem:[%s3 + $0xf0] sm:$0xff]
    %v94 = vld [vmem:[%s3 + $0xf8] sm:$0xff]
    %v95 = vld [vmem:[%s3 + $0x100] sm:$0xff]
    %v96 = vld [vmem:[%s3 + $0x108] sm:$0xff]
    %v97 = vld [vmem:[%s3 + $0x110] sm:$0xff]
    %v98 = vld [vmem:[%s3 + $0x118] sm:$0xff]
    %v99 = vld [vmem:[%s3 + $0x120] sm:$0xff]
    %v100 = vld [vmem:[%s3 + $0x128] sm:$0xff]
    %v101 = vld [vmem:[%s3 + $0x130] sm:$0xff]
    %v102 = vld [vmem:[%s3 + $0x138] sm:$0xff]
    %v103 = vld [vmem:[%s3 + $0x140] sm:$0xff]
    %v104 = vld [vmem:[%s3 + $0x148] sm:$0xff]
    %v105 = vld [vmem:[%s3 + $0x150] sm:$0xff]
    %v106 = vld [vmem:[%s3 + $0x158] sm:$0xff]
    %v107 = vld [vmem:[%s3 + $0x160] sm:$0xff]
    %v108 = vld [vmem:[%s3 + $0x168] sm:$0xff]
    %v109 = vld [vmem:[%s3 + $0x170] sm:$0xff]
    %v110 = vld [vmem:[%s3 + $0x178] sm:$0xff]
    %v111 = vld [vmem:[%s3 + $0x180] sm:$0xff]
    %v112 = vld [vmem:[%s3 + $0x188] sm:$0xff]
    %v113 = vld [vmem:[%s3 + $0x190] sm:$0xff]
    %v114 = vld [vmem:[%s3 + $0x198] sm:$0xff]
    %v115 = vld [vmem:[%s3 + $0x1a0] sm:$0xff]
    %v116 = vld [vmem:[%s3 + $0x1a8] sm:$0xff]
    %v117 = vld [vmem:[%s3 + $0x1b0] sm:$0xff]
    %v118 = vld [vmem:[%s3 + $0x1b8] sm:$0xff]
    %v119 = vld [vmem:[%s3 + $0x1c0] sm:$0xff]
    %v120 = vld [vmem:[%s3 + $0x1c8] sm:$0xff]
    %v121 = vld [vmem:[%s3 + $0x1d0] sm:$0xff]
    %v122 = vld [vmem:[%s3 + $0x1d8] sm:$0xff]
    %v123 = vld [vmem:[%s3 + $0x1e0] sm:$0xff]
    %v124 = vld [vmem:[%s3 + $0x1e8] sm:$0xff]
    %v125 = vld [vmem:[%s3 + $0x1f0] sm:$0xff]
    %v126 = vld [vmem:[%s3 + $0x1f8] sm:$0xff]
    %v127 = vld [vmem:[%s4] sm:$0xff]
    %v128 = vld [vmem:[%s4 + $0x8] sm:$0xff]
    %v129 = vld [vmem:[%s4 + $0x10] sm:$0xff]
    %v130 = vld [vmem:[%s4 + $0x18] sm:$0xff]
    %v131 = vld [vmem:[%s4 + $0x20] sm:$0xff]
    %v132 = vld [vmem:[%s4 + $0x28] sm:$0xff]
    %v133 = vld [vmem:[%s4 + $0x30] sm:$0xff]
    %v134 = vld [vmem:[%s4 + $0x38] sm:$0xff]
    %v135 = vld [vmem:[%s4 + $0x40] sm:$0xff]
    %v136 = vld [vmem:[%s4 + $0x48] sm:$0xff]
    %v137 = vld [vmem:[%s4 + $0x50] sm:$0xff]
    %v138 = vld [vmem:[%s4 + $0x58] sm:$0xff]
    %v139 = vld [vmem:[%s4 + $0x60] sm:$0xff]
    %v140 = vld [vmem:[%s4 + $0x68] sm:$0xff]
    %v141 = vld [vmem:[%s4 + $0x70] sm:$0xff]
    %v142 = vld [vmem:[%s4 + $0x78] sm:$0xff]
    %v143 = vld [vmem:[%s4 + $0x80] sm:$0xff]
    %v144 = vld [vmem:[%s4 + $0x88] sm:$0xff]
    %v145 = vld [vmem:[%s4 + $0x90] sm:$0xff]
    %v146 = vld [vmem:[%s4 + $0x98] sm:$0xff]
    %v147 = vld [vmem:[%s4 + $0xa0] sm:$0xff]
    %v148 = vld [vmem:[%s4 + $0xa8] sm:$0xff]
    %v149 = vld [vmem:[%s4 + $0xb0] sm:$0xff]
    %v150 = vld [vmem:[%s4 + $0xb8] sm:$0xff]
    %v151 = vld [vmem:[%s4 + $0xc0] sm:$0xff]
    %v152 = vld [vmem:[%s4 + $0xc8] sm:$0xff]
    %v153 = vld [vmem:[%s4 + $0xd0] sm:$0xff]
    %v154 = vld [vmem:[%s4 + $0xd8] sm:$0xff]
    %v155 = vld [vmem:[%s4 + $0xe0] sm:$0xff]
    %v156 = vld [vmem:[%s4 + $0xe8] sm:$0xff]
    %v157 = vld [vmem:[%s4 + $0xf0] sm:$0xff]
    %v158 = vld [vmem:[%s4 + $0xf8] sm:$0xff]
    %v159 = vld [vmem:[%s4 + $0x100] sm:$0xff]
    %v160 = vld [vmem:[%s4 + $0x108] sm:$0xff]
    %v161 = vld [vmem:[%s4 + $0x110] sm:$0xff]
    %v162 = vld [vmem:[%s4 + $0x118] sm:$0xff]
    %v163 = vld [vmem:[%s4 + $0x120] sm:$0xff]
    %v164 = vld [vmem:[%s4 + $0x128] sm:$0xff]
    %v165 = vld [vmem:[%s4 + $0x130] sm:$0xff]
    %v166 = vld [vmem:[%s4 + $0x138] sm:$0xff]
    %v167 = vld [vmem:[%s4 + $0x140] sm:$0xff]
    %v168 = vld [vmem:[%s4 + $0x148] sm:$0xff]
    %v169 = vld [vmem:[%s4 + $0x150] sm:$0xff]
    %v170 = vld [vmem:[%s4 + $0x158] sm:$0xff]
    %v171 = vld [vmem:[%s4 + $0x160] sm:$0xff]
    %v172 = vld [vmem:[%s4 + $0x168] sm:$0xff]
    %v173 = vld [vmem:[%s4 + $0x170] sm:$0xff]
    %v174 = vld [vmem:[%s4 + $0x178] sm:$0xff]
    %v175 = vld [vmem:[%s4 + $0x180] sm:$0xff]
    %v176 = vld [vmem:[%s4 + $0x188] sm:$0xff]
    %v177 = vld [vmem:[%s4 + $0x190] sm:$0xff]
    %v178 = vld [vmem:[%s4 + $0x198] sm:$0xff]
    %v179 = vld [vmem:[%s4 + $0x1a0] sm:$0xff]
    %v180 = vld [vmem:[%s4 + $0x1a8] sm:$0xff]
    %v181 = vld [vmem:[%s4 + $0x1b0] sm:$0xff]
    %v182 = vld [vmem:[%s4 + $0x1b8] sm:$0xff]
    %v183 = vld [vmem:[%s4 + $0x1c0] sm:$0xff]
    %v184 = vld [vmem:[%s4 + $0x1c8] sm:$0xff]
    %v185 = vld [vmem:[%s4 + $0x1d0] sm:$0xff]
    %v186 = vld [vmem:[%s4 + $0x1d8] sm:$0xff]
    %v187 = vld [vmem:[%s4 + $0x1e0] sm:$0xff]
    %v188 = vld [vmem:[%s4 + $0x1e8] sm:$0xff]
    %v189 = vld [vmem:[%s4 + $0x1f0] sm:$0xff]
    %v190 = vld [vmem:[%s4 + $0x1f8] sm:$0xff]
    %v191 = vld [vmem:[%s5] sm:$0xf]
    %v192 = vld [vmem:[%s6] sm:$0xff]
    %v193 = vld [vmem:[%s6 + $0x8] sm:$0xff]
    %v194 = vld [vmem:[%s6 + $0x10] sm:$0xff]
    %v195 = vld [vmem:[%s6 + $0x18] sm:$0xff]
    %v196 = vld [vmem:[%s6 + $0x20] sm:$0xff]
    %v197 = vld [vmem:[%s6 + $0x28] sm:$0xff]
    %v198 = vld [vmem:[%s6 + $0x30] sm:$0xff]
    %v199 = vld [vmem:[%s6 + $0x38] sm:$0xff]
    %v200 = vld [vmem:[%s6 + $0x40] sm:$0xff]
    %v201 = vld [vmem:[%s6 + $0x48] sm:$0xff]
    %v202 = vld [vmem:[%s6 + $0x50] sm:$0xff]
    %v203 = vld [vmem:[%s6 + $0x58] sm:$0xff]
    %v204 = vld [vmem:[%s6 + $0x60] sm:$0xff]
    %v205 = vld [vmem:[%s6 + $0x68] sm:$0xff]
    %v206 = vld [vmem:[%s6 + $0x70] sm:$0xff]
    %v207 = vld [vmem:[%s6 + $0x78] sm:$0xff]
    %v208 = vld [vmem:[%s6 + $0x80] sm:$0xff]
    %v209 = vld [vmem:[%s6 + $0x88] sm:$0xff]
    %v210 = vld [vmem:[%s6 + $0x90] sm:$0xff]
    %v211 = vld [vmem:[%s6 + $0x98] sm:$0xff]
    %v212 = vld [vmem:[%s6 + $0xa0] sm:$0xff]
    %v213 = vld [vmem:[%s6 + $0xa8] sm:$0xff]
    %v214 = vld [vmem:[%s6 + $0xb0] sm:$0xff]
    %v215 = vld [vmem:[%s6 + $0xb8] sm:$0xff]
    %v216 = vld [vmem:[%s6 + $0xc0] sm:$0xff]
    %v217 = vld [vmem:[%s6 + $0xc8] sm:$0xff]
    %v218 = vld [vmem:[%s6 + $0xd0] sm:$0xff]
    %v219 = vld [vmem:[%s6 + $0xd8] sm:$0xff]
    %v220 = vld [vmem:[%s6 + $0xe0] sm:$0xff]
    %v221 = vld [vmem:[%s6 + $0xe8] sm:$0xff]
    %v222 = vld [vmem:[%s6 + $0xf0] sm:$0xff]
    %v223 = vld [vmem:[%s6 + $0xf8] sm:$0xff]
    %v224 = vld [vmem:[%s6 + $0x100] sm:$0xff]
    %v225 = vld [vmem:[%s6 + $0x108] sm:$0xff]
    %v226 = vld [vmem:[%s6 + $0x110] sm:$0xff]
    %v227 = vld [vmem:[%s6 + $0x118] sm:$0xff]
    %v228 = vld [vmem:[%s6 + $0x120] sm:$0xff]
    %v229 = vld [vmem:[%s6 + $0x128] sm:$0xff]
    %v230 = vld [vmem:[%s6 + $0x130] sm:$0xff]
    %v231 = vld [vmem:[%s6 + $0x138] sm:$0xff]
    %v232 = vld [vmem:[%s6 + $0x140] sm:$0xff]
    %v233 = vld [vmem:[%s6 + $0x148] sm:$0xff]
    %v234 = vld [vmem:[%s6 + $0x150] sm:$0xff]
    %v235 = vld [vmem:[%s6 + $0x158] sm:$0xff]
    %v236 = vld [vmem:[%s6 + $0x160] sm:$0xff]
    %v237 = vld [vmem:[%s6 + $0x168] sm:$0xff]
    %v238 = vld [vmem:[%s6 + $0x170] sm:$0xff]
    %v239 = vld [vmem:[%s6 + $0x178] sm:$0xff]
    %v240 = vld [vmem:[%s6 + $0x180] sm:$0xff]
    %v241 = vld [vmem:[%s6 + $0x188] sm:$0xff]
    %v242 = vld [vmem:[%s6 + $0x190] sm:$0xff]
    %v243 = vld [vmem:[%s6 + $0x198] sm:$0xff]
    %v244 = vld [vmem:[%s6 + $0x1a0] sm:$0xff]
    %v245 = vld [vmem:[%s6 + $0x1a8] sm:$0xff]
    %v246 = vld [vmem:[%s6 + $0x1b0] sm:$0xff]
    %v247 = vld [vmem:[%s6 + $0x1b8] sm:$0xff]
    %v248 = vld [vmem:[%s6 + $0x1c0] sm:$0xff]
    %v249 = vld [vmem:[%s6 + $0x1c8] sm:$0xff]
    %v250 = vld [vmem:[%s6 + $0x1d0] sm:$0xff]
    %v251 = vld [vmem:[%s6 + $0x1d8] sm:$0xff]
    %v252 = vld [vmem:[%s6 + $0x1e0] sm:$0xff]
    %v253 = vld [vmem:[%s6 + $0x1e8] sm:$0xff]
    %v254 = vld [vmem:[%s6 + $0x1f0] sm:$0xff]
    %v255 = vld [vmem:[%s6 + $0x1f8] sm:$0xff]
    %v256 = vld [vmem:[%s7] sm:$0xff]
    %v257 = vld [vmem:[%s7 + $0x8] sm:$0xff]
    %v258 = vld [vmem:[%s7 + $0x10] sm:$0xff]
    %v259 = vld [vmem:[%s7 + $0x18] sm:$0xff]
    %v260 = vld [vmem:[%s7 + $0x20] sm:$0xff]
    %v261 = vld [vmem:[%s7 + $0x28] sm:$0xff]
    %v262 = vld [vmem:[%s7 + $0x30] sm:$0xff]
    %v263 = vld [vmem:[%s7 + $0x38] sm:$0xff]
    %v264 = vld [vmem:[%s7 + $0x40] sm:$0xff]
    %v265 = vld [vmem:[%s7 + $0x48] sm:$0xff]
    %v266 = vld [vmem:[%s7 + $0x50] sm:$0xff]
    %v267 = vld [vmem:[%s7 + $0x58] sm:$0xff]
    %v268 = vld [vmem:[%s7 + $0x60] sm:$0xff]
    %v269 = vld [vmem:[%s7 + $0x68] sm:$0xff]
    %v270 = vld [vmem:[%s7 + $0x70] sm:$0xff]
    %v271 = vld [vmem:[%s7 + $0x78] sm:$0xff]
    %v272 = vld [vmem:[%s7 + $0x80] sm:$0xff]
    %v273 = vld [vmem:[%s7 + $0x88] sm:$0xff]
    %v274 = vld [vmem:[%s7 + $0x90] sm:$0xff]
    %v275 = vld [vmem:[%s7 + $0x98] sm:$0xff]
    %v276 = vld [vmem:[%s7 + $0xa0] sm:$0xff]
    %v277 = vld [vmem:[%s7 + $0xa8] sm:$0xff]
    %v278 = vld [vmem:[%s7 + $0xb0] sm:$0xff]
    %v279 = vld [vmem:[%s7 + $0xb8] sm:$0xff]
    %v280 = vld [vmem:[%s7 + $0xc0] sm:$0xff]
    %v281 = vld [vmem:[%s7 + $0xc8] sm:$0xff]
    %v282 = vld [vmem:[%s7 + $0xd0] sm:$0xff]
    %v283 = vld [vmem:[%s7 + $0xd8] sm:$0xff]
    %v284 = vld [vmem:[%s7 + $0xe0] sm:$0xff]
    %v285 = vld [vmem:[%s7 + $0xe8] sm:$0xff]
    %v286 = vld [vmem:[%s7 + $0xf0] sm:$0xff]
    %v287 = vld [vmem:[%s7 + $0xf8] sm:$0xff]
    %v288 = vld [vmem:[%s7 + $0x100] sm:$0xff]
    %v289 = vld [vmem:[%s7 + $0x108] sm:$0xff]
    %v290 = vld [vmem:[%s7 + $0x110] sm:$0xff]
    %v291 = vld [vmem:[%s7 + $0x118] sm:$0xff]
    %v292 = vld [vmem:[%s7 + $0x120] sm:$0xff]
    %v293 = vld [vmem:[%s7 + $0x128] sm:$0xff]
    %v294 = vld [vmem:[%s7 + $0x130] sm:$0xff]
    %v295 = vld [vmem:[%s7 + $0x138] sm:$0xff]
    %v296 = vld [vmem:[%s7 + $0x140] sm:$0xff]
    %v297 = vld [vmem:[%s7 + $0x148] sm:$0xff]
    %v298 = vld [vmem:[%s7 + $0x150] sm:$0xff]
    %v299 = vld [vmem:[%s7 + $0x158] sm:$0xff]
    %v300 = vld [vmem:[%s7 + $0x160] sm:$0xff]
    %v301 = vld [vmem:[%s7 + $0x168] sm:$0xff]
    %v302 = vld [vmem:[%s7 + $0x170] sm:$0xff]
    %v303 = vld [vmem:[%s7 + $0x178] sm:$0xff]
    %v304 = vld [vmem:[%s7 + $0x180] sm:$0xff]
    %v305 = vld [vmem:[%s7 + $0x188] sm:$0xff]
    %v306 = vld [vmem:[%s7 + $0x190] sm:$0xff]
    %v307 = vld [vmem:[%s7 + $0x198] sm:$0xff]
    %v308 = vld [vmem:[%s7 + $0x1a0] sm:$0xff]
    %v309 = vld [vmem:[%s7 + $0x1a8] sm:$0xff]
    %v310 = vld [vmem:[%s7 + $0x1b0] sm:$0xff]
    %v311 = vld [vmem:[%s7 + $0x1b8] sm:$0xff]
    %v312 = vld [vmem:[%s7 + $0x1c0] sm:$0xff]
    %v313 = vld [vmem:[%s7 + $0x1c8] sm:$0xff]
    %v314 = vld [vmem:[%s7 + $0x1d0] sm:$0xff]
    %v315 = vld [vmem:[%s7 + $0x1d8] sm:$0xff]
    %v316 = vld [vmem:[%s7 + $0x1e0] sm:$0xff]
    %v317 = vld [vmem:[%s7 + $0x1e8] sm:$0xff]
    %v318 = vld [vmem:[%s7 + $0x1f0] sm:$0xff]
    %v319 = vld [vmem:[%s7 + $0x1f8] sm:$0xff]
    %v320 = vld [vmem:[%s8] sm:$0xf]
    %v321 = vld [vmem:[%s0] sm:$0xff]
    %322 = vadd.xlane.f32.xlu0 %v321
    %v323 = vpop.xlane.xlu0 %322
    %v324 = vrot.slane %v323, 4
    %v325 = vadd.f32 %v323, %v324
    %v326 = vrot.slane %v325, 2
    %v327 = vadd.f32 %v325, %v326
    %v328 = vrot.slane %v327, 1
    %v329 = vadd.f32 %v327, %v328
    %s330 = vtos %v329
    %v331 = vstv %s330
    %v332 = vmul.f32 %v331, 0.03125
    %v333 = vmul.f32 %v321, %v321
    %334 = vadd.xlane.f32.xlu0 %v333
    %v335 = vpop.xlane.xlu0 %334
    %v336 = vrot.slane %v335, 4
    %v337 = vadd.f32 %v335, %v336
    %v338 = vrot.slane %v337, 2
    %v339 = vadd.f32 %v337, %v338
    %v340 = vrot.slane %v339, 1
    %v341 = vadd.f32 %v339, %v340
    %s342 = vtos %v341
    %v343 = vstv %s342
    %v344 = vmul.f32 %v343, 0.03125
    %v345 = vmul.f32 %v332, %v332
    %v346 = vsub.f32 %v344, %v345
    %s347 = sld [smem:[#allocation2]]
    %v348 = vadd.f32 %v346, 1e-05
    %v349 = vrsqrt.pop %v348
    %v350 = vmul.f32 %v349, %v348
    %v351 = vmul.f32 %v350, %v349
    %v352 = vmul.f32 0.5, %v351
    %v353 = vsub.f32 1.5, %v352
    %v354 = vmul.f32 %v349, %v353
    %vm355 = vweird.f32 %v348
    %vm356 = vweird.f32 %v349
    %vm357 = vmor %vm355, %vm356
    %v358 = vsel %vm357, %v349, %v354
    %v359 = vstv %s347
    %v360 = vmul.f32 %v359, %v358
    %s361 = sld [smem:[#allocation4]]
    %v362 = vmul.f32 %v360, %v332
    %v363 = vstv %s361
    %v364 = vsub.f32 %v363, %v362
    %v365 = vmul.f32 %v321, %v360
    %v366 = vadd.f32 %v365, %v364
    %v367 = vld [vmem:[%s0 + $0x8] sm:$0xff]
    %368 = vadd.xlane.f32.xlu0 %v367
    %v369 = vpop.xlane.xlu0 %368
    %v370 = vrot.slane %v369, 4
    %v371 = vadd.f32 %v369, %v370
    %v372 = vrot.slane %v371, 2
    %v373 = vadd.f32 %v371, %v372
    %v374 = vrot.slane %v373, 1
    %v375 = vadd.f32 %v373, %v374
    %s376 = vtos %v375
    %v377 = vstv %s376
    %v378 = vmul.f32 %v377, 0.03125
    %v379 = vmul.f32 %v367, %v367
    %380 = vadd.xlane.f32.xlu0 %v379
    %v381 = vpop.xlane.xlu0 %380
    %v382 = vrot.slane %v381, 4
    %v383 = vadd.f32 %v381, %v382
    %v384 = vrot.slane %v383, 2
    %v385 = vadd.f32 %v383, %v384
    %v386 = vrot.slane %v385, 1
    %v387 = vadd.f32 %v385, %v386
    %s388 = vtos %v387
    %v389 = vstv %s388
    %v390 = vmul.f32 %v389, 0.03125
    %v391 = vmul.f32 %v378, %v378
    %v392 = vsub.f32 %v390, %v391
    %s393 = sld [smem:[#allocation2 + $0x1]]
    %v394 = vadd.f32 %v392, 1e-05
    %v395 = vrsqrt.pop %v394
    %v396 = vmul.f32 %v395, %v394
    %v397 = vmul.f32 %v396, %v395
    %v398 = vmul.f32 0.5, %v397
    %v399 = vsub.f32 1.5, %v398
    %v400 = vmul.f32 %v395, %v399
    %vm401 = vweird.f32 %v394
    %vm402 = vweird.f32 %v395
    %vm403 = vmor %vm401, %vm402
    %v404 = vsel %vm403, %v395, %v400
    %v405 = vstv %s393
    %v406 = vmul.f32 %v405, %v404
    %s407 = sld [smem:[#allocation4 + $0x1]]
    %v408 = vmul.f32 %v406, %v378
    %v409 = vstv %s407
    %v410 = vsub.f32 %v409, %v408
    %v411 = vmul.f32 %v367, %v406
    %v412 = vadd.f32 %v411, %v410
    %v413 = vld [vmem:[%s0 + $0x10] sm:$0xff]
    %414 = vadd.xlane.f32.xlu0 %v413
    %v415 = vpop.xlane.xlu0 %414
    %v416 = vrot.slane %v415, 4
    %v417 = vadd.f32 %v415, %v416
    %v418 = vrot.slane %v417, 2
    %v419 = vadd.f32 %v417, %v418
    %v420 = vrot.slane %v419, 1
    %v421 = vadd.f32 %v419, %v420
    %s422 = vtos %v421
    %v423 = vstv %s422
    %v424 = vmul.f32 %v423, 0.03125
    %v425 = vmul.f32 %v413, %v413
    %426 = vadd.xlane.f32.xlu0 %v425
    %v427 = vpop.xlane.xlu0 %426
    %v428 = vrot.slane %v427, 4
    %v429 = vadd.f32 %v427, %v428
    %v430 = vrot.slane %v429, 2
    %v431 = vadd.f32 %v429, %v430
    %v432 = vrot.slane %v431, 1
    %v433 = vadd.f32 %v431, %v432
    %s434 = vtos %v433
    %v435 = vstv %s434
    %v436 = vmul.f32 %v435, 0.03125
    %v437 = vmul.f32 %v424, %v424
    %v438 = vsub.f32 %v436, %v437
    %s439 = sld [smem:[#allocation2 + $0x2]]
    %v440 = vadd.f32 %v438, 1e-05
    %v441 = vrsqrt.pop %v440
    %v442 = vmul.f32 %v441, %v440
    %v443 = vmul.f32 %v442, %v441
    %v444 = vmul.f32 0.5, %v443
    %v445 = vsub.f32 1.5, %v444
    %v446 = vmul.f32 %v441, %v445
    %vm447 = vweird.f32 %v440
    %vm448 = vweird.f32 %v441
    %vm449 = vmor %vm447, %vm448
    %v450 = vsel %vm449, %v441, %v446
    %v451 = vstv %s439
    %v452 = vmul.f32 %v451, %v450
    %s453 = sld [smem:[#allocation4 + $0x2]]
    %v454 = vmul.f32 %v452, %v424
    %v455 = vstv %s453
    %v456 = vsub.f32 %v455, %v454
    %v457 = vmul.f32 %v413, %v452
    %v458 = vadd.f32 %v457, %v456
    %v459 = vld [vmem:[%s0 + $0x18] sm:$0xff]
    %460 = vadd.xlane.f32.xlu0 %v459
    %v461 = vpop.xlane.xlu0 %460
    %v462 = vrot.slane %v461, 4
    %v463 = vadd.f32 %v461, %v462
    %v464 = vrot.slane %v463, 2
    %v465 = vadd.f32 %v463, %v464
    %v466 = vrot.slane %v465, 1
    %v467 = vadd.f32 %v465, %v466
    %s468 = vtos %v467
    %v469 = vstv %s468
    %v470 = vmul.f32 %v469, 0.03125
    %v471 = vmul.f32 %v459, %v459
    %472 = vadd.xlane.f32.xlu0 %v471
    %v473 = vpop.xlane.xlu0 %472
    %v474 = vrot.slane %v473, 4
    %v475 = vadd.f32 %v473, %v474
    %v476 = vrot.slane %v475, 2
    %v477 = vadd.f32 %v475, %v476
    %v478 = vrot.slane %v477, 1
    %v479 = vadd.f32 %v477, %v478
    %s480 = vtos %v479
    %v481 = vstv %s480
    %v482 = vmul.f32 %v481, 0.03125
    %v483 = vmul.f32 %v470, %v470
    %v484 = vsub.f32 %v482, %v483
    %s485 = sld [smem:[#allocation2 + $0x3]]
    %v486 = vadd.f32 %v484, 1e-05
    %v487 = vrsqrt.pop %v486
    %v488 = vmul.f32 %v487, %v486
    %v489 = vmul.f32 %v488, %v487
    %v490 = vmul.f32 0.5, %v489
    %v491 = vsub.f32 1.5, %v490
    %v492 = vmul.f32 %v487, %v491
    %vm493 = vweird.f32 %v486
    %vm494 = vweird.f32 %v487
    %vm495 = vmor %vm493, %vm494
    %v496 = vsel %vm495, %v487, %v492
    %v497 = vstv %s485
    %v498 = vmul.f32 %v497, %v496
    %s499 = sld [smem:[#allocation4 + $0x3]]
    %v500 = vmul.f32 %v498, %v470
    %v501 = vstv %s499
    %v502 = vsub.f32 %v501, %v500
    %v503 = vmul.f32 %v459, %v498
    %v504 = vadd.f32 %v503, %v502
    %v505 = vld [vmem:[%s0 + $0x20] sm:$0xff]
    %506 = vadd.xlane.f32.xlu0 %v505
    %v507 = vpop.xlane.xlu0 %506
    %v508 = vrot.slane %v507, 4
    %v509 = vadd.f32 %v507, %v508
    %v510 = vrot.slane %v509, 2
    %v511 = vadd.f32 %v509, %v510
    %v512 = vrot.slane %v511, 1
    %v513 = vadd.f32 %v511, %v512
    %s514 = vtos %v513
    %v515 = vstv %s514
    %v516 = vmul.f32 %v515, 0.03125
    %v517 = vmul.f32 %v505, %v505
    %518 = vadd.xlane.f32.xlu0 %v517
    %v519 = vpop.xlane.xlu0 %518
    %v520 = vrot.slane %v519, 4
    %v521 = vadd.f32 %v519, %v520
    %v522 = vrot.slane %v521, 2
    %v523 = vadd.f32 %v521, %v522
    %v524 = vrot.slane %v523, 1
    %v525 = vadd.f32 %v523, %v524
    %s526 = vtos %v525
    %v527 = vstv %s526
    %v528 = vmul.f32 %v527, 0.03125
    %v529 = vmul.f32 %v516, %v516
    %v530 = vsub.f32 %v528, %v529
    %s531 = sld [smem:[#allocation2 + $0x4]]
    %v532 = vadd.f32 %v530, 1e-05
    %v533 = vrsqrt.pop %v532
    %v534 = vmul.f32 %v533, %v532
    %v535 = vmul.f32 %v534, %v533
    %v536 = vmul.f32 0.5, %v535
    %v537 = vsub.f32 1.5, %v536
    %v538 = vmul.f32 %v533, %v537
    %vm539 = vweird.f32 %v532
    %vm540 = vweird.f32 %v533
    %vm541 = vmor %vm539, %vm540
    %v542 = vsel %vm541, %v533, %v538
    %v543 = vstv %s531
    %v544 = vmul.f32 %v543, %v542
    %s545 = sld [smem:[#allocation4 + $0x4]]
    %v546 = vmul.f32 %v544, %v516
    %v547 = vstv %s545
    %v548 = vsub.f32 %v547, %v546
    %v549 = vmul.f32 %v505, %v544
    %v550 = vadd.f32 %v549, %v548
    %v551 = vld [vmem:[%s0 + $0x28] sm:$0xff]
    %552 = vadd.xlane.f32.xlu0 %v551
    %v553 = vpop.xlane.xlu0 %552
    %v554 = vrot.slane %v553, 4
    %v555 = vadd.f32 %v553, %v554
    %v556 = vrot.slane %v555, 2
    %v557 = vadd.f32 %v555, %v556
    %v558 = vrot.slane %v557, 1
    %v559 = vadd.f32 %v557, %v558
    %s560 = vtos %v559
    %v561 = vstv %s560
    %v562 = vmul.f32 %v561, 0.03125
    %v563 = vmul.f32 %v551, %v551
    %564 = vadd.xlane.f32.xlu0 %v563
    %v565 = vpop.xlane.xlu0 %564
    %v566 = vrot.slane %v565, 4
    %v567 = vadd.f32 %v565, %v566
    %v568 = vrot.slane %v567, 2
    %v569 = vadd.f32 %v567, %v568
    %v570 = vrot.slane %v569, 1
    %v571 = vadd.f32 %v569, %v570
    %s572 = vtos %v571
    %v573 = vstv %s572
    %v574 = vmul.f32 %v573, 0.03125
    %v575 = vmul.f32 %v562, %v562
    %v576 = vsub.f32 %v574, %v575
    %s577 = sld [smem:[#allocation2 + $0x5]]
    %v578 = vadd.f32 %v576, 1e-05
    %v579 = vrsqrt.pop %v578
    %v580 = vmul.f32 %v579, %v578
    %v581 = vmul.f32 %v580, %v579
    %v582 = vmul.f32 0.5, %v581
    %v583 = vsub.f32 1.5, %v582
    %v584 = vmul.f32 %v579, %v583
    %vm585 = vweird.f32 %v578
    %vm586 = vweird.f32 %v579
    %vm587 = vmor %vm585, %vm586
    %v588 = vsel %vm587, %v579, %v584
    %v589 = vstv %s577
    %v590 = vmul.f32 %v589, %v588
    %s591 = sld [smem:[#allocation4 + $0x5]]
    %v592 = vmul.f32 %v590, %v562
    %v593 = vstv %s591
    %v594 = vsub.f32 %v593, %v592
    %v595 = vmul.f32 %v551, %v590
    %v596 = vadd.f32 %v595, %v594
    %v598 = vperm.slane %v191, 0
    %v599 = vperm.slane %v191, 1
    %v600 = vperm.slane %v191, 2
    %v601 = vperm.slane %v191, 3
    %606 = vmatpush.msra.mxu0 %v123
    %607 = vmatpush.msra.mxu0 %v119
    %608 = vmatpush.msra.mxu0 %v115
    %609 = vmatpush.msra.mxu0 %v111
    %610 = vmatpush.msra.mxu0 %v107
    %611 = vmatpush.msra.mxu0 %v103
    %612 = vmatpush.msra.mxu0 %v99
    %613 = vmatpush.msra.mxu0 %v95
    %614 = vmatpush.msra.mxu0 %v91
    %615 = vmatpush.msra.mxu0 %v87
    %616 = vmatpush.msra.mxu0 %v83
    %617 = vmatpush.msra.mxu0 %v79
    %618 = vmatpush.msra.mxu0 %v75
    %619 = vmatpush.msra.mxu0 %v71
    %620 = vmatpush.msra.mxu0 %v67
    %621 = vmatpush.msra.mxu0 %v63
    %622 = vmatmul.f32.gmra.mxu0 %v366
    %v623 = vpop.f32.mrf.mxu0
    %v624 = vadd.f32 %v598, %v623
    %625 = vmatmul.f32.gmra.mxu0 %v412
    %v626 = vpop.f32.mrf.mxu0
    %v627 = vadd.f32 %v598, %v626
    %628 = vmatmul.f32.gmra.mxu0 %v458
    %v629 = vpop.f32.mrf.mxu0
    %v630 = vadd.f32 %v598, %v629
    %631 = vmatmul.f32.gmra.mxu0 %v504
    %v632 = vpop.f32.mrf.mxu0
    %v633 = vadd.f32 %v598, %v632
    %634 = vmatmul.f32.gmra.mxu0 %v550
    %v635 = vpop.f32.mrf.mxu0
    %v636 = vadd.f32 %v598, %v635
    %637 = vmatmul.f32.gmra.mxu0 %v596
    %v638 = vpop.f32.mrf.mxu0
    %v639 = vadd.f32 %v598, %v638
    %640 = vdwg.mxu0
    %641 = vmatpush.msra.mxu0 %v124
    %642 = vmatpush.msra.mxu0 %v120
    %643 = vmatpush.msra.mxu0 %v116
    %644 = vmatpush.msra.mxu0 %v112
    %645 = vmatpush.msra.mxu0 %v108
    %646 = vmatpush.msra.mxu0 %v104
    %647 = vmatpush.msra.mxu0 %v100
    %648 = vmatpush.msra.mxu0 %v96
    %649 = vmatpush.msra.mxu0 %v92
    %650 = vmatpush.msra.mxu0 %v88
    %651 = vmatpush.msra.mxu0 %v84
    %652 = vmatpush.msra.mxu0 %v80
    %653 = vmatpush.msra.mxu0 %v76
    %654 = vmatpush.msra.mxu0 %v72
    %655 = vmatpush.msra.mxu0 %v68
    %656 = vmatpush.msra.mxu0 %v64
    %657 = vmatmul.f32.gmra.mxu0 %v366
    %v658 = vpop.f32.mrf.mxu0
    %v659 = vadd.f32 %v599, %v658
    %660 = vmatmul.f32.gmra.mxu0 %v412
    %v661 = vpop.f32.mrf.mxu0
    %v662 = vadd.f32 %v599, %v661
    %663 = vmatmul.f32.gmra.mxu0 %v458
    %v664 = vpop.f32.mrf.mxu0
    %v665 = vadd.f32 %v599, %v664
    %666 = vmatmul.f32.gmra.mxu0 %v504
    %v667 = vpop.f32.mrf.mxu0
    %v668 = vadd.f32 %v599, %v667
    %669 = vmatmul.f32.gmra.mxu0 %v550
    %v670 = vpop.f32.mrf.mxu0
    %v671 = vadd.f32 %v599, %v670
    %672 = vmatmul.f32.gmra.mxu0 %v596
    %v673 = vpop.f32.mrf.mxu0
    %v674 = vadd.f32 %v599, %v673
    %675 = vdwg.mxu0
    %676 = vmatpush.msra.mxu0 %v125
    %677 = vmatpush.msra.mxu0 %v121
    %678 = vmatpush.msra.mxu0 %v117
    %679 = vmatpush.msra.mxu0 %v113
    %680 = vmatpush.msra.mxu0 %v109
    %681 = vmatpush.msra.mxu0 %v105
    %682 = vmatpush.msra.mxu0 %v101
    %683 = vmatpush.msra.mxu0 %v97
    %684 = vmatpush.msra.mxu0 %v93
    %685 = vmatpush.msra.mxu0 %v89
    %686 = vmatpush.msra.mxu0 %v85
    %687 = vmatpush.msra.mxu0 %v81
    %688 = vmatpush.msra.mxu0 %v77
    %689 = vmatpush.msra.mxu0 %v73
    %690 = vmatpush.msra.mxu0 %v69
    %691 = vmatpush.msra.mxu0 %v65
    %692 = vmatmul.f32.gmra.mxu0 %v366
    %v693 = vpop.f32.mrf.mxu0
    %v694 = vadd.f32 %v600, %v693
    %695 = vmatmul.f32.gmra.mxu0 %v412
    %v696 = vpop.f32.mrf.mxu0
    %v697 = vadd.f32 %v600, %v696
    %698 = vmatmul.f32.gmra.mxu0 %v458
    %v699 = vpop.f32.mrf.mxu0
    %v700 = vadd.f32 %v600, %v699
    %701 = vmatmul.f32.gmra.mxu0 %v504
    %v702 = vpop.f32.mrf.mxu0
    %v703 = vadd.f32 %v600, %v702
    %704 = vmatmul.f32.gmra.mxu0 %v550
    %v705 = vpop.f32.mrf.mxu0
    %v706 = vadd.f32 %v600, %v705
    %707 = vmatmul.f32.gmra.mxu0 %v596
    %v708 = vpop.f32.mrf.mxu0
    %v709 = vadd.f32 %v600, %v708
    %710 = vdwg.mxu0
    %711 = vmatpush.msra.mxu0 %v126
    %712 = vmatpush.msra.mxu0 %v122
    %713 = vmatpush.msra.mxu0 %v118
    %714 = vmatpush.msra.mxu0 %v114
    %715 = vmatpush.msra.mxu0 %v110
    %716 = vmatpush.msra.mxu0 %v106
    %717 = vmatpush.msra.mxu0 %v102
    %718 = vmatpush.msra.mxu0 %v98
    %719 = vmatpush.msra.mxu0 %v94
    %720 = vmatpush.msra.mxu0 %v90
    %721 = vmatpush.msra.mxu0 %v86
    %722 = vmatpush.msra.mxu0 %v82
    %723 = vmatpush.msra.mxu0 %v78
    %724 = vmatpush.msra.mxu0 %v74
    %725 = vmatpush.msra.mxu0 %v70
    %726 = vmatpush.msra.mxu0 %v66
    %727 = vmatmul.f32.gmra.mxu0 %v366
    %v728 = vpop.f32.mrf.mxu0
    %v729 = vadd.f32 %v601, %v728
    %730 = vmatmul.f32.gmra.mxu0 %v412
    %v731 = vpop.f32.mrf.mxu0
    %v732 = vadd.f32 %v601, %v731
    %733 = vmatmul.f32.gmra.mxu0 %v458
    %v734 = vpop.f32.mrf.mxu0
    %v735 = vadd.f32 %v601, %v734
    %736 = vmatmul.f32.gmra.mxu0 %v504
    %v737 = vpop.f32.mrf.mxu0
    %v738 = vadd.f32 %v601, %v737
    %739 = vmatmul.f32.gmra.mxu0 %v550
    %v740 = vpop.f32.mrf.mxu0
    %v741 = vadd.f32 %v601, %v740
    %742 = vmatmul.f32.gmra.mxu0 %v596
    %v743 = vpop.f32.mrf.mxu0
    %v744 = vadd.f32 %v601, %v743
    %745 = vdwg.mxu0
    %746 = vmatpush.msra.mxu0 %v187
    %747 = vmatpush.msra.mxu0 %v183
    %748 = vmatpush.msra.mxu0 %v179
    %749 = vmatpush.msra.mxu0 %v175
    %750 = vmatpush.msra.mxu0 %v171
    %751 = vmatpush.msra.mxu0 %v167
    %752 = vmatpush.msra.mxu0 %v163
    %753 = vmatpush.msra.mxu0 %v159
    %754 = vmatpush.msra.mxu0 %v155
    %755 = vmatpush.msra.mxu0 %v151
    %756 = vmatpush.msra.mxu0 %v147
    %757 = vmatpush.msra.mxu0 %v143
    %758 = vmatpush.msra.mxu0 %v139
    %759 = vmatpush.msra.mxu0 %v135
    %760 = vmatpush.msra.mxu0 %v131
    %761 = vmatpush.msra.mxu0 %v127
    %762 = vmatmul.f32.gmra.mxu0 0.0
    %v763 = vpop.f32.mrf.mxu0
    %v764 = vadd.f32 0.0, %v763
    %765 = vdwg.mxu0
    %766 = vmatpush.msra.mxu0 %v188
    %767 = vmatpush.msra.mxu0 %v184
    %768 = vmatpush.msra.mxu0 %v180
    %769 = vmatpush.msra.mxu0 %v176
    %770 = vmatpush.msra.mxu0 %v172
    %771 = vmatpush.msra.mxu0 %v168
    %772 = vmatpush.msra.mxu0 %v164
    %773 = vmatpush.msra.mxu0 %v160
    %774 = vmatpush.msra.mxu0 %v156
    %775 = vmatpush.msra.mxu0 %v152
    %776 = vmatpush.msra.mxu0 %v148
    %777 = vmatpush.msra.mxu0 %v144
    %778 = vmatpush.msra.mxu0 %v140
    %779 = vmatpush.msra.mxu0 %v136
    %780 = vmatpush.msra.mxu0 %v132
    %781 = vmatpush.msra.mxu0 %v128
    %782 = vmatmul.f32.gmra.mxu0 0.0
    %v783 = vpop.f32.mrf.mxu0
    %v784 = vadd.f32 0.0, %v783
    %785 = vdwg.mxu0
    %786 = vmatpush.msra.mxu0 %v189
    %787 = vmatpush.msra.mxu0 %v185
    %788 = vmatpush.msra.mxu0 %v181
    %789 = vmatpush.msra.mxu0 %v177
    %790 = vmatpush.msra.mxu0 %v173
    %791 = vmatpush.msra.mxu0 %v169
    %792 = vmatpush.msra.mxu0 %v165
    %793 = vmatpush.msra.mxu0 %v161
    %794 = vmatpush.msra.mxu0 %v157
    %795 = vmatpush.msra.mxu0 %v153
    %796 = vmatpush.msra.mxu0 %v149
    %797 = vmatpush.msra.mxu0 %v145
    %798 = vmatpush.msra.mxu0 %v141
    %799 = vmatpush.msra.mxu0 %v137
    %800 = vmatpush.msra.mxu0 %v133
    %801 = vmatpush.msra.mxu0 %v129
    %802 = vmatmul.f32.gmra.mxu0 0.0
    %v803 = vpop.f32.mrf.mxu0
    %v804 = vadd.f32 0.0, %v803
    %805 = vdwg.mxu0
    %806 = vmatpush.msra.mxu0 %v190
    %807 = vmatpush.msra.mxu0 %v186
    %808 = vmatpush.msra.mxu0 %v182
    %809 = vmatpush.msra.mxu0 %v178
    %810 = vmatpush.msra.mxu0 %v174
    %811 = vmatpush.msra.mxu0 %v170
    %812 = vmatpush.msra.mxu0 %v166
    %813 = vmatpush.msra.mxu0 %v162
    %814 = vmatpush.msra.mxu0 %v158
    %815 = vmatpush.msra.mxu0 %v154
    %816 = vmatpush.msra.mxu0 %v150
    %817 = vmatpush.msra.mxu0 %v146
    %818 = vmatpush.msra.mxu0 %v142
    %819 = vmatpush.msra.mxu0 %v138
    %820 = vmatpush.msra.mxu0 %v134
    %821 = vmatpush.msra.mxu0 %v130
    %822 = vmatmul.f32.gmra.mxu0 0.0
    %v823 = vpop.f32.mrf.mxu0
    %v824 = vadd.f32 0.0, %v823
    %825 = vdwg.mxu0
    %v826 = vadd.f32 %v624, %v764
    %v827 = vadd.f32 %v659, %v784
    %v828 = vadd.f32 %v694, %v804
    %v829 = vadd.f32 %v729, %v824
    %v830 = vmul.f32 %v826, 0.5
    %v831 = vtanh.pop %v830
    %v832 = vmul.f32 %v831, 0.5
    %v833 = vadd.f32 %v832, 0.5
    %v834 = vmul.f32 %v827, 0.5
    %v835 = vtanh.pop %v834
    %v836 = vmul.f32 %v835, 0.5
    %v837 = vadd.f32 %v836, 0.5
    %v838 = vtanh.pop %v828
    %v839 = vmul.f32 %v829, 0.5
    %v840 = vtanh.pop %v839
    %v841 = vmul.f32 %v840, 0.5
    %v842 = vadd.f32 %v841, 0.5
    %v843 = vmul.f32 %v837, 0.0
    %v844 = vmul.f32 %v833, %v838
    %v845 = vadd.f32 %v843, %v844
    %v846 = vtanh.pop %v845
    %v847 = vmul.f32 %v842, %v846
    %848 = vmatpush.msra.mxu0 %v187
    %849 = vmatpush.msra.mxu0 %v183
    %850 = vmatpush.msra.mxu0 %v179
    %851 = vmatpush.msra.mxu0 %v175
    %852 = vmatpush.msra.mxu0 %v171
    %853 = vmatpush.msra.mxu0 %v167
    %854 = vmatpush.msra.mxu0 %v163
    %855 = vmatpush.msra.mxu0 %v159
    %856 = vmatpush.msra.mxu0 %v155
    %857 = vmatpush.msra.mxu0 %v151
    %858 = vmatpush.msra.mxu0 %v147
    %859 = vmatpush.msra.mxu0 %v143
    %860 = vmatpush.msra.mxu0 %v139
    %861 = vmatpush.msra.mxu0 %v135
    %862 = vmatpush.msra.mxu0 %v131
    %863 = vmatpush.msra.mxu0 %v127
    %864 = vmatmul.f32.gmra.mxu0 %v847
    %v865 = vpop.f32.mrf.mxu0
    %v866 = vadd.f32 0.0, %v865
    %867 = vdwg.mxu0
    %868 = vmatpush.msra.mxu0 %v188
    %869 = vmatpush.msra.mxu0 %v184
    %870 = vmatpush.msra.mxu0 %v180
    %871 = vmatpush.msra.mxu0 %v176
    %872 = vmatpush.msra.mxu0 %v172
    %873 = vmatpush.msra.mxu0 %v168
    %874 = vmatpush.msra.mxu0 %v164
    %875 = vmatpush.msra.mxu0 %v160
    %876 = vmatpush.msra.mxu0 %v156
    %877 = vmatpush.msra.mxu0 %v152
    %878 = vmatpush.msra.mxu0 %v148
    %879 = vmatpush.msra.mxu0 %v144
    %880 = vmatpush.msra.mxu0 %v140
    %881 = vmatpush.msra.mxu0 %v136
    %882 = vmatpush.msra.mxu0 %v132
    %883 = vmatpush.msra.mxu0 %v128
    %884 = vmatmul.f32.gmra.mxu0 %v847
    %v885 = vpop.f32.mrf.mxu0
    %v886 = vadd.f32 0.0, %v885
    %887 = vdwg.mxu0
    %888 = vmatpush.msra.mxu0 %v189
    %889 = vmatpush.msra.mxu0 %v185
    %890 = vmatpush.msra.mxu0 %v181
    %891 = vmatpush.msra.mxu0 %v177
    %892 = vmatpush.msra.mxu0 %v173
    %893 = vmatpush.msra.mxu0 %v169
    %894 = vmatpush.msra.mxu0 %v165
    %895 = vmatpush.msra.mxu0 %v161
    %896 = vmatpush.msra.mxu0 %v157
    %897 = vmatpush.msra.mxu0 %v153
    %898 = vmatpush.msra.mxu0 %v149
    %899 = vmatpush.msra.mxu0 %v145
    %900 = vmatpush.msra.mxu0 %v141
    %901 = vmatpush.msra.mxu0 %v137
    %902 = vmatpush.msra.mxu0 %v133
    %903 = vmatpush.msra.mxu0 %v129
    %904 = vmatmul.f32.gmra.mxu0 %v847
    %v905 = vpop.f32.mrf.mxu0
    %v906 = vadd.f32 0.0, %v905
    %907 = vdwg.mxu0
    %908 = vmatpush.msra.mxu0 %v190
    %909 = vmatpush.msra.mxu0 %v186
    %910 = vmatpush.msra.mxu0 %v182
    %911 = vmatpush.msra.mxu0 %v178
    %912 = vmatpush.msra.mxu0 %v174
    %913 = vmatpush.msra.mxu0 %v170
    %914 = vmatpush.msra.mxu0 %v166
    %915 = vmatpush.msra.mxu0 %v162
    %916 = vmatpush.msra.mxu0 %v158
    %917 = vmatpush.msra.mxu0 %v154
    %918 = vmatpush.msra.mxu0 %v150
    %919 = vmatpush.msra.mxu0 %v146
    %920 = vmatpush.msra.mxu0 %v142
    %921 = vmatpush.msra.mxu0 %v138
    %922 = vmatpush.msra.mxu0 %v134
    %923 = vmatpush.msra.mxu0 %v130
    %924 = vmatmul.f32.gmra.mxu0 %v847
    %v925 = vpop.f32.mrf.mxu0
    %v926 = vadd.f32 0.0, %v925
    %927 = vdwg.mxu0
    %v928 = vadd.f32 %v627, %v866
    %v929 = vadd.f32 %v662, %v886
    %v930 = vadd.f32 %v697, %v906
    %v931 = vadd.f32 %v732, %v926
    %v932 = vmul.f32 %v928, 0.5
    %v933 = vtanh.pop %v932
    %v934 = vmul.f32 %v933, 0.5
    %v935 = vadd.f32 %v934, 0.5
    %v936 = vmul.f32 %v929, 0.5
    %v937 = vtanh.pop %v936
    %v938 = vmul.f32 %v937, 0.5
    %v939 = vadd.f32 %v938, 0.5
    %v940 = vtanh.pop %v930
    %v941 = vmul.f32 %v931, 0.5
    %v942 = vtanh.pop %v941
    %v943 = vmul.f32 %v942, 0.5
    %v944 = vadd.f32 %v943, 0.5
    %v945 = vmul.f32 %v939, %v845
    %v946 = vmul.f32 %v935, %v940
    %v947 = vadd.f32 %v945, %v946
    %v948 = vtanh.pop %v947
    %v949 = vmul.f32 %v944, %v948
    %v951 = vperm.slane %v320, 0
    %v952 = vperm.slane %v320, 1
    %v953 = vperm.slane %v320, 2
    %v954 = vperm.slane %v320, 3
    %959 = vmatpush.msra.mxu0 %v252
    %960 = vmatpush.msra.mxu0 %v248
    %961 = vmatpush.msra.mxu0 %v244
    %962 = vmatpush.msra.mxu0 %v240
    %963 = vmatpush.msra.mxu0 %v236
    %964 = vmatpush.msra.mxu0 %v232
    %965 = vmatpush.msra.mxu0 %v228
    %966 = vmatpush.msra.mxu0 %v224
    %967 = vmatpush.msra.mxu0 %v220
    %968 = vmatpush.msra.mxu0 %v216
    %969 = vmatpush.msra.mxu0 %v212
    %970 = vmatpush.msra.mxu0 %v208
    %971 = vmatpush.msra.mxu0 %v204
    %972 = vmatpush.msra.mxu0 %v200
    %973 = vmatpush.msra.mxu0 %v196
    %974 = vmatpush.msra.mxu0 %v192
    %975 = vmatmul.f32.gmra.mxu0 %v847
    %v976 = vpop.f32.mrf.mxu0
    %v977 = vadd.f32 %v951, %v976
    %978 = vdwg.mxu0
    %979 = vmatpush.msra.mxu0 %v253
    %980 = vmatpush.msra.mxu0 %v249
    %981 = vmatpush.msra.mxu0 %v245
    %982 = vmatpush.msra.mxu0 %v241
    %983 = vmatpush.msra.mxu0 %v237
    %984 = vmatpush.msra.mxu0 %v233
    %985 = vmatpush.msra.mxu0 %v229
    %986 = vmatpush.msra.mxu0 %v225
    %987 = vmatpush.msra.mxu0 %v221
    %988 = vmatpush.msra.mxu0 %v217
    %989 = vmatpush.msra.mxu0 %v213
    %990 = vmatpush.msra.mxu0 %v209
    %991 = vmatpush.msra.mxu0 %v205
    %992 = vmatpush.msra.mxu0 %v201
    %993 = vmatpush.msra.mxu0 %v197
    %994 = vmatpush.msra.mxu0 %v193
    %995 = vmatmul.f32.gmra.mxu0 %v847
    %v996 = vpop.f32.mrf.mxu0
    %v997 = vadd.f32 %v952, %v996
    %998 = vdwg.mxu0
    %999 = vmatpush.msra.mxu0 %v254
    %1000 = vmatpush.msra.mxu0 %v250
    %1001 = vmatpush.msra.mxu0 %v246
    %1002 = vmatpush.msra.mxu0 %v242
    %1003 = vmatpush.msra.mxu0 %v238
    %1004 = vmatpush.msra.mxu0 %v234
    %1005 = vmatpush.msra.mxu0 %v230
    %1006 = vmatpush.msra.mxu0 %v226
    %1007 = vmatpush.msra.mxu0 %v222
    %1008 = vmatpush.msra.mxu0 %v218
    %1009 = vmatpush.msra.mxu0 %v214
    %1010 = vmatpush.msra.mxu0 %v210
    %1011 = vmatpush.msra.mxu0 %v206
    %1012 = vmatpush.msra.mxu0 %v202
    %1013 = vmatpush.msra.mxu0 %v198
    %1014 = vmatpush.msra.mxu0 %v194
    %1015 = vmatmul.f32.gmra.mxu0 %v847
    %v1016 = vpop.f32.mrf.mxu0
    %v1017 = vadd.f32 %v953, %v1016
    %1018 = vdwg.mxu0
    %1019 = vmatpush.msra.mxu0 %v255
    %1020 = vmatpush.msra.mxu0 %v251
    %1021 = vmatpush.msra.mxu0 %v247
    %1022 = vmatpush.msra.mxu0 %v243
    %1023 = vmatpush.msra.mxu0 %v239
    %1024 = vmatpush.msra.mxu0 %v235
    %1025 = vmatpush.msra.mxu0 %v231
    %1026 = vmatpush.msra.mxu0 %v227
    %1027 = vmatpush.msra.mxu0 %v223
    %1028 = vmatpush.msra.mxu0 %v219
    %1029 = vmatpush.msra.mxu0 %v215
    %1030 = vmatpush.msra.mxu0 %v211
    %1031 = vmatpush.msra.mxu0 %v207
    %1032 = vmatpush.msra.mxu0 %v203
    %1033 = vmatpush.msra.mxu0 %v199
    %1034 = vmatpush.msra.mxu0 %v195
    %1035 = vmatmul.f32.gmra.mxu0 %v847
    %v1036 = vpop.f32.mrf.mxu0
    %v1037 = vadd.f32 %v954, %v1036
    %1038 = vdwg.mxu0
    %1039 = vmatpush.msra.mxu0 %v316
    %1040 = vmatpush.msra.mxu0 %v312
    %1041 = vmatpush.msra.mxu0 %v308
    %1042 = vmatpush.msra.mxu0 %v304
    %1043 = vmatpush.msra.mxu0 %v300
    %1044 = vmatpush.msra.mxu0 %v296
    %1045 = vmatpush.msra.mxu0 %v292
    %1046 = vmatpush.msra.mxu0 %v288
    %1047 = vmatpush.msra.mxu0 %v284
    %1048 = vmatpush.msra.mxu0 %v280
    %1049 = vmatpush.msra.mxu0 %v276
    %1050 = vmatpush.msra.mxu0 %v272
    %1051 = vmatpush.msra.mxu0 %v268
    %1052 = vmatpush.msra.mxu0 %v264
    %1053 = vmatpush.msra.mxu0 %v260
    %1054 = vmatpush.msra.mxu0 %v256
    %1055 = vmatmul.f32.gmra.mxu0 0.0
    %v1056 = vpop.f32.mrf.mxu0
    %v1057 = vadd.f32 0.0, %v1056
    %1058 = vdwg.mxu0
    %1059 = vmatpush.msra.mxu0 %v317
    %1060 = vmatpush.msra.mxu0 %v313
    %1061 = vmatpush.msra.mxu0 %v309
    %1062 = vmatpush.msra.mxu0 %v305
    %1063 = vmatpush.msra.mxu0 %v301
    %1064 = vmatpush.msra.mxu0 %v297
    %1065 = vmatpush.msra.mxu0 %v293
    %1066 = vmatpush.msra.mxu0 %v289
    %1067 = vmatpush.msra.mxu0 %v285
    %1068 = vmatpush.msra.mxu0 %v281
    %1069 = vmatpush.msra.mxu0 %v277
    %1070 = vmatpush.msra.mxu0 %v273
    %1071 = vmatpush.msra.mxu0 %v269
    %1072 = vmatpush.msra.mxu0 %v265
    %1073 = vmatpush.msra.mxu0 %v261
    %1074 = vmatpush.msra.mxu0 %v257
    %1075 = vmatmul.f32.gmra.mxu0 0.0
    %v1076 = vpop.f32.mrf.mxu0
    %v1077 = vadd.f32 0.0, %v1076
    %1078 = vdwg.mxu0
    %1079 = vmatpush.msra.mxu0 %v318
    %1080 = vmatpush.msra.mxu0 %v314
    %1081 = vmatpush.msra.mxu0 %v310
    %1082 = vmatpush.msra.mxu0 %v306
    %1083 = vmatpush.msra.mxu0 %v302
    %1084 = vmatpush.msra.mxu0 %v298
    %1085 = vmatpush.msra.mxu0 %v294
    %1086 = vmatpush.msra.mxu0 %v290
    %1087 = vmatpush.msra.mxu0 %v286
    %1088 = vmatpush.msra.mxu0 %v282
    %1089 = vmatpush.msra.mxu0 %v278
    %1090 = vmatpush.msra.mxu0 %v274
    %1091 = vmatpush.msra.mxu0 %v270
    %1092 = vmatpush.msra.mxu0 %v266
    %1093 = vmatpush.msra.mxu0 %v262
    %1094 = vmatpush.msra.mxu0 %v258
    %1095 = vmatmul.f32.gmra.mxu0 0.0
    %v1096 = vpop.f32.mrf.mxu0
    %v1097 = vadd.f32 0.0, %v1096
    %1098 = vdwg.mxu0
    %1099 = vmatpush.msra.mxu0 %v319
    %1100 = vmatpush.msra.mxu0 %v315
    %1101 = vmatpush.msra.mxu0 %v311
    %1102 = vmatpush.msra.mxu0 %v307
    %1103 = vmatpush.msra.mxu0 %v303
    %1104 = vmatpush.msra.mxu0 %v299
    %1105 = vmatpush.msra.mxu0 %v295
    %1106 = vmatpush.msra.mxu0 %v291
    %1107 = vmatpush.msra.mxu0 %v287
    %1108 = vmatpush.msra.mxu0 %v283
    %1109 = vmatpush.msra.mxu0 %v279
    %1110 = vmatpush.msra.mxu0 %v275
    %1111 = vmatpush.msra.mxu0 %v271
    %1112 = vmatpush.msra.mxu0 %v267
    %1113 = vmatpush.msra.mxu0 %v263
    %1114 = vmatpush.msra.mxu0 %v259
    %1115 = vmatmul.f32.gmra.mxu0 0.0
    %v1116 = vpop.f32.mrf.mxu0
    %v1117 = vadd.f32 0.0, %v1116
    %1118 = vdwg.mxu0
    %v1119 = vadd.f32 %v977, %v1057
    %v1120 = vadd.f32 %v997, %v1077
    %v1121 = vadd.f32 %v1017, %v1097
    %v1122 = vadd.f32 %v1037, %v1117
    %v1123 = vmul.f32 %v1119, 0.5
    %v1124 = vtanh.pop %v1123
    %v1125 = vmul.f32 %v1124, 0.5
    %v1126 = vadd.f32 %v1125, 0.5
    %v1127 = vmul.f32 %v1120, 0.5
    %v1128 = vtanh.pop %v1127
    %v1129 = vmul.f32 %v1128, 0.5
    %v1130 = vadd.f32 %v1129, 0.5
    %v1131 = vtanh.pop %v1121
    %v1132 = vmul.f32 %v1122, 0.5
    %v1133 = vtanh.pop %v1132
    %v1134 = vmul.f32 %v1133, 0.5
    %v1135 = vadd.f32 %v1134, 0.5
    %v1136 = vmul.f32 %v1130, 0.0
    %v1137 = vmul.f32 %v1126, %v1131
    %v1138 = vadd.f32 %v1136, %v1137
    %v1139 = vtanh.pop %v1138
    %v1140 = vmul.f32 %v1135, %v1139
    %1141 = vmatpush.msra.mxu0 %v187
    %1142 = vmatpush.msra.mxu0 %v183
    %1143 = vmatpush.msra.mxu0 %v179
    %1144 = vmatpush.msra.mxu0 %v175
    %1145 = vmatpush.msra.mxu0 %v171
    %1146 = vmatpush.msra.mxu0 %v167
    %1147 = vmatpush.msra.mxu0 %v163
    %1148 = vmatpush.msra.mxu0 %v159
    %1149 = vmatpush.msra.mxu0 %v155
    %1150 = vmatpush.msra.mxu0 %v151
    %1151 = vmatpush.msra.mxu0 %v147
    %1152 = vmatpush.msra.mxu0 %v143
    %1153 = vmatpush.msra.mxu0 %v139
    %1154 = vmatpush.msra.mxu0 %v135
    %1155 = vmatpush.msra.mxu0 %v131
    %1156 = vmatpush.msra.mxu0 %v127
    %1157 = vmatmul.f32.gmra.mxu0 %v949
    %v1158 = vpop.f32.mrf.mxu0
    %v1159 = vadd.f32 0.0, %v1158
    %1160 = vdwg.mxu0
    %1161 = vmatpush.msra.mxu0 %v188
    %1162 = vmatpush.msra.mxu0 %v184
    %1163 = vmatpush.msra.mxu0 %v180
    %1164 = vmatpush.msra.mxu0 %v176
    %1165 = vmatpush.msra.mxu0 %v172
    %1166 = vmatpush.msra.mxu0 %v168
    %1167 = vmatpush.msra.mxu0 %v164
    %1168 = vmatpush.msra.mxu0 %v160
    %1169 = vmatpush.msra.mxu0 %v156
    %1170 = vmatpush.msra.mxu0 %v152
    %1171 = vmatpush.msra.mxu0 %v148
    %1172 = vmatpush.msra.mxu0 %v144
    %1173 = vmatpush.msra.mxu0 %v140
    %1174 = vmatpush.msra.mxu0 %v136
    %1175 = vmatpush.msra.mxu0 %v132
    %1176 = vmatpush.msra.mxu0 %v128
    %1177 = vmatmul.f32.gmra.mxu0 %v949
    %v1178 = vpop.f32.mrf.mxu0
    %v1179 = vadd.f32 0.0, %v1178
    %1180 = vdwg.mxu0
    %1181 = vmatpush.msra.mxu0 %v189
    %1182 = vmatpush.msra.mxu0 %v185
    %1183 = vmatpush.msra.mxu0 %v181
    %1184 = vmatpush.msra.mxu0 %v177
    %1185 = vmatpush.msra.mxu0 %v173
    %1186 = vmatpush.msra.mxu0 %v169
    %1187 = vmatpush.msra.mxu0 %v165
    %1188 = vmatpush.msra.mxu0 %v161
    %1189 = vmatpush.msra.mxu0 %v157
    %1190 = vmatpush.msra.mxu0 %v153
    %1191 = vmatpush.msra.mxu0 %v149
    %1192 = vmatpush.msra.mxu0 %v145
    %1193 = vmatpush.msra.mxu0 %v141
    %1194 = vmatpush.msra.mxu0 %v137
    %1195 = vmatpush.msra.mxu0 %v133
    %1196 = vmatpush.msra.mxu0 %v129
    %1197 = vmatmul.f32.gmra.mxu0 %v949
    %v1198 = vpop.f32.mrf.mxu0
    %v1199 = vadd.f32 0.0, %v1198
    %1200 = vdwg.mxu0
    %1201 = vmatpush.msra.mxu0 %v190
    %1202 = vmatpush.msra.mxu0 %v186
    %1203 = vmatpush.msra.mxu0 %v182
    %1204 = vmatpush.msra.mxu0 %v178
    %1205 = vmatpush.msra.mxu0 %v174
    %1206 = vmatpush.msra.mxu0 %v170
    %1207 = vmatpush.msra.mxu0 %v166
    %1208 = vmatpush.msra.mxu0 %v162
    %1209 = vmatpush.msra.mxu0 %v158
    %1210 = vmatpush.msra.mxu0 %v154
    %1211 = vmatpush.msra.mxu0 %v150
    %1212 = vmatpush.msra.mxu0 %v146
    %1213 = vmatpush.msra.mxu0 %v142
    %1214 = vmatpush.msra.mxu0 %v138
    %1215 = vmatpush.msra.mxu0 %v134
    %1216 = vmatpush.msra.mxu0 %v130
    %1217 = vmatmul.f32.gmra.mxu0 %v949
    %v1218 = vpop.f32.mrf.mxu0
    %v1219 = vadd.f32 0.0, %v1218
    %1220 = vdwg.mxu0
    %v1221 = vadd.f32 %v630, %v1159
    %v1222 = vadd.f32 %v665, %v1179
    %v1223 = vadd.f32 %v700, %v1199
    %v1224 = vadd.f32 %v735, %v1219
    %v1225 = vmul.f32 %v1221, 0.5
    %v1226 = vtanh.pop %v1225
    %v1227 = vmul.f32 %v1226, 0.5
    %v1228 = vadd.f32 %v1227, 0.5
    %v1229 = vmul.f32 %v1222, 0.5
    %v1230 = vtanh.pop %v1229
    %v1231 = vmul.f32 %v1230, 0.5
    %v1232 = vadd.f32 %v1231, 0.5
    %v1233 = vtanh.pop %v1223
    %v1234 = vmul.f32 %v1224, 0.5
    %v1235 = vtanh.pop %v1234
    %v1236 = vmul.f32 %v1235, 0.5
    %v1237 = vadd.f32 %v1236, 0.5
    %v1238 = vmul.f32 %v1232, %v947
    %v1239 = vmul.f32 %v1228, %v1233
    %v1240 = vadd.f32 %v1238, %v1239
    %v1241 = vtanh.pop %v1240
    %v1242 = vmul.f32 %v1237, %v1241
    %1243 = vmatpush.msra.mxu0 %v252
    %1244 = vmatpush.msra.mxu0 %v248
    %1245 = vmatpush.msra.mxu0 %v244
    %1246 = vmatpush.msra.mxu0 %v240
    %1247 = vmatpush.msra.mxu0 %v236
    %1248 = vmatpush.msra.mxu0 %v232
    %1249 = vmatpush.msra.mxu0 %v228
    %1250 = vmatpush.msra.mxu0 %v224
    %1251 = vmatpush.msra.mxu0 %v220
    %1252 = vmatpush.msra.mxu0 %v216
    %1253 = vmatpush.msra.mxu0 %v212
    %1254 = vmatpush.msra.mxu0 %v208
    %1255 = vmatpush.msra.mxu0 %v204
    %1256 = vmatpush.msra.mxu0 %v200
    %1257 = vmatpush.msra.mxu0 %v196
    %1258 = vmatpush.msra.mxu0 %v192
    %1259 = vmatmul.f32.gmra.mxu0 %v949
    %v1260 = vpop.f32.mrf.mxu0
    %v1261 = vadd.f32 %v951, %v1260
    %1262 = vdwg.mxu0
    %1263 = vmatpush.msra.mxu0 %v253
    %1264 = vmatpush.msra.mxu0 %v249
    %1265 = vmatpush.msra.mxu0 %v245
    %1266 = vmatpush.msra.mxu0 %v241
    %1267 = vmatpush.msra.mxu0 %v237
    %1268 = vmatpush.msra.mxu0 %v233
    %1269 = vmatpush.msra.mxu0 %v229
    %1270 = vmatpush.msra.mxu0 %v225
    %1271 = vmatpush.msra.mxu0 %v221
    %1272 = vmatpush.msra.mxu0 %v217
    %1273 = vmatpush.msra.mxu0 %v213
    %1274 = vmatpush.msra.mxu0 %v209
    %1275 = vmatpush.msra.mxu0 %v205
    %1276 = vmatpush.msra.mxu0 %v201
    %1277 = vmatpush.msra.mxu0 %v197
    %1278 = vmatpush.msra.mxu0 %v193
    %1279 = vmatmul.f32.gmra.mxu0 %v949
    %v1280 = vpop.f32.mrf.mxu0
    %v1281 = vadd.f32 %v952, %v1280
    %1282 = vdwg.mxu0
    %1283 = vmatpush.msra.mxu0 %v254
    %1284 = vmatpush.msra.mxu0 %v250
    %1285 = vmatpush.msra.mxu0 %v246
    %1286 = vmatpush.msra.mxu0 %v242
    %1287 = vmatpush.msra.mxu0 %v238
    %1288 = vmatpush.msra.mxu0 %v234
    %1289 = vmatpush.msra.mxu0 %v230
    %1290 = vmatpush.msra.mxu0 %v226
    %1291 = vmatpush.msra.mxu0 %v222
    %1292 = vmatpush.msra.mxu0 %v218
    %1293 = vmatpush.msra.mxu0 %v214
    %1294 = vmatpush.msra.mxu0 %v210
    %1295 = vmatpush.msra.mxu0 %v206
    %1296 = vmatpush.msra.mxu0 %v202
    %1297 = vmatpush.msra.mxu0 %v198
    %1298 = vmatpush.msra.mxu0 %v194
    %1299 = vmatmul.f32.gmra.mxu0 %v949
    %v1300 = vpop.f32.mrf.mxu0
    %v1301 = vadd.f32 %v953, %v1300
    %1302 = vdwg.mxu0
    %1303 = vmatpush.msra.mxu0 %v255
    %1304 = vmatpush.msra.mxu0 %v251
    %1305 = vmatpush.msra.mxu0 %v247
    %1306 = vmatpush.msra.mxu0 %v243
    %1307 = vmatpush.msra.mxu0 %v239
    %1308 = vmatpush.msra.mxu0 %v235
    %1309 = vmatpush.msra.mxu0 %v231
    %1310 = vmatpush.msra.mxu0 %v227
    %1311 = vmatpush.msra.mxu0 %v223
    %1312 = vmatpush.msra.mxu0 %v219
    %1313 = vmatpush.msra.mxu0 %v215
    %1314 = vmatpush.msra.mxu0 %v211
    %1315 = vmatpush.msra.mxu0 %v207
    %1316 = vmatpush.msra.mxu0 %v203
    %1317 = vmatpush.msra.mxu0 %v199
    %1318 = vmatpush.msra.mxu0 %v195
    %1319 = vmatmul.f32.gmra.mxu0 %v949
    %v1320 = vpop.f32.mrf.mxu0
    %v1321 = vadd.f32 %v954, %v1320
    %1322 = vdwg.mxu0
    %1323 = vmatpush.msra.mxu0 %v316
    %1324 = vmatpush.msra.mxu0 %v312
    %1325 = vmatpush.msra.mxu0 %v308
    %1326 = vmatpush.msra.mxu0 %v304
    %1327 = vmatpush.msra.mxu0 %v300
    %1328 = vmatpush.msra.mxu0 %v296
    %1329 = vmatpush.msra.mxu0 %v292
    %1330 = vmatpush.msra.mxu0 %v288
    %1331 = vmatpush.msra.mxu0 %v284
    %1332 = vmatpush.msra.mxu0 %v280
    %1333 = vmatpush.msra.mxu0 %v276
    %1334 = vmatpush.msra.mxu0 %v272
    %1335 = vmatpush.msra.mxu0 %v268
    %1336 = vmatpush.msra.mxu0 %v264
    %1337 = vmatpush.msra.mxu0 %v260
    %1338 = vmatpush.msra.mxu0 %v256
    %1339 = vmatmul.f32.gmra.mxu0 %v1140
    %v1340 = vpop.f32.mrf.mxu0
    %v1341 = vadd.f32 0.0, %v1340
    %1342 = vdwg.mxu0
    %1343 = vmatpush.msra.mxu0 %v317
    %1344 = vmatpush.msra.mxu0 %v313
    %1345 = vmatpush.msra.mxu0 %v309
    %1346 = vmatpush.msra.mxu0 %v305
    %1347 = vmatpush.msra.mxu0 %v301
    %1348 = vmatpush.msra.mxu0 %v297
    %1349 = vmatpush.msra.mxu0 %v293
    %1350 = vmatpush.msra.mxu0 %v289
    %1351 = vmatpush.msra.mxu0 %v285
    %1352 = vmatpush.msra.mxu0 %v281
    %1353 = vmatpush.msra.mxu0 %v277
    %1354 = vmatpush.msra.mxu0 %v273
    %1355 = vmatpush.msra.mxu0 %v269
    %1356 = vmatpush.msra.mxu0 %v265
    %1357 = vmatpush.msra.mxu0 %v261
    %1358 = vmatpush.msra.mxu0 %v257
    %1359 = vmatmul.f32.gmra.mxu0 %v1140
    %v1360 = vpop.f32.mrf.mxu0
    %v1361 = vadd.f32 0.0, %v1360
    %1362 = vdwg.mxu0
    %1363 = vmatpush.msra.mxu0 %v318
    %1364 = vmatpush.msra.mxu0 %v314
    %1365 = vmatpush.msra.mxu0 %v310
    %1366 = vmatpush.msra.mxu0 %v306
    %1367 = vmatpush.msra.mxu0 %v302
    %1368 = vmatpush.msra.mxu0 %v298
    %1369 = vmatpush.msra.mxu0 %v294
    %1370 = vmatpush.msra.mxu0 %v290
    %1371 = vmatpush.msra.mxu0 %v286
    %1372 = vmatpush.msra.mxu0 %v282
    %1373 = vmatpush.msra.mxu0 %v278
    %1374 = vmatpush.msra.mxu0 %v274
    %1375 = vmatpush.msra.mxu0 %v270
    %1376 = vmatpush.msra.mxu0 %v266
    %1377 = vmatpush.msra.mxu0 %v262
    %1378 = vmatpush.msra.mxu0 %v258
    %1379 = vmatmul.f32.gmra.mxu0 %v1140
    %v1380 = vpop.f32.mrf.mxu0
    %v1381 = vadd.f32 0.0, %v1380
    %1382 = vdwg.mxu0
    %1383 = vmatpush.msra.mxu0 %v319
    %1384 = vmatpush.msra.mxu0 %v315
    %1385 = vmatpush.msra.mxu0 %v311
    %1386 = vmatpush.msra.mxu0 %v307
    %1387 = vmatpush.msra.mxu0 %v303
    %1388 = vmatpush.msra.mxu0 %v299
    %1389 = vmatpush.msra.mxu0 %v295
    %1390 = vmatpush.msra.mxu0 %v291
    %1391 = vmatpush.msra.mxu0 %v287
    %1392 = vmatpush.msra.mxu0 %v283
    %1393 = vmatpush.msra.mxu0 %v279
    %1394 = vmatpush.msra.mxu0 %v275
    %1395 = vmatpush.msra.mxu0 %v271
    %1396 = vmatpush.msra.mxu0 %v267
    %1397 = vmatpush.msra.mxu0 %v263
    %1398 = vmatpush.msra.mxu0 %v259
    %1399 = vmatmul.f32.gmra.mxu0 %v1140
    %v1400 = vpop.f32.mrf.mxu0
    %v1401 = vadd.f32 0.0, %v1400
    %1402 = vdwg.mxu0
    %v1403 = vadd.f32 %v1261, %v1341
    %v1404 = vadd.f32 %v1281, %v1361
    %v1405 = vadd.f32 %v1301, %v1381
    %v1406 = vadd.f32 %v1321, %v1401
    %v1407 = vmul.f32 %v1403, 0.5
    %v1408 = vtanh.pop %v1407
    %v1409 = vmul.f32 %v1408, 0.5
    %v1410 = vadd.f32 %v1409, 0.5
    %v1411 = vmul.f32 %v1404, 0.5
    %v1412 = vtanh.pop %v1411
    %v1413 = vmul.f32 %v1412, 0.5
    %v1414 = vadd.f32 %v1413, 0.5
    %v1415 = vtanh.pop %v1405
    %v1416 = vmul.f32 %v1406, 0.5
    %v1417 = vtanh.pop %v1416
    %v1418 = vmul.f32 %v1417, 0.5
    %v1419 = vadd.f32 %v1418, 0.5
    %v1420 = vmul.f32 %v1414, %v1138
    %v1421 = vmul.f32 %v1410, %v1415
    %v1422 = vadd.f32 %v1420, %v1421
    %v1423 = vtanh.pop %v1422
    %v1424 = vmul.f32 %v1419, %v1423
    %1425 = vmatpush.msra.mxu0 %v187
    %1426 = vmatpush.msra.mxu0 %v183
    %1427 = vmatpush.msra.mxu0 %v179
    %1428 = vmatpush.msra.mxu0 %v175
    %1429 = vmatpush.msra.mxu0 %v171
    %1430 = vmatpush.msra.mxu0 %v167
    %1431 = vmatpush.msra.mxu0 %v163
    %1432 = vmatpush.msra.mxu0 %v159
    %1433 = vmatpush.msra.mxu0 %v155
    %1434 = vmatpush.msra.mxu0 %v151
    %1435 = vmatpush.msra.mxu0 %v147
    %1436 = vmatpush.msra.mxu0 %v143
    %1437 = vmatpush.msra.mxu0 %v139
    %1438 = vmatpush.msra.mxu0 %v135
    %1439 = vmatpush.msra.mxu0 %v131
    %1440 = vmatpush.msra.mxu0 %v127
    %1441 = vmatmul.f32.gmra.mxu0 %v1242
    %v1442 = vpop.f32.mrf.mxu0
    %v1443 = vadd.f32 0.0, %v1442
    %1444 = vdwg.mxu0
    %1445 = vmatpush.msra.mxu0 %v188
    %1446 = vmatpush.msra.mxu0 %v184
    %1447 = vmatpush.msra.mxu0 %v180
    %1448 = vmatpush.msra.mxu0 %v176
    %1449 = vmatpush.msra.mxu0 %v172
    %1450 = vmatpush.msra.mxu0 %v168
    %1451 = vmatpush.msra.mxu0 %v164
    %1452 = vmatpush.msra.mxu0 %v160
    %1453 = vmatpush.msra.mxu0 %v156
    %1454 = vmatpush.msra.mxu0 %v152
    %1455 = vmatpush.msra.mxu0 %v148
    %1456 = vmatpush.msra.mxu0 %v144
    %1457 = vmatpush.msra.mxu0 %v140
    %1458 = vmatpush.msra.mxu0 %v136
    %1459 = vmatpush.msra.mxu0 %v132
    %1460 = vmatpush.msra.mxu0 %v128
    %1461 = vmatmul.f32.gmra.mxu0 %v1242
    %v1462 = vpop.f32.mrf.mxu0
    %v1463 = vadd.f32 0.0, %v1462
    %1464 = vdwg.mxu0
    %1465 = vmatpush.msra.mxu0 %v189
    %1466 = vmatpush.msra.mxu0 %v185
    %1467 = vmatpush.msra.mxu0 %v181
    %1468 = vmatpush.msra.mxu0 %v177
    %1469 = vmatpush.msra.mxu0 %v173
    %1470 = vmatpush.msra.mxu0 %v169
    %1471 = vmatpush.msra.mxu0 %v165
    %1472 = vmatpush.msra.mxu0 %v161
    %1473 = vmatpush.msra.mxu0 %v157
    %1474 = vmatpush.msra.mxu0 %v153
    %1475 = vmatpush.msra.mxu0 %v149
    %1476 = vmatpush.msra.mxu0 %v145
    %1477 = vmatpush.msra.mxu0 %v141
    %1478 = vmatpush.msra.mxu0 %v137
    %1479 = vmatpush.msra.mxu0 %v133
    %1480 = vmatpush.msra.mxu0 %v129
    %1481 = vmatmul.f32.gmra.mxu0 %v1242
    %v1482 = vpop.f32.mrf.mxu0
    %v1483 = vadd.f32 0.0, %v1482
    %1484 = vdwg.mxu0
    %1485 = vmatpush.msra.mxu0 %v190
    %1486 = vmatpush.msra.mxu0 %v186
    %1487 = vmatpush.msra.mxu0 %v182
    %1488 = vmatpush.msra.mxu0 %v178
    %1489 = vmatpush.msra.mxu0 %v174
    %1490 = vmatpush.msra.mxu0 %v170
    %1491 = vmatpush.msra.mxu0 %v166
    %1492 = vmatpush.msra.mxu0 %v162
    %1493 = vmatpush.msra.mxu0 %v158
    %1494 = vmatpush.msra.mxu0 %v154
    %1495 = vmatpush.msra.mxu0 %v150
    %1496 = vmatpush.msra.mxu0 %v146
    %1497 = vmatpush.msra.mxu0 %v142
    %1498 = vmatpush.msra.mxu0 %v138
    %1499 = vmatpush.msra.mxu0 %v134
    %1500 = vmatpush.msra.mxu0 %v130
    %1501 = vmatmul.f32.gmra.mxu0 %v1242
    %v1502 = vpop.f32.mrf.mxu0
    %v1503 = vadd.f32 0.0, %v1502
    %1504 = vdwg.mxu0
    %v1505 = vadd.f32 %v633, %v1443
    %v1506 = vadd.f32 %v668, %v1463
    %v1507 = vadd.f32 %v703, %v1483
    %v1508 = vadd.f32 %v738, %v1503
    %v1509 = vmul.f32 %v1505, 0.5
    %v1510 = vtanh.pop %v1509
    %v1511 = vmul.f32 %v1510, 0.5
    %v1512 = vadd.f32 %v1511, 0.5
    %v1513 = vmul.f32 %v1506, 0.5
    %v1514 = vtanh.pop %v1513
    %v1515 = vmul.f32 %v1514, 0.5
    %v1516 = vadd.f32 %v1515, 0.5
    %v1517 = vtanh.pop %v1507
    %v1518 = vmul.f32 %v1508, 0.5
    %v1519 = vtanh.pop %v1518
    %v1520 = vmul.f32 %v1519, 0.5
    %v1521 = vadd.f32 %v1520, 0.5
    %v1522 = vmul.f32 %v1516, %v1240
    %v1523 = vmul.f32 %v1512, %v1517
    %v1524 = vadd.f32 %v1522, %v1523
    %v1525 = vtanh.pop %v1524
    %v1526 = vmul.f32 %v1521, %v1525
    %1527 = vmatpush.msra.mxu0 %v252
    %1528 = vmatpush.msra.mxu0 %v248
    %1529 = vmatpush.msra.mxu0 %v244
    %1530 = vmatpush.msra.mxu0 %v240
    %1531 = vmatpush.msra.mxu0 %v236
    %1532 = vmatpush.msra.mxu0 %v232
    %1533 = vmatpush.msra.mxu0 %v228
    %1534 = vmatpush.msra.mxu0 %v224
    %1535 = vmatpush.msra.mxu0 %v220
    %1536 = vmatpush.msra.mxu0 %v216
    %1537 = vmatpush.msra.mxu0 %v212
    %1538 = vmatpush.msra.mxu0 %v208
    %1539 = vmatpush.msra.mxu0 %v204
    %1540 = vmatpush.msra.mxu0 %v200
    %1541 = vmatpush.msra.mxu0 %v196
    %1542 = vmatpush.msra.mxu0 %v192
    %1543 = vmatmul.f32.gmra.mxu0 %v1242
    %v1544 = vpop.f32.mrf.mxu0
    %v1545 = vadd.f32 %v951, %v1544
    %1546 = vdwg.mxu0
    %1547 = vmatpush.msra.mxu0 %v253
    %1548 = vmatpush.msra.mxu0 %v249
    %1549 = vmatpush.msra.mxu0 %v245
    %1550 = vmatpush.msra.mxu0 %v241
    %1551 = vmatpush.msra.mxu0 %v237
    %1552 = vmatpush.msra.mxu0 %v233
    %1553 = vmatpush.msra.mxu0 %v229
    %1554 = vmatpush.msra.mxu0 %v225
    %1555 = vmatpush.msra.mxu0 %v221
    %1556 = vmatpush.msra.mxu0 %v217
    %1557 = vmatpush.msra.mxu0 %v213
    %1558 = vmatpush.msra.mxu0 %v209
    %1559 = vmatpush.msra.mxu0 %v205
    %1560 = vmatpush.msra.mxu0 %v201
    %1561 = vmatpush.msra.mxu0 %v197
    %1562 = vmatpush.msra.mxu0 %v193
    %1563 = vmatmul.f32.gmra.mxu0 %v1242
    %v1564 = vpop.f32.mrf.mxu0
    %v1565 = vadd.f32 %v952, %v1564
    %1566 = vdwg.mxu0
    %1567 = vmatpush.msra.mxu0 %v254
    %1568 = vmatpush.msra.mxu0 %v250
    %1569 = vmatpush.msra.mxu0 %v246
    %1570 = vmatpush.msra.mxu0 %v242
    %1571 = vmatpush.msra.mxu0 %v238
    %1572 = vmatpush.msra.mxu0 %v234
    %1573 = vmatpush.msra.mxu0 %v230
    %1574 = vmatpush.msra.mxu0 %v226
    %1575 = vmatpush.msra.mxu0 %v222
    %1576 = vmatpush.msra.mxu0 %v218
    %1577 = vmatpush.msra.mxu0 %v214
    %1578 = vmatpush.msra.mxu0 %v210
    %1579 = vmatpush.msra.mxu0 %v206
    %1580 = vmatpush.msra.mxu0 %v202
    %1581 = vmatpush.msra.mxu0 %v198
    %1582 = vmatpush.msra.mxu0 %v194
    %1583 = vmatmul.f32.gmra.mxu0 %v1242
    %v1584 = vpop.f32.mrf.mxu0
    %v1585 = vadd.f32 %v953, %v1584
    %1586 = vdwg.mxu0
    %1587 = vmatpush.msra.mxu0 %v255
    %1588 = vmatpush.msra.mxu0 %v251
    %1589 = vmatpush.msra.mxu0 %v247
    %1590 = vmatpush.msra.mxu0 %v243
    %1591 = vmatpush.msra.mxu0 %v239
    %1592 = vmatpush.msra.mxu0 %v235
    %1593 = vmatpush.msra.mxu0 %v231
    %1594 = vmatpush.msra.mxu0 %v227
    %1595 = vmatpush.msra.mxu0 %v223
    %1596 = vmatpush.msra.mxu0 %v219
    %1597 = vmatpush.msra.mxu0 %v215
    %1598 = vmatpush.msra.mxu0 %v211
    %1599 = vmatpush.msra.mxu0 %v207
    %1600 = vmatpush.msra.mxu0 %v203
    %1601 = vmatpush.msra.mxu0 %v199
    %1602 = vmatpush.msra.mxu0 %v195
    %1603 = vmatmul.f32.gmra.mxu0 %v1242
    %v1604 = vpop.f32.mrf.mxu0
    %v1605 = vadd.f32 %v954, %v1604
    %1606 = vdwg.mxu0
    %1607 = vmatpush.msra.mxu0 %v316
    %1608 = vmatpush.msra.mxu0 %v312
    %1609 = vmatpush.msra.mxu0 %v308
    %1610 = vmatpush.msra.mxu0 %v304
    %1611 = vmatpush.msra.mxu0 %v300
    %1612 = vmatpush.msra.mxu0 %v296
    %1613 = vmatpush.msra.mxu0 %v292
    %1614 = vmatpush.msra.mxu0 %v288
    %1615 = vmatpush.msra.mxu0 %v284
    %1616 = vmatpush.msra.mxu0 %v280
    %1617 = vmatpush.msra.mxu0 %v276
    %1618 = vmatpush.msra.mxu0 %v272
    %1619 = vmatpush.msra.mxu0 %v268
    %1620 = vmatpush.msra.mxu0 %v264
    %1621 = vmatpush.msra.mxu0 %v260
    %1622 = vmatpush.msra.mxu0 %v256
    %1623 = vmatmul.f32.gmra.mxu0 %v1424
    %v1624 = vpop.f32.mrf.mxu0
    %v1625 = vadd.f32 0.0, %v1624
    %1626 = vdwg.mxu0
    %1627 = vmatpush.msra.mxu0 %v317
    %1628 = vmatpush.msra.mxu0 %v313
    %1629 = vmatpush.msra.mxu0 %v309
    %1630 = vmatpush.msra.mxu0 %v305
    %1631 = vmatpush.msra.mxu0 %v301
    %1632 = vmatpush.msra.mxu0 %v297
    %1633 = vmatpush.msra.mxu0 %v293
    %1634 = vmatpush.msra.mxu0 %v289
    %1635 = vmatpush.msra.mxu0 %v285
    %1636 = vmatpush.msra.mxu0 %v281
    %1637 = vmatpush.msra.mxu0 %v277
    %1638 = vmatpush.msra.mxu0 %v273
    %1639 = vmatpush.msra.mxu0 %v269
    %1640 = vmatpush.msra.mxu0 %v265
    %1641 = vmatpush.msra.mxu0 %v261
    %1642 = vmatpush.msra.mxu0 %v257
    %1643 = vmatmul.f32.gmra.mxu0 %v1424
    %v1644 = vpop.f32.mrf.mxu0
    %v1645 = vadd.f32 0.0, %v1644
    %1646 = vdwg.mxu0
    %1647 = vmatpush.msra.mxu0 %v318
    %1648 = vmatpush.msra.mxu0 %v314
    %1649 = vmatpush.msra.mxu0 %v310
    %1650 = vmatpush.msra.mxu0 %v306
    %1651 = vmatpush.msra.mxu0 %v302
    %1652 = vmatpush.msra.mxu0 %v298
    %1653 = vmatpush.msra.mxu0 %v294
    %1654 = vmatpush.msra.mxu0 %v290
    %1655 = vmatpush.msra.mxu0 %v286
    %1656 = vmatpush.msra.mxu0 %v282
    %1657 = vmatpush.msra.mxu0 %v278
    %1658 = vmatpush.msra.mxu0 %v274
    %1659 = vmatpush.msra.mxu0 %v270
    %1660 = vmatpush.msra.mxu0 %v266
    %1661 = vmatpush.msra.mxu0 %v262
    %1662 = vmatpush.msra.mxu0 %v258
    %1663 = vmatmul.f32.gmra.mxu0 %v1424
    %v1664 = vpop.f32.mrf.mxu0
    %v1665 = vadd.f32 0.0, %v1664
    %1666 = vdwg.mxu0
    %1667 = vmatpush.msra.mxu0 %v319
    %1668 = vmatpush.msra.mxu0 %v315
    %1669 = vmatpush.msra.mxu0 %v311
    %1670 = vmatpush.msra.mxu0 %v307
    %1671 = vmatpush.msra.mxu0 %v303
    %1672 = vmatpush.msra.mxu0 %v299
    %1673 = vmatpush.msra.mxu0 %v295
    %1674 = vmatpush.msra.mxu0 %v291
    %1675 = vmatpush.msra.mxu0 %v287
    %1676 = vmatpush.msra.mxu0 %v283
    %1677 = vmatpush.msra.mxu0 %v279
    %1678 = vmatpush.msra.mxu0 %v275
    %1679 = vmatpush.msra.mxu0 %v271
    %1680 = vmatpush.msra.mxu0 %v267
    %1681 = vmatpush.msra.mxu0 %v263
    %1682 = vmatpush.msra.mxu0 %v259
    %1683 = vmatmul.f32.gmra.mxu0 %v1424
    %v1684 = vpop.f32.mrf.mxu0
    %v1685 = vadd.f32 0.0, %v1684
    %1686 = vdwg.mxu0
    %v1687 = vadd.f32 %v1545, %v1625
    %v1688 = vadd.f32 %v1565, %v1645
    %v1689 = vadd.f32 %v1585, %v1665
    %v1690 = vadd.f32 %v1605, %v1685
    %v1691 = vmul.f32 %v1687, 0.5
    %v1692 = vtanh.pop %v1691
    %v1693 = vmul.f32 %v1692, 0.5
    %v1694 = vadd.f32 %v1693, 0.5
    %v1695 = vmul.f32 %v1688, 0.5
    %v1696 = vtanh.pop %v1695
    %v1697 = vmul.f32 %v1696, 0.5
    %v1698 = vadd.f32 %v1697, 0.5
    %v1699 = vtanh.pop %v1689
    %v1700 = vmul.f32 %v1690, 0.5
    %v1701 = vtanh.pop %v1700
    %v1702 = vmul.f32 %v1701, 0.5
    %v1703 = vadd.f32 %v1702, 0.5
    %v1704 = vmul.f32 %v1698, %v1422
    %v1705 = vmul.f32 %v1694, %v1699
    %v1706 = vadd.f32 %v1704, %v1705
    %v1707 = vtanh.pop %v1706
    %v1708 = vmul.f32 %v1703, %v1707
    %1709 = vmatpush.msra.mxu0 %v187
    %1710 = vmatpush.msra.mxu0 %v183
    %1711 = vmatpush.msra.mxu0 %v179
    %1712 = vmatpush.msra.mxu0 %v175
    %1713 = vmatpush.msra.mxu0 %v171
    %1714 = vmatpush.msra.mxu0 %v167
    %1715 = vmatpush.msra.mxu0 %v163
    %1716 = vmatpush.msra.mxu0 %v159
    %1717 = vmatpush.msra.mxu0 %v155
    %1718 = vmatpush.msra.mxu0 %v151
    %1719 = vmatpush.msra.mxu0 %v147
    %1720 = vmatpush.msra.mxu0 %v143
    %1721 = vmatpush.msra.mxu0 %v139
    %1722 = vmatpush.msra.mxu0 %v135
    %1723 = vmatpush.msra.mxu0 %v131
    %1724 = vmatpush.msra.mxu0 %v127
    %1725 = vmatmul.f32.gmra.mxu0 %v1526
    %v1726 = vpop.f32.mrf.mxu0
    %v1727 = vadd.f32 0.0, %v1726
    %1728 = vdwg.mxu0
    %1729 = vmatpush.msra.mxu0 %v188
    %1730 = vmatpush.msra.mxu0 %v184
    %1731 = vmatpush.msra.mxu0 %v180
    %1732 = vmatpush.msra.mxu0 %v176
    %1733 = vmatpush.msra.mxu0 %v172
    %1734 = vmatpush.msra.mxu0 %v168
    %1735 = vmatpush.msra.mxu0 %v164
    %1736 = vmatpush.msra.mxu0 %v160
    %1737 = vmatpush.msra.mxu0 %v156
    %1738 = vmatpush.msra.mxu0 %v152
    %1739 = vmatpush.msra.mxu0 %v148
    %1740 = vmatpush.msra.mxu0 %v144
    %1741 = vmatpush.msra.mxu0 %v140
    %1742 = vmatpush.msra.mxu0 %v136
    %1743 = vmatpush.msra.mxu0 %v132
    %1744 = vmatpush.msra.mxu0 %v128
    %1745 = vmatmul.f32.gmra.mxu0 %v1526
    %v1746 = vpop.f32.mrf.mxu0
    %v1747 = vadd.f32 0.0, %v1746
    %1748 = vdwg.mxu0
    %1749 = vmatpush.msra.mxu0 %v189
    %1750 = vmatpush.msra.mxu0 %v185
    %1751 = vmatpush.msra.mxu0 %v181
    %1752 = vmatpush.msra.mxu0 %v177
    %1753 = vmatpush.msra.mxu0 %v173
    %1754 = vmatpush.msra.mxu0 %v169
    %1755 = vmatpush.msra.mxu0 %v165
    %1756 = vmatpush.msra.mxu0 %v161
    %1757 = vmatpush.msra.mxu0 %v157
    %1758 = vmatpush.msra.mxu0 %v153
    %1759 = vmatpush.msra.mxu0 %v149
    %1760 = vmatpush.msra.mxu0 %v145
    %1761 = vmatpush.msra.mxu0 %v141
    %1762 = vmatpush.msra.mxu0 %v137
    %1763 = vmatpush.msra.mxu0 %v133
    %1764 = vmatpush.msra.mxu0 %v129
    %1765 = vmatmul.f32.gmra.mxu0 %v1526
    %v1766 = vpop.f32.mrf.mxu0
    %v1767 = vadd.f32 0.0, %v1766
    %1768 = vdwg.mxu0
    %1769 = vmatpush.msra.mxu0 %v190
    %1770 = vmatpush.msra.mxu0 %v186
    %1771 = vmatpush.msra.mxu0 %v182
    %1772 = vmatpush.msra.mxu0 %v178
    %1773 = vmatpush.msra.mxu0 %v174
    %1774 = vmatpush.msra.mxu0 %v170
    %1775 = vmatpush.msra.mxu0 %v166
    %1776 = vmatpush.msra.mxu0 %v162
    %1777 = vmatpush.msra.mxu0 %v158
    %1778 = vmatpush.msra.mxu0 %v154
    %1779 = vmatpush.msra.mxu0 %v150
    %1780 = vmatpush.msra.mxu0 %v146
    %1781 = vmatpush.msra.mxu0 %v142
    %1782 = vmatpush.msra.mxu0 %v138
    %1783 = vmatpush.msra.mxu0 %v134
    %1784 = vmatpush.msra.mxu0 %v130
    %1785 = vmatmul.f32.gmra.mxu0 %v1526
    %v1786 = vpop.f32.mrf.mxu0
    %v1787 = vadd.f32 0.0, %v1786
    %1788 = vdwg.mxu0
    %v1789 = vadd.f32 %v636, %v1727
    %v1790 = vadd.f32 %v671, %v1747
    %v1791 = vadd.f32 %v706, %v1767
    %v1792 = vadd.f32 %v741, %v1787
    %v1793 = vmul.f32 %v1789, 0.5
    %v1794 = vtanh.pop %v1793
    %v1795 = vmul.f32 %v1794, 0.5
    %v1796 = vadd.f32 %v1795, 0.5
    %v1797 = vmul.f32 %v1790, 0.5
    %v1798 = vtanh.pop %v1797
    %v1799 = vmul.f32 %v1798, 0.5
    %v1800 = vadd.f32 %v1799, 0.5
    %v1801 = vtanh.pop %v1791
    %v1802 = vmul.f32 %v1792, 0.5
    %v1803 = vtanh.pop %v1802
    %v1804 = vmul.f32 %v1803, 0.5
    %v1805 = vadd.f32 %v1804, 0.5
    %v1806 = vmul.f32 %v1800, %v1524
    %v1807 = vmul.f32 %v1796, %v1801
    %v1808 = vadd.f32 %v1806, %v1807
    %v1809 = vtanh.pop %v1808
    %v1810 = vmul.f32 %v1805, %v1809
    %1811 = vmatpush.msra.mxu0 %v252
    %1812 = vmatpush.msra.mxu0 %v248
    %1813 = vmatpush.msra.mxu0 %v244
    %1814 = vmatpush.msra.mxu0 %v240
    %1815 = vmatpush.msra.mxu0 %v236
    %1816 = vmatpush.msra.mxu0 %v232
    %1817 = vmatpush.msra.mxu0 %v228
    %1818 = vmatpush.msra.mxu0 %v224
    %1819 = vmatpush.msra.mxu0 %v220
    %1820 = vmatpush.msra.mxu0 %v216
    %1821 = vmatpush.msra.mxu0 %v212
    %1822 = vmatpush.msra.mxu0 %v208
    %1823 = vmatpush.msra.mxu0 %v204
    %1824 = vmatpush.msra.mxu0 %v200
    %1825 = vmatpush.msra.mxu0 %v196
    %1826 = vmatpush.msra.mxu0 %v192
    %1827 = vmatmul.f32.gmra.mxu0 %v1526
    %v1828 = vpop.f32.mrf.mxu0
    %v1829 = vadd.f32 %v951, %v1828
    %1830 = vdwg.mxu0
    %1831 = vmatpush.msra.mxu0 %v253
    %1832 = vmatpush.msra.mxu0 %v249
    %1833 = vmatpush.msra.mxu0 %v245
    %1834 = vmatpush.msra.mxu0 %v241
    %1835 = vmatpush.msra.mxu0 %v237
    %1836 = vmatpush.msra.mxu0 %v233
    %1837 = vmatpush.msra.mxu0 %v229
    %1838 = vmatpush.msra.mxu0 %v225
    %1839 = vmatpush.msra.mxu0 %v221
    %1840 = vmatpush.msra.mxu0 %v217
    %1841 = vmatpush.msra.mxu0 %v213
    %1842 = vmatpush.msra.mxu0 %v209
    %1843 = vmatpush.msra.mxu0 %v205
    %1844 = vmatpush.msra.mxu0 %v201
    %1845 = vmatpush.msra.mxu0 %v197
    %1846 = vmatpush.msra.mxu0 %v193
    %1847 = vmatmul.f32.gmra.mxu0 %v1526
    %v1848 = vpop.f32.mrf.mxu0
    %v1849 = vadd.f32 %v952, %v1848
    %1850 = vdwg.mxu0
    %1851 = vmatpush.msra.mxu0 %v254
    %1852 = vmatpush.msra.mxu0 %v250
    %1853 = vmatpush.msra.mxu0 %v246
    %1854 = vmatpush.msra.mxu0 %v242
    %1855 = vmatpush.msra.mxu0 %v238
    %1856 = vmatpush.msra.mxu0 %v234
    %1857 = vmatpush.msra.mxu0 %v230
    %1858 = vmatpush.msra.mxu0 %v226
    %1859 = vmatpush.msra.mxu0 %v222
    %1860 = vmatpush.msra.mxu0 %v218
    %1861 = vmatpush.msra.mxu0 %v214
    %1862 = vmatpush.msra.mxu0 %v210
    %1863 = vmatpush.msra.mxu0 %v206
    %1864 = vmatpush.msra.mxu0 %v202
    %1865 = vmatpush.msra.mxu0 %v198
    %1866 = vmatpush.msra.mxu0 %v194
    %1867 = vmatmul.f32.gmra.mxu0 %v1526
    %v1868 = vpop.f32.mrf.mxu0
    %v1869 = vadd.f32 %v953, %v1868
    %1870 = vdwg.mxu0
    %1871 = vmatpush.msra.mxu0 %v255
    %1872 = vmatpush.msra.mxu0 %v251
    %1873 = vmatpush.msra.mxu0 %v247
    %1874 = vmatpush.msra.mxu0 %v243
    %1875 = vmatpush.msra.mxu0 %v239
    %1876 = vmatpush.msra.mxu0 %v235
    %1877 = vmatpush.msra.mxu0 %v231
    %1878 = vmatpush.msra.mxu0 %v227
    %1879 = vmatpush.msra.mxu0 %v223
    %1880 = vmatpush.msra.mxu0 %v219
    %1881 = vmatpush.msra.mxu0 %v215
    %1882 = vmatpush.msra.mxu0 %v211
    %1883 = vmatpush.msra.mxu0 %v207
    %1884 = vmatpush.msra.mxu0 %v203
    %1885 = vmatpush.msra.mxu0 %v199
    %1886 = vmatpush.msra.mxu0 %v195
    %1887 = vmatmul.f32.gmra.mxu0 %v1526
    %v1888 = vpop.f32.mrf.mxu0
    %v1889 = vadd.f32 %v954, %v1888
    %1890 = vdwg.mxu0
    %1891 = vmatpush.msra.mxu0 %v316
    %1892 = vmatpush.msra.mxu0 %v312
    %1893 = vmatpush.msra.mxu0 %v308
    %1894 = vmatpush.msra.mxu0 %v304
    %1895 = vmatpush.msra.mxu0 %v300
    %1896 = vmatpush.msra.mxu0 %v296
    %1897 = vmatpush.msra.mxu0 %v292
    %1898 = vmatpush.msra.mxu0 %v288
    %1899 = vmatpush.msra.mxu0 %v284
    %1900 = vmatpush.msra.mxu0 %v280
    %1901 = vmatpush.msra.mxu0 %v276
    %1902 = vmatpush.msra.mxu0 %v272
    %1903 = vmatpush.msra.mxu0 %v268
    %1904 = vmatpush.msra.mxu0 %v264
    %1905 = vmatpush.msra.mxu0 %v260
    %1906 = vmatpush.msra.mxu0 %v256
    %1907 = vmatmul.f32.gmra.mxu0 %v1708
    %v1908 = vpop.f32.mrf.mxu0
    %v1909 = vadd.f32 0.0, %v1908
    %1910 = vdwg.mxu0
    %1911 = vmatpush.msra.mxu0 %v317
    %1912 = vmatpush.msra.mxu0 %v313
    %1913 = vmatpush.msra.mxu0 %v309
    %1914 = vmatpush.msra.mxu0 %v305
    %1915 = vmatpush.msra.mxu0 %v301
    %1916 = vmatpush.msra.mxu0 %v297
    %1917 = vmatpush.msra.mxu0 %v293
    %1918 = vmatpush.msra.mxu0 %v289
    %1919 = vmatpush.msra.mxu0 %v285
    %1920 = vmatpush.msra.mxu0 %v281
    %1921 = vmatpush.msra.mxu0 %v277
    %1922 = vmatpush.msra.mxu0 %v273
    %1923 = vmatpush.msra.mxu0 %v269
    %1924 = vmatpush.msra.mxu0 %v265
    %1925 = vmatpush.msra.mxu0 %v261
    %1926 = vmatpush.msra.mxu0 %v257
    %1927 = vmatmul.f32.gmra.mxu0 %v1708
    %v1928 = vpop.f32.mrf.mxu0
    %v1929 = vadd.f32 0.0, %v1928
    %1930 = vdwg.mxu0
    %1931 = vmatpush.msra.mxu0 %v318
    %1932 = vmatpush.msra.mxu0 %v314
    %1933 = vmatpush.msra.mxu0 %v310
    %1934 = vmatpush.msra.mxu0 %v306
    %1935 = vmatpush.msra.mxu0 %v302
    %1936 = vmatpush.msra.mxu0 %v298
    %1937 = vmatpush.msra.mxu0 %v294
    %1938 = vmatpush.msra.mxu0 %v290
    %1939 = vmatpush.msra.mxu0 %v286
    %1940 = vmatpush.msra.mxu0 %v282
    %1941 = vmatpush.msra.mxu0 %v278
    %1942 = vmatpush.msra.mxu0 %v274
    %1943 = vmatpush.msra.mxu0 %v270
    %1944 = vmatpush.msra.mxu0 %v266
    %1945 = vmatpush.msra.mxu0 %v262
    %1946 = vmatpush.msra.mxu0 %v258
    %1947 = vmatmul.f32.gmra.mxu0 %v1708
    %v1948 = vpop.f32.mrf.mxu0
    %v1949 = vadd.f32 0.0, %v1948
    %1950 = vdwg.mxu0
    %1951 = vmatpush.msra.mxu0 %v319
    %1952 = vmatpush.msra.mxu0 %v315
    %1953 = vmatpush.msra.mxu0 %v311
    %1954 = vmatpush.msra.mxu0 %v307
    %1955 = vmatpush.msra.mxu0 %v303
    %1956 = vmatpush.msra.mxu0 %v299
    %1957 = vmatpush.msra.mxu0 %v295
    %1958 = vmatpush.msra.mxu0 %v291
    %1959 = vmatpush.msra.mxu0 %v287
    %1960 = vmatpush.msra.mxu0 %v283
    %1961 = vmatpush.msra.mxu0 %v279
    %1962 = vmatpush.msra.mxu0 %v275
    %1963 = vmatpush.msra.mxu0 %v271
    %1964 = vmatpush.msra.mxu0 %v267
    %1965 = vmatpush.msra.mxu0 %v263
    %1966 = vmatpush.msra.mxu0 %v259
    %1967 = vmatmul.f32.gmra.mxu0 %v1708
    %v1968 = vpop.f32.mrf.mxu0
    %v1969 = vadd.f32 0.0, %v1968
    %1970 = vdwg.mxu0
    %v1971 = vadd.f32 %v1829, %v1909
    %v1972 = vadd.f32 %v1849, %v1929
    %v1973 = vadd.f32 %v1869, %v1949
    %v1974 = vadd.f32 %v1889, %v1969
    %v1975 = vmul.f32 %v1971, 0.5
    %v1976 = vtanh.pop %v1975
    %v1977 = vmul.f32 %v1976, 0.5
    %v1978 = vadd.f32 %v1977, 0.5
    %v1979 = vmul.f32 %v1972, 0.5
    %v1980 = vtanh.pop %v1979
    %v1981 = vmul.f32 %v1980, 0.5
    %v1982 = vadd.f32 %v1981, 0.5
    %v1983 = vtanh.pop %v1973
    %v1984 = vmul.f32 %v1974, 0.5
    %v1985 = vtanh.pop %v1984
    %v1986 = vmul.f32 %v1985, 0.5
    %v1987 = vadd.f32 %v1986, 0.5
    %v1988 = vmul.f32 %v1982, %v1706
    %v1989 = vmul.f32 %v1978, %v1983
    %v1990 = vadd.f32 %v1988, %v1989
    %v1991 = vtanh.pop %v1990
    %v1992 = vmul.f32 %v1987, %v1991
    %1993 = vmatpush.msra.mxu0 %v187
    %1994 = vmatpush.msra.mxu0 %v183
    %1995 = vmatpush.msra.mxu0 %v179
    %1996 = vmatpush.msra.mxu0 %v175
    %1997 = vmatpush.msra.mxu0 %v171
    %1998 = vmatpush.msra.mxu0 %v167
    %1999 = vmatpush.msra.mxu0 %v163
    %2000 = vmatpush.msra.mxu0 %v159
    %2001 = vmatpush.msra.mxu0 %v155
    %2002 = vmatpush.msra.mxu0 %v151
    %2003 = vmatpush.msra.mxu0 %v147
    %2004 = vmatpush.msra.mxu0 %v143
    %2005 = vmatpush.msra.mxu0 %v139
    %2006 = vmatpush.msra.mxu0 %v135
    %2007 = vmatpush.msra.mxu0 %v131
    %2008 = vmatpush.msra.mxu0 %v127
    %2009 = vmatmul.f32.gmra.mxu0 %v1810
    %v2010 = vpop.f32.mrf.mxu0
    %v2011 = vadd.f32 0.0, %v2010
    %2012 = vdwg.mxu0
    %2013 = vmatpush.msra.mxu0 %v188
    %2014 = vmatpush.msra.mxu0 %v184
    %2015 = vmatpush.msra.mxu0 %v180
    %2016 = vmatpush.msra.mxu0 %v176
    %2017 = vmatpush.msra.mxu0 %v172
    %2018 = vmatpush.msra.mxu0 %v168
    %2019 = vmatpush.msra.mxu0 %v164
    %2020 = vmatpush.msra.mxu0 %v160
    %2021 = vmatpush.msra.mxu0 %v156
    %2022 = vmatpush.msra.mxu0 %v152
    %2023 = vmatpush.msra.mxu0 %v148
    %2024 = vmatpush.msra.mxu0 %v144
    %2025 = vmatpush.msra.mxu0 %v140
    %2026 = vmatpush.msra.mxu0 %v136
    %2027 = vmatpush.msra.mxu0 %v132
    %2028 = vmatpush.msra.mxu0 %v128
    %2029 = vmatmul.f32.gmra.mxu0 %v1810
    %v2030 = vpop.f32.mrf.mxu0
    %v2031 = vadd.f32 0.0, %v2030
    %2032 = vdwg.mxu0
    %2033 = vmatpush.msra.mxu0 %v189
    %2034 = vmatpush.msra.mxu0 %v185
    %2035 = vmatpush.msra.mxu0 %v181
    %2036 = vmatpush.msra.mxu0 %v177
    %2037 = vmatpush.msra.mxu0 %v173
    %2038 = vmatpush.msra.mxu0 %v169
    %2039 = vmatpush.msra.mxu0 %v165
    %2040 = vmatpush.msra.mxu0 %v161
    %2041 = vmatpush.msra.mxu0 %v157
    %2042 = vmatpush.msra.mxu0 %v153
    %2043 = vmatpush.msra.mxu0 %v149
    %2044 = vmatpush.msra.mxu0 %v145
    %2045 = vmatpush.msra.mxu0 %v141
    %2046 = vmatpush.msra.mxu0 %v137
    %2047 = vmatpush.msra.mxu0 %v133
    %2048 = vmatpush.msra.mxu0 %v129
    %2049 = vmatmul.f32.gmra.mxu0 %v1810
    %v2050 = vpop.f32.mrf.mxu0
    %v2051 = vadd.f32 0.0, %v2050
    %2052 = vdwg.mxu0
    %2053 = vmatpush.msra.mxu0 %v190
    %2054 = vmatpush.msra.mxu0 %v186
    %2055 = vmatpush.msra.mxu0 %v182
    %2056 = vmatpush.msra.mxu0 %v178
    %2057 = vmatpush.msra.mxu0 %v174
    %2058 = vmatpush.msra.mxu0 %v170
    %2059 = vmatpush.msra.mxu0 %v166
    %2060 = vmatpush.msra.mxu0 %v162
    %2061 = vmatpush.msra.mxu0 %v158
    %2062 = vmatpush.msra.mxu0 %v154
    %2063 = vmatpush.msra.mxu0 %v150
    %2064 = vmatpush.msra.mxu0 %v146
    %2065 = vmatpush.msra.mxu0 %v142
    %2066 = vmatpush.msra.mxu0 %v138
    %2067 = vmatpush.msra.mxu0 %v134
    %2068 = vmatpush.msra.mxu0 %v130
    %2069 = vmatmul.f32.gmra.mxu0 %v1810
    %v2070 = vpop.f32.mrf.mxu0
    %v2071 = vadd.f32 0.0, %v2070
    %2072 = vdwg.mxu0
    %v2073 = vadd.f32 %v639, %v2011
    %v2074 = vadd.f32 %v674, %v2031
    %v2075 = vadd.f32 %v709, %v2051
    %v2076 = vadd.f32 %v744, %v2071
    %v2077 = vmul.f32 %v2073, 0.5
    %v2078 = vtanh.pop %v2077
    %v2079 = vmul.f32 %v2078, 0.5
    %v2080 = vadd.f32 %v2079, 0.5
    %v2081 = vmul.f32 %v2074, 0.5
    %v2082 = vtanh.pop %v2081
    %v2083 = vmul.f32 %v2082, 0.5
    %v2084 = vadd.f32 %v2083, 0.5
    %v2085 = vtanh.pop %v2075
    %v2086 = vmul.f32 %v2076, 0.5
    %v2087 = vtanh.pop %v2086
    %v2088 = vmul.f32 %v2087, 0.5
    %v2089 = vadd.f32 %v2088, 0.5
    %v2090 = vmul.f32 %v2084, %v1808
    %v2091 = vmul.f32 %v2080, %v2085
    %v2092 = vadd.f32 %v2090, %v2091
    %v2093 = vtanh.pop %v2092
    %v2094 = vmul.f32 %v2089, %v2093
    %2095 = vmatpush.msra.mxu0 %v252
    %2096 = vmatpush.msra.mxu0 %v248
    %2097 = vmatpush.msra.mxu0 %v244
    %2098 = vmatpush.msra.mxu0 %v240
    %2099 = vmatpush.msra.mxu0 %v236
    %2100 = vmatpush.msra.mxu0 %v232
    %2101 = vmatpush.msra.mxu0 %v228
    %2102 = vmatpush.msra.mxu0 %v224
    %2103 = vmatpush.msra.mxu0 %v220
    %2104 = vmatpush.msra.mxu0 %v216
    %2105 = vmatpush.msra.mxu0 %v212
    %2106 = vmatpush.msra.mxu0 %v208
    %2107 = vmatpush.msra.mxu0 %v204
    %2108 = vmatpush.msra.mxu0 %v200
    %2109 = vmatpush.msra.mxu0 %v196
    %2110 = vmatpush.msra.mxu0 %v192
    %2111 = vmatmul.f32.gmra.mxu0 %v1810
    %v2112 = vpop.f32.mrf.mxu0
    %v2113 = vadd.f32 %v951, %v2112
    %2114 = vdwg.mxu0
    %2115 = vmatpush.msra.mxu0 %v253
    %2116 = vmatpush.msra.mxu0 %v249
    %2117 = vmatpush.msra.mxu0 %v245
    %2118 = vmatpush.msra.mxu0 %v241
    %2119 = vmatpush.msra.mxu0 %v237
    %2120 = vmatpush.msra.mxu0 %v233
    %2121 = vmatpush.msra.mxu0 %v229
    %2122 = vmatpush.msra.mxu0 %v225
    %2123 = vmatpush.msra.mxu0 %v221
    %2124 = vmatpush.msra.mxu0 %v217
    %2125 = vmatpush.msra.mxu0 %v213
    %2126 = vmatpush.msra.mxu0 %v209
    %2127 = vmatpush.msra.mxu0 %v205
    %2128 = vmatpush.msra.mxu0 %v201
    %2129 = vmatpush.msra.mxu0 %v197
    %2130 = vmatpush.msra.mxu0 %v193
    %2131 = vmatmul.f32.gmra.mxu0 %v1810
    %v2132 = vpop.f32.mrf.mxu0
    %v2133 = vadd.f32 %v952, %v2132
    %2134 = vdwg.mxu0
    %2135 = vmatpush.msra.mxu0 %v254
    %2136 = vmatpush.msra.mxu0 %v250
    %2137 = vmatpush.msra.mxu0 %v246
    %2138 = vmatpush.msra.mxu0 %v242
    %2139 = vmatpush.msra.mxu0 %v238
    %2140 = vmatpush.msra.mxu0 %v234
    %2141 = vmatpush.msra.mxu0 %v230
    %2142 = vmatpush.msra.mxu0 %v226
    %2143 = vmatpush.msra.mxu0 %v222
    %2144 = vmatpush.msra.mxu0 %v218
    %2145 = vmatpush.msra.mxu0 %v214
    %2146 = vmatpush.msra.mxu0 %v210
    %2147 = vmatpush.msra.mxu0 %v206
    %2148 = vmatpush.msra.mxu0 %v202
    %2149 = vmatpush.msra.mxu0 %v198
    %2150 = vmatpush.msra.mxu0 %v194
    %2151 = vmatmul.f32.gmra.mxu0 %v1810
    %v2152 = vpop.f32.mrf.mxu0
    %v2153 = vadd.f32 %v953, %v2152
    %2154 = vdwg.mxu0
    %2155 = vmatpush.msra.mxu0 %v255
    %2156 = vmatpush.msra.mxu0 %v251
    %2157 = vmatpush.msra.mxu0 %v247
    %2158 = vmatpush.msra.mxu0 %v243
    %2159 = vmatpush.msra.mxu0 %v239
    %2160 = vmatpush.msra.mxu0 %v235
    %2161 = vmatpush.msra.mxu0 %v231
    %2162 = vmatpush.msra.mxu0 %v227
    %2163 = vmatpush.msra.mxu0 %v223
    %2164 = vmatpush.msra.mxu0 %v219
    %2165 = vmatpush.msra.mxu0 %v215
    %2166 = vmatpush.msra.mxu0 %v211
    %2167 = vmatpush.msra.mxu0 %v207
    %2168 = vmatpush.msra.mxu0 %v203
    %2169 = vmatpush.msra.mxu0 %v199
    %2170 = vmatpush.msra.mxu0 %v195
    %2171 = vmatmul.f32.gmra.mxu0 %v1810
    %v2172 = vpop.f32.mrf.mxu0
    %v2173 = vadd.f32 %v954, %v2172
    %2174 = vdwg.mxu0
    %2175 = vmatpush.msra.mxu0 %v316
    %2176 = vmatpush.msra.mxu0 %v312
    %2177 = vmatpush.msra.mxu0 %v308
    %2178 = vmatpush.msra.mxu0 %v304
    %2179 = vmatpush.msra.mxu0 %v300
    %2180 = vmatpush.msra.mxu0 %v296
    %2181 = vmatpush.msra.mxu0 %v292
    %2182 = vmatpush.msra.mxu0 %v288
    %2183 = vmatpush.msra.mxu0 %v284
    %2184 = vmatpush.msra.mxu0 %v280
    %2185 = vmatpush.msra.mxu0 %v276
    %2186 = vmatpush.msra.mxu0 %v272
    %2187 = vmatpush.msra.mxu0 %v268
    %2188 = vmatpush.msra.mxu0 %v264
    %2189 = vmatpush.msra.mxu0 %v260
    %2190 = vmatpush.msra.mxu0 %v256
    %2191 = vmatmul.f32.gmra.mxu0 %v1992
    %v2192 = vpop.f32.mrf.mxu0
    %v2193 = vadd.f32 0.0, %v2192
    %2194 = vdwg.mxu0
    %2195 = vmatpush.msra.mxu0 %v317
    %2196 = vmatpush.msra.mxu0 %v313
    %2197 = vmatpush.msra.mxu0 %v309
    %2198 = vmatpush.msra.mxu0 %v305
    %2199 = vmatpush.msra.mxu0 %v301
    %2200 = vmatpush.msra.mxu0 %v297
    %2201 = vmatpush.msra.mxu0 %v293
    %2202 = vmatpush.msra.mxu0 %v289
    %2203 = vmatpush.msra.mxu0 %v285
    %2204 = vmatpush.msra.mxu0 %v281
    %2205 = vmatpush.msra.mxu0 %v277
    %2206 = vmatpush.msra.mxu0 %v273
    %2207 = vmatpush.msra.mxu0 %v269
    %2208 = vmatpush.msra.mxu0 %v265
    %2209 = vmatpush.msra.mxu0 %v261
    %2210 = vmatpush.msra.mxu0 %v257
    %2211 = vmatmul.f32.gmra.mxu0 %v1992
    %v2212 = vpop.f32.mrf.mxu0
    %v2213 = vadd.f32 0.0, %v2212
    %2214 = vdwg.mxu0
    %2215 = vmatpush.msra.mxu0 %v318
    %2216 = vmatpush.msra.mxu0 %v314
    %2217 = vmatpush.msra.mxu0 %v310
    %2218 = vmatpush.msra.mxu0 %v306
    %2219 = vmatpush.msra.mxu0 %v302
    %2220 = vmatpush.msra.mxu0 %v298
    %2221 = vmatpush.msra.mxu0 %v294
    %2222 = vmatpush.msra.mxu0 %v290
    %2223 = vmatpush.msra.mxu0 %v286
    %2224 = vmatpush.msra.mxu0 %v282
    %2225 = vmatpush.msra.mxu0 %v278
    %2226 = vmatpush.msra.mxu0 %v274
    %2227 = vmatpush.msra.mxu0 %v270
    %2228 = vmatpush.msra.mxu0 %v266
    %2229 = vmatpush.msra.mxu0 %v262
    %2230 = vmatpush.msra.mxu0 %v258
    %2231 = vmatmul.f32.gmra.mxu0 %v1992
    %v2232 = vpop.f32.mrf.mxu0
    %v2233 = vadd.f32 0.0, %v2232
    %2234 = vdwg.mxu0
    %2235 = vmatpush.msra.mxu0 %v319
    %2236 = vmatpush.msra.mxu0 %v315
    %2237 = vmatpush.msra.mxu0 %v311
    %2238 = vmatpush.msra.mxu0 %v307
    %2239 = vmatpush.msra.mxu0 %v303
    %2240 = vmatpush.msra.mxu0 %v299
    %2241 = vmatpush.msra.mxu0 %v295
    %2242 = vmatpush.msra.mxu0 %v291
    %2243 = vmatpush.msra.mxu0 %v287
    %2244 = vmatpush.msra.mxu0 %v283
    %2245 = vmatpush.msra.mxu0 %v279
    %2246 = vmatpush.msra.mxu0 %v275
    %2247 = vmatpush.msra.mxu0 %v271
    %2248 = vmatpush.msra.mxu0 %v267
    %2249 = vmatpush.msra.mxu0 %v263
    %2250 = vmatpush.msra.mxu0 %v259
    %2251 = vmatmul.f32.gmra.mxu0 %v1992
    %v2252 = vpop.f32.mrf.mxu0
    %v2253 = vadd.f32 0.0, %v2252
    %2254 = vdwg.mxu0
    %v2255 = vadd.f32 %v2113, %v2193
    %v2256 = vadd.f32 %v2133, %v2213
    %v2257 = vadd.f32 %v2153, %v2233
    %v2258 = vadd.f32 %v2173, %v2253
    %v2259 = vmul.f32 %v2255, 0.5
    %v2260 = vtanh.pop %v2259
    %v2261 = vmul.f32 %v2260, 0.5
    %v2262 = vadd.f32 %v2261, 0.5
    %v2263 = vmul.f32 %v2256, 0.5
    %v2264 = vtanh.pop %v2263
    %v2265 = vmul.f32 %v2264, 0.5
    %v2266 = vadd.f32 %v2265, 0.5
    %v2267 = vtanh.pop %v2257
    %v2268 = vmul.f32 %v2258, 0.5
    %v2269 = vtanh.pop %v2268
    %v2270 = vmul.f32 %v2269, 0.5
    %v2271 = vadd.f32 %v2270, 0.5
    %v2272 = vmul.f32 %v2266, %v1990
    %v2273 = vmul.f32 %v2262, %v2267
    %v2274 = vadd.f32 %v2272, %v2273
    %v2275 = vtanh.pop %v2274
    %v2276 = vmul.f32 %v2271, %v2275
    %2277 = vmatpush.msra.mxu0 %v252
    %2278 = vmatpush.msra.mxu0 %v248
    %2279 = vmatpush.msra.mxu0 %v244
    %2280 = vmatpush.msra.mxu0 %v240
    %2281 = vmatpush.msra.mxu0 %v236
    %2282 = vmatpush.msra.mxu0 %v232
    %2283 = vmatpush.msra.mxu0 %v228
    %2284 = vmatpush.msra.mxu0 %v224
    %2285 = vmatpush.msra.mxu0 %v220
    %2286 = vmatpush.msra.mxu0 %v216
    %2287 = vmatpush.msra.mxu0 %v212
    %2288 = vmatpush.msra.mxu0 %v208
    %2289 = vmatpush.msra.mxu0 %v204
    %2290 = vmatpush.msra.mxu0 %v200
    %2291 = vmatpush.msra.mxu0 %v196
    %2292 = vmatpush.msra.mxu0 %v192
    %2293 = vmatmul.f32.gmra.mxu0 %v2094
    %v2294 = vpop.f32.mrf.mxu0
    %v2295 = vadd.f32 %v951, %v2294
    %2296 = vdwg.mxu0
    %2297 = vmatpush.msra.mxu0 %v253
    %2298 = vmatpush.msra.mxu0 %v249
    %2299 = vmatpush.msra.mxu0 %v245
    %2300 = vmatpush.msra.mxu0 %v241
    %2301 = vmatpush.msra.mxu0 %v237
    %2302 = vmatpush.msra.mxu0 %v233
    %2303 = vmatpush.msra.mxu0 %v229
    %2304 = vmatpush.msra.mxu0 %v225
    %2305 = vmatpush.msra.mxu0 %v221
    %2306 = vmatpush.msra.mxu0 %v217
    %2307 = vmatpush.msra.mxu0 %v213
    %2308 = vmatpush.msra.mxu0 %v209
    %2309 = vmatpush.msra.mxu0 %v205
    %2310 = vmatpush.msra.mxu0 %v201
    %2311 = vmatpush.msra.mxu0 %v197
    %2312 = vmatpush.msra.mxu0 %v193
    %2313 = vmatmul.f32.gmra.mxu0 %v2094
    %v2314 = vpop.f32.mrf.mxu0
    %v2315 = vadd.f32 %v952, %v2314
    %2316 = vdwg.mxu0
    %2317 = vmatpush.msra.mxu0 %v254
    %2318 = vmatpush.msra.mxu0 %v250
    %2319 = vmatpush.msra.mxu0 %v246
    %2320 = vmatpush.msra.mxu0 %v242
    %2321 = vmatpush.msra.mxu0 %v238
    %2322 = vmatpush.msra.mxu0 %v234
    %2323 = vmatpush.msra.mxu0 %v230
    %2324 = vmatpush.msra.mxu0 %v226
    %2325 = vmatpush.msra.mxu0 %v222
    %2326 = vmatpush.msra.mxu0 %v218
    %2327 = vmatpush.msra.mxu0 %v214
    %2328 = vmatpush.msra.mxu0 %v210
    %2329 = vmatpush.msra.mxu0 %v206
    %2330 = vmatpush.msra.mxu0 %v202
    %2331 = vmatpush.msra.mxu0 %v198
    %2332 = vmatpush.msra.mxu0 %v194
    %2333 = vmatmul.f32.gmra.mxu0 %v2094
    %v2334 = vpop.f32.mrf.mxu0
    %v2335 = vadd.f32 %v953, %v2334
    %2336 = vdwg.mxu0
    %2337 = vmatpush.msra.mxu0 %v255
    %2338 = vmatpush.msra.mxu0 %v251
    %2339 = vmatpush.msra.mxu0 %v247
    %2340 = vmatpush.msra.mxu0 %v243
    %2341 = vmatpush.msra.mxu0 %v239
    %2342 = vmatpush.msra.mxu0 %v235
    %2343 = vmatpush.msra.mxu0 %v231
    %2344 = vmatpush.msra.mxu0 %v227
    %2345 = vmatpush.msra.mxu0 %v223
    %2346 = vmatpush.msra.mxu0 %v219
    %2347 = vmatpush.msra.mxu0 %v215
    %2348 = vmatpush.msra.mxu0 %v211
    %2349 = vmatpush.msra.mxu0 %v207
    %2350 = vmatpush.msra.mxu0 %v203
    %2351 = vmatpush.msra.mxu0 %v199
    %2352 = vmatpush.msra.mxu0 %v195
    %2353 = vmatmul.f32.gmra.mxu0 %v2094
    %v2354 = vpop.f32.mrf.mxu0
    %v2355 = vadd.f32 %v954, %v2354
    %2356 = vdwg.mxu0
    %2357 = vmatpush.msra.mxu0 %v316
    %2358 = vmatpush.msra.mxu0 %v312
    %2359 = vmatpush.msra.mxu0 %v308
    %2360 = vmatpush.msra.mxu0 %v304
    %2361 = vmatpush.msra.mxu0 %v300
    %2362 = vmatpush.msra.mxu0 %v296
    %2363 = vmatpush.msra.mxu0 %v292
    %2364 = vmatpush.msra.mxu0 %v288
    %2365 = vmatpush.msra.mxu0 %v284
    %2366 = vmatpush.msra.mxu0 %v280
    %2367 = vmatpush.msra.mxu0 %v276
    %2368 = vmatpush.msra.mxu0 %v272
    %2369 = vmatpush.msra.mxu0 %v268
    %2370 = vmatpush.msra.mxu0 %v264
    %2371 = vmatpush.msra.mxu0 %v260
    %2372 = vmatpush.msra.mxu0 %v256
    %2373 = vmatmul.f32.gmra.mxu0 %v2276
    %v2374 = vpop.f32.mrf.mxu0
    %v2375 = vadd.f32 0.0, %v2374
    %2376 = vdwg.mxu0
    %2377 = vmatpush.msra.mxu0 %v317
    %2378 = vmatpush.msra.mxu0 %v313
    %2379 = vmatpush.msra.mxu0 %v309
    %2380 = vmatpush.msra.mxu0 %v305
    %2381 = vmatpush.msra.mxu0 %v301
    %2382 = vmatpush.msra.mxu0 %v297
    %2383 = vmatpush.msra.mxu0 %v293
    %2384 = vmatpush.msra.mxu0 %v289
    %2385 = vmatpush.msra.mxu0 %v285
    %2386 = vmatpush.msra.mxu0 %v281
    %2387 = vmatpush.msra.mxu0 %v277
    %2388 = vmatpush.msra.mxu0 %v273
    %2389 = vmatpush.msra.mxu0 %v269
    %2390 = vmatpush.msra.mxu0 %v265
    %2391 = vmatpush.msra.mxu0 %v261
    %2392 = vmatpush.msra.mxu0 %v257
    %2393 = vmatmul.f32.gmra.mxu0 %v2276
    %v2394 = vpop.f32.mrf.mxu0
    %v2395 = vadd.f32 0.0, %v2394
    %2396 = vdwg.mxu0
    %2397 = vmatpush.msra.mxu0 %v318
    %2398 = vmatpush.msra.mxu0 %v314
    %2399 = vmatpush.msra.mxu0 %v310
    %2400 = vmatpush.msra.mxu0 %v306
    %2401 = vmatpush.msra.mxu0 %v302
    %2402 = vmatpush.msra.mxu0 %v298
    %2403 = vmatpush.msra.mxu0 %v294
    %2404 = vmatpush.msra.mxu0 %v290
    %2405 = vmatpush.msra.mxu0 %v286
    %2406 = vmatpush.msra.mxu0 %v282
    %2407 = vmatpush.msra.mxu0 %v278
    %2408 = vmatpush.msra.mxu0 %v274
    %2409 = vmatpush.msra.mxu0 %v270
    %2410 = vmatpush.msra.mxu0 %v266
    %2411 = vmatpush.msra.mxu0 %v262
    %2412 = vmatpush.msra.mxu0 %v258
    %2413 = vmatmul.f32.gmra.mxu0 %v2276
    %v2414 = vpop.f32.mrf.mxu0
    %v2415 = vadd.f32 0.0, %v2414
    %2416 = vdwg.mxu0
    %2417 = vmatpush.msra.mxu0 %v319
    %2418 = vmatpush.msra.mxu0 %v315
    %2419 = vmatpush.msra.mxu0 %v311
    %2420 = vmatpush.msra.mxu0 %v307
    %2421 = vmatpush.msra.mxu0 %v303
    %2422 = vmatpush.msra.mxu0 %v299
    %2423 = vmatpush.msra.mxu0 %v295
    %2424 = vmatpush.msra.mxu0 %v291
    %2425 = vmatpush.msra.mxu0 %v287
    %2426 = vmatpush.msra.mxu0 %v283
    %2427 = vmatpush.msra.mxu0 %v279
    %2428 = vmatpush.msra.mxu0 %v275
    %2429 = vmatpush.msra.mxu0 %v271
    %2430 = vmatpush.msra.mxu0 %v267
    %2431 = vmatpush.msra.mxu0 %v263
    %2432 = vmatpush.msra.mxu0 %v259
    %2433 = vmatmul.f32.gmra.mxu0 %v2276
    %v2434 = vpop.f32.mrf.mxu0
    %v2435 = vadd.f32 0.0, %v2434
    %2436 = vdwg.mxu0
    %v2437 = vadd.f32 %v2295, %v2375
    %v2438 = vadd.f32 %v2315, %v2395
    %v2439 = vadd.f32 %v2335, %v2415
    %v2440 = vadd.f32 %v2355, %v2435
    %v2441 = vmul.f32 %v2437, 0.5
    %v2442 = vtanh.pop %v2441
    %v2443 = vmul.f32 %v2442, 0.5
    %v2444 = vadd.f32 %v2443, 0.5
    %v2445 = vmul.f32 %v2438, 0.5
    %v2446 = vtanh.pop %v2445
    %v2447 = vmul.f32 %v2446, 0.5
    %v2448 = vadd.f32 %v2447, 0.5
    %v2449 = vtanh.pop %v2439
    %v2450 = vmul.f32 %v2440, 0.5
    %v2451 = vtanh.pop %v2450
    %v2452 = vmul.f32 %v2451, 0.5
    %v2453 = vadd.f32 %v2452, 0.5
    %v2454 = vmul.f32 %v2448, %v2274
    %v2455 = vmul.f32 %v2444, %v2449
    %v2456 = vadd.f32 %v2454, %v2455
    %v2457 = vtanh.pop %v2456
    %v2458 = vmul.f32 %v2453, %v2457
    %2459 = vadd.xlane.f32.xlu0 %v2458
    %v2460 = vpop.xlane.xlu0 %2459
    %v2461 = vrot.slane %v2460, 4
    %v2462 = vadd.f32 %v2460, %v2461
    %v2463 = vrot.slane %v2462, 2
    %v2464 = vadd.f32 %v2462, %v2463
    %v2465 = vrot.slane %v2464, 1
    %v2466 = vadd.f32 %v2464, %v2465
    %s2467 = vtos %v2466
    %v2468 = vstv %s2467
    %v2469 = vmul.f32 %v2468, 0.00625
    %v2470 = vmul.f32 %v2458, %v2458
    %2471 = vadd.xlane.f32.xlu0 %v2470
    %v2472 = vpop.xlane.xlu0 %2471
    %v2473 = vrot.slane %v2472, 4
    %v2474 = vadd.f32 %v2472, %v2473
    %v2475 = vrot.slane %v2474, 2
    %v2476 = vadd.f32 %v2474, %v2475
    %v2477 = vrot.slane %v2476, 1
    %v2478 = vadd.f32 %v2476, %v2477
    %s2479 = vtos %v2478
    %v2480 = vstv %s2479
    %v2481 = vmul.f32 %v2480, 0.00625
    %v2482 = vmul.f32 %v2469, %v2469
    %v2483 = vsub.f32 %v2481, %v2482
    %v2484 = vadd.f32 %v2483, 1e-05
    %v2485 = vrsqrt.pop %v2484
    %v2486 = vmul.f32 %v2485, %v2484
    %v2487 = vmul.f32 %v2486, %v2485
    %v2488 = vmul.f32 0.5, %v2487
    %v2489 = vsub.f32 1.5, %v2488
    %v2490 = vmul.f32 %v2485, %v2489
    %vm2491 = vweird.f32 %v2484
    %vm2492 = vweird.f32 %v2485
    %vm2493 = vmor %vm2491, %vm2492
    %v2494 = vsel %vm2493, %v2485, %v2490
    %v2495 = vmul.f32 %v589, %v2494
    %v2496 = vsub.f32 %v2458, %v2469
    %v2497 = vmul.f32 %v2496, %v2495
    %v2498 = vadd.f32 %v2497, %v593
    %v2499 = vld [vmem:[%s9] sm:$0xff]
    %v2500 = vld [vmem:[%s9 + $0x8] sm:$0xff]
    %v2501 = vld [vmem:[%s9 + $0x10] sm:$0xff]
    %v2502 = vld [vmem:[%s9 + $0x18] sm:$0xff]
    %v2503 = vld [vmem:[%s9 + $0x20] sm:$0xff]
    %v2504 = vld [vmem:[%s9 + $0x28] sm:$0xff]
    %v2505 = vld [vmem:[%s9 + $0x30] sm:$0xff]
    %v2506 = vld [vmem:[%s9 + $0x38] sm:$0xff]
    %v2507 = vld [vmem:[%s9 + $0x40] sm:$0xff]
    %v2508 = vld [vmem:[%s9 + $0x48] sm:$0xff]
    %v2509 = vld [vmem:[%s9 + $0x50] sm:$0xff]
    %v2510 = vld [vmem:[%s9 + $0x58] sm:$0xff]
    %v2511 = vld [vmem:[%s9 + $0x60] sm:$0xff]
    %v2512 = vld [vmem:[%s9 + $0x68] sm:$0xff]
    %v2513 = vld [vmem:[%s9 + $0x70] sm:$0xff]
    %v2514 = vld [vmem:[%s9 + $0x78] sm:$0xff]
    %v2515 = vld [vmem:[%s10] sm:$0x1]
    %v2517 = vperm.slane %v2515, 0
    %2519 = vmatpush.msra.mxu0 %v2514
    %2520 = vmatpush.msra.mxu0 %v2513
    %2521 = vmatpush.msra.mxu0 %v2512
    %2522 = vmatpush.msra.mxu0 %v2511
    %2523 = vmatpush.msra.mxu0 %v2510
    %2524 = vmatpush.msra.mxu0 %v2509
    %2525 = vmatpush.msra.mxu0 %v2508
    %2526 = vmatpush.msra.mxu0 %v2507
    %2527 = vmatpush.msra.mxu0 %v2506
    %2528 = vmatpush.msra.mxu0 %v2505
    %2529 = vmatpush.msra.mxu0 %v2504
    %2530 = vmatpush.msra.mxu0 %v2503
    %2531 = vmatpush.msra.mxu0 %v2502
    %2532 = vmatpush.msra.mxu0 %v2501
    %2533 = vmatpush.msra.mxu0 %v2500
    %2534 = vmatpush.msra.mxu0 %v2499
    %2535 = vmatmul.f32.gmra.mxu0 %v2498
    %v2536 = vpop.f32.mrf.mxu0
    %v2537 = vadd.f32 %v2517, %v2536
    %2538 = vdwg.mxu0
    %2539 = vst [vmem:[%s11] sm:$0xff] %v2537
    // Predicated region
    $region54: #{rnn_forward.1} parent=1 // pred_check
      _
    $region55: #{rnn_forward.1} parent=1 // pred_check_branch
      %2541 = sbr.rel (0) target = $region57
    $region56: #{rnn_forward.1} parent=1 // pred_region
      _
    $region57: #{rnn_forward.1} parent=1 // pred_fallthru
      _
    // Predicated region
    $region58: #{rnn_forward.1} parent=1 // pred_check
      _
    $region59: #{rnn_forward.1} parent=1 // pred_check_branch
      %2543 = sbr.rel (0) target = $region61
    $region60: #{rnn_forward.1} parent=1 // pred_region
      _
    $region61: #{rnn_forward.1} parent=1 // pred_fallthru
      _
    %2544 = vsyncpa [#allocation3], 1
    %2545 = vsyncpa [#allocation5], 1

</llo_original>
